<compile_context>
chip_gen: v5e
topology: v5e:2x2
jax: 0.10.0
libtpu: 0.0.40
codegen_flags: <defaults>
</compile_context>

<pallas_src>
import jax
import jax.numpy as jnp
import numpy as np
from jax.experimental import pallas as pl
from jax.experimental.pallas import tpu as pltpu

VMEM_SPEC = pl.BlockSpec(memory_space=pltpu.MemorySpace.VMEM)

H = W = 32        # spatial size required by the 16*5*5 flatten
CIN = 3


# ---------------------------------------------------------------------------
# The single fused kernel
# ---------------------------------------------------------------------------
def _lenet_fused_kernel(x_ref, m1_ref, b1_ref, m2_ref, b2_ref,
                        g_ref, bf1_ref, wf2_ref, bf2_ref, wf3_ref, bf3_ref,
                        o_ref, s1_ref, s2_ref):
    rows = x_ref.shape[0] - 8          # N * 32 activation rows (8 zero pad rows)
    n_images = o_ref.shape[0]

    # ---- conv1 + ReLU (cols 0:256 = conv at w, 256:512 = conv at w+1) ----
    acc = None
    for i in range(5):                 # kernel rows
        part = jnp.dot(x_ref[i:i + rows, :], m1_ref[i],
                       preferred_element_type=jnp.float32)
        acc = part if acc is None else acc + part
    y1 = jnp.maximum(acc + b1_ref[...], 0.0)            # (rows, 512)
    y1 = jnp.maximum(y1[:, :256], y1[:, 256:])           # width pool-pair max

    # stage (with zero pad rows) for the vertical shifts of pool1 / conv2
    s1_ref[...] = jnp.zeros(s1_ref.shape, jnp.float32)
    s1_ref[0:rows, :] = y1

    # ---- pool1 (vertical) fused with conv2 + ReLU ----
    acc = None
    for i in range(5):
        lhs = jnp.maximum(s1_ref[2 * i:2 * i + rows, :],
                          s1_ref[2 * i + 1:2 * i + 1 + rows, :])
        part = jnp.dot(lhs, m2_ref[i], preferred_element_type=jnp.float32)
        acc = part if acc is None else acc + part
    y2 = jnp.maximum(acc + b2_ref[...], 0.0)             # (rows, 512)
    y2 = jnp.maximum(y2[:, :256], y2[:, 256:])            # width pool-pair max

    s2_ref[...] = jnp.zeros(s2_ref.shape, jnp.float32)
    s2_ref[0:rows, :] = y2

    # ---- pool2 (vertical) fused with flatten + fc1 ----
    acc = None
    for u in range(5):
        lhs = jnp.maximum(s2_ref[4 * u:4 * u + rows, :],
                          s2_ref[4 * u + 2:4 * u + 2 + rows, :])
        part = jnp.dot(lhs, g_ref[u], preferred_element_type=jnp.float32)
        acc = part if acc is None else acc + part
    h1 = jnp.maximum(acc + bf1_ref[...], 0.0)            # (rows, 128); rows n*32 valid

    # ---- fc2 / fc3 ----
    h2 = jnp.maximum(
        jnp.dot(h1, wf2_ref[...], preferred_element_type=jnp.float32)
        + bf2_ref[...], 0.0)
    h3 = (jnp.dot(h2, wf3_ref[...], preferred_element_type=jnp.float32)
          + bf3_ref[...])

    # one valid row per image (row n*32); lanes 0:10 hold the logits
    for n in range(n_images):
        o_ref[n:n + 1, :] = h3[n * 32:n * 32 + 1, :]


# ---------------------------------------------------------------------------
# Host-side, one-time packing of torch-layout weights into structured matrices
# ---------------------------------------------------------------------------
def _shift_cols(a, k):
    out = np.zeros_like(a)
    out[..., :a.shape[-1] - k] = a[..., k:]
    return out


def pack_params(params):
    w1 = np.asarray(params["w_conv1"], np.float32)   # (6, 3, 5, 5)  OIHW
    b1 = np.asarray(params["b_conv1"], np.float32)
    w2 = np.asarray(params["w_conv2"], np.float32)   # (16, 6, 5, 5)
    b2 = np.asarray(params["b_conv2"], np.float32)
    wf1 = np.asarray(params["w_fc1"], np.float32)    # (120, 400)
    bf1 = np.asarray(params["b_fc1"], np.float32)
    wf2 = np.asarray(params["w_fc2"], np.float32)    # (84, 120)
    bf2 = np.asarray(params["b_fc2"], np.float32)
    wf3 = np.asarray(params["w_fc3"], np.float32)    # (10, 84)
    bf3 = np.asarray(params["b_fc3"], np.float32)

    # conv1 banded matrices: input lane = w_in*3 + cin, output lane = w*8 + cout
    m1 = np.zeros((5, 96, 256), np.float32)
    for i in range(5):
        for j in range(5):
            for w in range(W):
                w_in = w + j
                if w_in >= W:
                    continue
                m1[i, w_in * 3:w_in * 3 + 3, w * 8:w * 8 + 6] = w1[:, :, i, j].T
    b1row = np.zeros((256,), np.float32)
    for w in range(W):
        b1row[w * 8:w * 8 + 6] = b1
    m1_big = np.concatenate([m1, _shift_cols(m1, 8)], axis=2)            # (5,96,512)
    b1_big = np.concatenate([b1row, _shift_cols(b1row[None], 8)[0]])[None, :]

    # conv2 banded matrices on the pooled map (values live at even h/w positions):
    #   input lane = (2*(t+j))*8 + c1, output lane = t*16 + cout
    m2 = np.zeros((5, 256, 256), np.float32)
    for i in range(5):
        for j in range(5):
            for t in range(16):
                w_in = 2 * (t + j)
                if w_in >= W:
                    continue
                m2[i, w_in * 8:w_in * 8 + 6, t * 16:t * 16 + 16] = w2[:, :, i, j].T
    b2row = np.zeros((256,), np.float32)
    for t in range(16):
        b2row[t * 16:t * 16 + 16] = b2
    m2_big = np.concatenate([m2, _shift_cols(m2, 16)], axis=2)           # (5,256,512)
    b2_big = np.concatenate([b2row, _shift_cols(b2row[None], 16)[0]])[None, :]

    # fc1 with torch.flatten's (C, H, W) ordering absorbed:
    #   pooled2 value (u, v, d) lives at lane 32*v + d of activation row n*32 + 4*u
    g = np.zeros((5, 256, 128), np.float32)
    for u in range(5):
        for v in range(5):
            feat = np.arange(16) * 25 + u * 5 + v     # torch flat index d*25 + u*5 + v
            g[u, 32 * v:32 * v + 16, :120] = wf1[:, feat].T
    bf1_p = np.zeros((128,), np.float32); bf1_p[:120] = bf1
    wf2_p = np.zeros((128, 128), np.float32); wf2_p[:120, :84] = wf2.T
    bf2_p = np.zeros((128,), np.float32); bf2_p[:84] = bf2
    wf3_p = np.zeros((128, 128), np.float32); wf3_p[:84, :10] = wf3.T
    bf3_p = np.zeros((128,), np.float32); bf3_p[:10] = bf3

    packed = {
        "m1": m1_big, "b1": b1_big, "m2": m2_big, "b2": b2_big, "g": g,
        "bf1": bf1_p[None, :], "wf2": wf2_p, "bf2": bf2_p[None, :],
        "wf3": wf3_p, "bf3": bf3_p[None, :],
    }
    return {k: jnp.asarray(v) for k, v in packed.items()}


# ---------------------------------------------------------------------------
# Forward wrapper (single pallas_call)
# ---------------------------------------------------------------------------
@jax.jit
def net_forward(x_nchw, packed):
    assert x_nchw.shape[1:] == (CIN, H, W)
    n = x_nchw.shape[0]
    rows = n * H
    # NCHW -> rows=(n, h), lanes=(w, c), plus 8 zero pad rows for the row shifts.
    x2d = jnp.transpose(x_nchw, (0, 2, 3, 1)).reshape(rows, W * CIN)
    xp = jnp.zeros((rows + 8, W * CIN), jnp.float32).at[:rows].set(x2d)

    out = pl.pallas_call(
        _lenet_fused_kernel,
        out_shape=jax.ShapeDtypeStruct((n, 128), jnp.float32),
        in_specs=[VMEM_SPEC] * 11,
        out_specs=VMEM_SPEC,
        scratch_shapes=[pltpu.VMEM((rows + 16, 256), jnp.float32),
                        pltpu.VMEM((rows + 24, 256), jnp.float32)],
    )(xp, packed["m1"], packed["b1"], packed["m2"], packed["b2"],
      packed["g"], packed["bf1"], packed["wf2"], packed["bf2"],
      packed["wf3"], packed["bf3"])
    return out[:, :10]          # drop the zero-padded logit lanes


# ---------------------------------------------------------------------------
# Deterministic synthetic parameters (PyTorch layouts + default-style init)
# ---------------------------------------------------------------------------
def init_params(key):
    def uni(k, shape, fan_in):
        bound = 1.0 / np.sqrt(fan_in)
        return jax.random.uniform(k, shape, jnp.float32, -bound, bound)

    ks = jax.random.split(key, 10)
    return {
        "w_conv1": uni(ks[0], (6, 3, 5, 5), 3 * 25),
        "b_conv1": uni(ks[1], (6,), 3 * 25),
        "w_conv2": uni(ks[2], (16, 6, 5, 5), 6 * 25),
        "b_conv2": uni(ks[3], (16,), 6 * 25),
        "w_fc1": uni(ks[4], (120, 400), 400),
        "b_fc1": uni(ks[5], (120,), 400),
        "w_fc2": uni(ks[6], (84, 120), 120),
        "b_fc2": uni(ks[7], (84,), 120),
        "w_fc3": uni(ks[8], (10, 84), 84),
        "b_fc3": uni(ks[9], (10,), 84),
    }


# Pure-JAX reference (lax conv / reduce_window) for a sanity check.
def reference_forward(x_nchw, p):
    x = jnp.transpose(x_nchw, (0, 2, 3, 1))

    def conv(x, w_oihw, b):
        w = jnp.transpose(w_oihw, (2, 3, 1, 0))        # OIHW -> HWIO
        y = jax.lax.conv_general_dilated(
            x, w, window_strides=(1, 1), padding="VALID",
            dimension_numbers=("NHWC", "HWIO", "NHWC"))
        return jax.nn.relu(y + b)

    def pool(x):
        return jax.lax.reduce_window(x, -jnp.inf, jax.lax.max,
                                     (1, 2, 2, 1), (1, 2, 2, 1), "VALID")

    x = pool(conv(x, p["w_conv1"], p["b_conv1"]))
    x = pool(conv(x, p["w_conv2"], p["b_conv2"]))
    x = jnp.transpose(x, (0, 3, 1, 2)).reshape(x.shape[0], -1)   # torch.flatten order
    x = jax.nn.relu(x @ p["w_fc1"].T + p["b_fc1"])
    x = jax.nn.relu(x @ p["w_fc2"].T + p["b_fc2"])
    return x @ p["w_fc3"].T + p["b_fc3"]


if __name__ == "__main__":
    key = jax.random.PRNGKey(0)
    kx, kp = jax.random.split(key)
    # Architecture requires 32x32 input (16*5*5 flatten). Batch = 2, NCHW like PyTorch.
    x = jax.random.normal(kx, (2, 3, 32, 32), jnp.float32)
    params = init_params(kp)
    packed = pack_params(params)

    out = jax.block_until_ready(net_forward(x, packed))
    assert out.shape == (2, 10) and out.dtype == jnp.float32

    with jax.default_matmul_precision("float32"):
        ref = jax.block_until_ready(reference_forward(x, params))
    max_err = float(jnp.max(jnp.abs(out - ref)))
    # Tolerance covers MXU f32-matmul pass precision; layout/packing bugs give O(0.1+) errors.
    if max_err > 5e-3:
        raise AssertionError(f"Pallas output mismatch vs reference: max_err={max_err}")

    print("KERNEL_OK")
</pallas_src>

<mosaic_0001>
module attributes {stable_mosaic.version = 11 : i64} {
  func.func @_lenet_fused_kernel(%arg0: memref<72x96xf32, #tpu.memory_space<vmem>>, %arg1: memref<5x96x512xf32, #tpu.memory_space<vmem>>, %arg2: memref<1x512xf32, #tpu.memory_space<vmem>>, %arg3: memref<5x256x512xf32, #tpu.memory_space<vmem>>, %arg4: memref<1x512xf32, #tpu.memory_space<vmem>>, %arg5: memref<5x256x128xf32, #tpu.memory_space<vmem>>, %arg6: memref<1x128xf32, #tpu.memory_space<vmem>>, %arg7: memref<128x128xf32, #tpu.memory_space<vmem>>, %arg8: memref<1x128xf32, #tpu.memory_space<vmem>>, %arg9: memref<128x128xf32, #tpu.memory_space<vmem>>, %arg10: memref<1x128xf32, #tpu.memory_space<vmem>>, %arg11: memref<2x128xf32, #tpu.memory_space<vmem>>, %arg12: memref<80x256xf32, #tpu.memory_space<vmem>>, %arg13: memref<88x256xf32, #tpu.memory_space<vmem>>) attributes {dimension_semantics = [], scalar_prefetch = 0 : i64, scratch_operands = 2 : i64, tpu.core_type = #tpu.core_type<tc>} {
    %c0 = arith.constant 0 : index
    %c0_0 = arith.constant 0 : index
    %0 = vector.load %arg0[%c0, %c0_0] : memref<72x96xf32, #tpu.memory_space<vmem>>, vector<64x96xf32>
    %c0_1 = arith.constant 0 : index
    %c0_2 = arith.constant 0 : index
    %c0_3 = arith.constant 0 : index
    %1 = vector.load %arg1[%c0_1, %c0_2, %c0_3] : memref<5x96x512xf32, #tpu.memory_space<vmem>>, vector<1x96x512xf32>
    %2 = vector.shape_cast %1 : vector<1x96x512xf32> to vector<96x512xf32>
    %cst = arith.constant dense<0.000000e+00> : vector<64x512xf32>
    %3 = tpu.matmul %0, %2, %cst {dimension_numbers = #tpu.dot_dimension_numbers<[1], [0], [0], [1], [0, 0, 1, 1], [], []>} : vector<64x96xf32>, vector<96x512xf32>, vector<64x512xf32> -> vector<64x512xf32>
    %c1 = arith.constant 1 : index
    %c0_4 = arith.constant 0 : index
    %4 = vector.load %arg0[%c1, %c0_4] : memref<72x96xf32, #tpu.memory_space<vmem>>, vector<64x96xf32>
    %c1_5 = arith.constant 1 : index
    %c0_6 = arith.constant 0 : index
    %c0_7 = arith.constant 0 : index
    %5 = vector.load %arg1[%c1_5, %c0_6, %c0_7] : memref<5x96x512xf32, #tpu.memory_space<vmem>>, vector<1x96x512xf32>
    %6 = vector.shape_cast %5 : vector<1x96x512xf32> to vector<96x512xf32>
    %cst_8 = arith.constant dense<0.000000e+00> : vector<64x512xf32>
    %7 = tpu.matmul %4, %6, %cst_8 {dimension_numbers = #tpu.dot_dimension_numbers<[1], [0], [0], [1], [0, 0, 1, 1], [], []>} : vector<64x96xf32>, vector<96x512xf32>, vector<64x512xf32> -> vector<64x512xf32>
    %8 = arith.addf %3, %7 : vector<64x512xf32>
    %c2 = arith.constant 2 : index
    %c0_9 = arith.constant 0 : index
    %9 = vector.load %arg0[%c2, %c0_9] : memref<72x96xf32, #tpu.memory_space<vmem>>, vector<64x96xf32>
    %c2_10 = arith.constant 2 : index
    %c0_11 = arith.constant 0 : index
    %c0_12 = arith.constant 0 : index
    %10 = vector.load %arg1[%c2_10, %c0_11, %c0_12] : memref<5x96x512xf32, #tpu.memory_space<vmem>>, vector<1x96x512xf32>
    %11 = vector.shape_cast %10 : vector<1x96x512xf32> to vector<96x512xf32>
    %cst_13 = arith.constant dense<0.000000e+00> : vector<64x512xf32>
    %12 = tpu.matmul %9, %11, %cst_13 {dimension_numbers = #tpu.dot_dimension_numbers<[1], [0], [0], [1], [0, 0, 1, 1], [], []>} : vector<64x96xf32>, vector<96x512xf32>, vector<64x512xf32> -> vector<64x512xf32>
    %13 = arith.addf %8, %12 : vector<64x512xf32>
    %c3 = arith.constant 3 : index
    %c0_14 = arith.constant 0 : index
    %14 = vector.load %arg0[%c3, %c0_14] : memref<72x96xf32, #tpu.memory_space<vmem>>, vector<64x96xf32>
    %c3_15 = arith.constant 3 : index
    %c0_16 = arith.constant 0 : index
    %c0_17 = arith.constant 0 : index
    %15 = vector.load %arg1[%c3_15, %c0_16, %c0_17] : memref<5x96x512xf32, #tpu.memory_space<vmem>>, vector<1x96x512xf32>
    %16 = vector.shape_cast %15 : vector<1x96x512xf32> to vector<96x512xf32>
    %cst_18 = arith.constant dense<0.000000e+00> : vector<64x512xf32>
    %17 = tpu.matmul %14, %16, %cst_18 {dimension_numbers = #tpu.dot_dimension_numbers<[1], [0], [0], [1], [0, 0, 1, 1], [], []>} : vector<64x96xf32>, vector<96x512xf32>, vector<64x512xf32> -> vector<64x512xf32>
    %18 = arith.addf %13, %17 : vector<64x512xf32>
    %c4 = arith.constant 4 : index
    %c0_19 = arith.constant 0 : index
    %19 = vector.load %arg0[%c4, %c0_19] : memref<72x96xf32, #tpu.memory_space<vmem>>, vector<64x96xf32>
    %c4_20 = arith.constant 4 : index
    %c0_21 = arith.constant 0 : index
    %c0_22 = arith.constant 0 : index
    %20 = vector.load %arg1[%c4_20, %c0_21, %c0_22] : memref<5x96x512xf32, #tpu.memory_space<vmem>>, vector<1x96x512xf32>
    %21 = vector.shape_cast %20 : vector<1x96x512xf32> to vector<96x512xf32>
    %cst_23 = arith.constant dense<0.000000e+00> : vector<64x512xf32>
    %22 = tpu.matmul %19, %21, %cst_23 {dimension_numbers = #tpu.dot_dimension_numbers<[1], [0], [0], [1], [0, 0, 1, 1], [], []>} : vector<64x96xf32>, vector<96x512xf32>, vector<64x512xf32> -> vector<64x512xf32>
    %23 = arith.addf %18, %22 : vector<64x512xf32>
    %c0_24 = arith.constant 0 : index
    %c0_25 = arith.constant 0 : index
    %24 = vector.load %arg2[%c0_24, %c0_25] : memref<1x512xf32, #tpu.memory_space<vmem>>, vector<1x512xf32>
    %25 = vector.broadcast %24 : vector<1x512xf32> to vector<64x512xf32>
    %26 = arith.addf %23, %25 : vector<64x512xf32>
    %cst_26 = arith.constant 0.000000e+00 : f32
    %27 = vector.broadcast %cst_26 : f32 to vector<64x512xf32>
    %28 = arith.maximumf %26, %27 : vector<64x512xf32>
    %29 = vector.extract_strided_slice %28 {offsets = [0, 0], sizes = [64, 256], strides = [1, 1]} : vector<64x512xf32> to vector<64x256xf32>
    %30 = vector.extract_strided_slice %28 {offsets = [0, 256], sizes = [64, 256], strides = [1, 1]} : vector<64x512xf32> to vector<64x256xf32>
    %31 = arith.maximumf %29, %30 : vector<64x256xf32>
    %cst_27 = arith.constant 0.000000e+00 : f32
    %32 = vector.broadcast %cst_27 : f32 to vector<80x256xf32>
    %c0_28 = arith.constant 0 : index
    %c0_29 = arith.constant 0 : index
    %33 = vector.load %arg12[%c0_28, %c0_29] : memref<80x256xf32, #tpu.memory_space<vmem>>, vector<80x256xf32>
    tpu.vector_store %arg12[%c0_28, %c0_29], %32 {strides = array<i32>} : memref<80x256xf32, #tpu.memory_space<vmem>>, vector<80x256xf32>,
    %c0_30 = arith.constant 0 : index
    %c0_31 = arith.constant 0 : index
    %34 = vector.load %arg12[%c0_30, %c0_31] : memref<80x256xf32, #tpu.memory_space<vmem>>, vector<64x256xf32>
    tpu.vector_store %arg12[%c0_30, %c0_31], %31 {strides = array<i32>} : memref<80x256xf32, #tpu.memory_space<vmem>>, vector<64x256xf32>,
    %c0_32 = arith.constant 0 : index
    %c0_33 = arith.constant 0 : index
    %35 = vector.load %arg12[%c0_32, %c0_33] : memref<80x256xf32, #tpu.memory_space<vmem>>, vector<64x256xf32>
    %c1_34 = arith.constant 1 : index
    %c0_35 = arith.constant 0 : index
    %36 = vector.load %arg12[%c1_34, %c0_35] : memref<80x256xf32, #tpu.memory_space<vmem>>, vector<64x256xf32>
    %37 = arith.maximumf %35, %36 : vector<64x256xf32>
    %c0_36 = arith.constant 0 : index
    %c0_37 = arith.constant 0 : index
    %c0_38 = arith.constant 0 : index
    %38 = vector.load %arg3[%c0_36, %c0_37, %c0_38] : memref<5x256x512xf32, #tpu.memory_space<vmem>>, vector<1x256x512xf32>
    %39 = vector.shape_cast %38 : vector<1x256x512xf32> to vector<256x512xf32>
    %cst_39 = arith.constant dense<0.000000e+00> : vector<64x512xf32>
    %40 = tpu.matmul %37, %39, %cst_39 {dimension_numbers = #tpu.dot_dimension_numbers<[1], [0], [0], [1], [0, 0, 1, 1], [], []>} : vector<64x256xf32>, vector<256x512xf32>, vector<64x512xf32> -> vector<64x512xf32>
    %c2_40 = arith.constant 2 : index
    %c0_41 = arith.constant 0 : index
    %41 = vector.load %arg12[%c2_40, %c0_41] : memref<80x256xf32, #tpu.memory_space<vmem>>, vector<64x256xf32>
    %c3_42 = arith.constant 3 : index
    %c0_43 = arith.constant 0 : index
    %42 = vector.load %arg12[%c3_42, %c0_43] : memref<80x256xf32, #tpu.memory_space<vmem>>, vector<64x256xf32>
    %43 = arith.maximumf %41, %42 : vector<64x256xf32>
    %c1_44 = arith.constant 1 : index
    %c0_45 = arith.constant 0 : index
    %c0_46 = arith.constant 0 : index
    %44 = vector.load %arg3[%c1_44, %c0_45, %c0_46] : memref<5x256x512xf32, #tpu.memory_space<vmem>>, vector<1x256x512xf32>
    %45 = vector.shape_cast %44 : vector<1x256x512xf32> to vector<256x512xf32>
    %cst_47 = arith.constant dense<0.000000e+00> : vector<64x512xf32>
    %46 = tpu.matmul %43, %45, %cst_47 {dimension_numbers = #tpu.dot_dimension_numbers<[1], [0], [0], [1], [0, 0, 1, 1], [], []>} : vector<64x256xf32>, vector<256x512xf32>, vector<64x512xf32> -> vector<64x512xf32>
    %47 = arith.addf %40, %46 : vector<64x512xf32>
    %c4_48 = arith.constant 4 : index
    %c0_49 = arith.constant 0 : index
    %48 = vector.load %arg12[%c4_48, %c0_49] : memref<80x256xf32, #tpu.memory_space<vmem>>, vector<64x256xf32>
    %c5 = arith.constant 5 : index
    %c0_50 = arith.constant 0 : index
    %49 = vector.load %arg12[%c5, %c0_50] : memref<80x256xf32, #tpu.memory_space<vmem>>, vector<64x256xf32>
    %50 = arith.maximumf %48, %49 : vector<64x256xf32>
    %c2_51 = arith.constant 2 : index
    %c0_52 = arith.constant 0 : index
    %c0_53 = arith.constant 0 : index
    %51 = vector.load %arg3[%c2_51, %c0_52, %c0_53] : memref<5x256x512xf32, #tpu.memory_space<vmem>>, vector<1x256x512xf32>
    %52 = vector.shape_cast %51 : vector<1x256x512xf32> to vector<256x512xf32>
    %cst_54 = arith.constant dense<0.000000e+00> : vector<64x512xf32>
    %53 = tpu.matmul %50, %52, %cst_54 {dimension_numbers = #tpu.dot_dimension_numbers<[1], [0], [0], [1], [0, 0, 1, 1], [], []>} : vector<64x256xf32>, vector<256x512xf32>, vector<64x512xf32> -> vector<64x512xf32>
    %54 = arith.addf %47, %53 : vector<64x512xf32>
    %c6 = arith.constant 6 : index
    %c0_55 = arith.constant 0 : index
    %55 = vector.load %arg12[%c6, %c0_55] : memref<80x256xf32, #tpu.memory_space<vmem>>, vector<64x256xf32>
    %c7 = arith.constant 7 : index
    %c0_56 = arith.constant 0 : index
    %56 = vector.load %arg12[%c7, %c0_56] : memref<80x256xf32, #tpu.memory_space<vmem>>, vector<64x256xf32>
    %57 = arith.maximumf %55, %56 : vector<64x256xf32>
    %c3_57 = arith.constant 3 : index
    %c0_58 = arith.constant 0 : index
    %c0_59 = arith.constant 0 : index
    %58 = vector.load %arg3[%c3_57, %c0_58, %c0_59] : memref<5x256x512xf32, #tpu.memory_space<vmem>>, vector<1x256x512xf32>
    %59 = vector.shape_cast %58 : vector<1x256x512xf32> to vector<256x512xf32>
    %cst_60 = arith.constant dense<0.000000e+00> : vector<64x512xf32>
    %60 = tpu.matmul %57, %59, %cst_60 {dimension_numbers = #tpu.dot_dimension_numbers<[1], [0], [0], [1], [0, 0, 1, 1], [], []>} : vector<64x256xf32>, vector<256x512xf32>, vector<64x512xf32> -> vector<64x512xf32>
    %61 = arith.addf %54, %60 : vector<64x512xf32>
    %c8 = arith.constant 8 : index
    %c0_61 = arith.constant 0 : index
    %62 = vector.load %arg12[%c8, %c0_61] : memref<80x256xf32, #tpu.memory_space<vmem>>, vector<64x256xf32>
    %c9 = arith.constant 9 : index
    %c0_62 = arith.constant 0 : index
    %63 = vector.load %arg12[%c9, %c0_62] : memref<80x256xf32, #tpu.memory_space<vmem>>, vector<64x256xf32>
    %64 = arith.maximumf %62, %63 : vector<64x256xf32>
    %c4_63 = arith.constant 4 : index
    %c0_64 = arith.constant 0 : index
    %c0_65 = arith.constant 0 : index
    %65 = vector.load %arg3[%c4_63, %c0_64, %c0_65] : memref<5x256x512xf32, #tpu.memory_space<vmem>>, vector<1x256x512xf32>
    %66 = vector.shape_cast %65 : vector<1x256x512xf32> to vector<256x512xf32>
    %cst_66 = arith.constant dense<0.000000e+00> : vector<64x512xf32>
    %67 = tpu.matmul %64, %66, %cst_66 {dimension_numbers = #tpu.dot_dimension_numbers<[1], [0], [0], [1], [0, 0, 1, 1], [], []>} : vector<64x256xf32>, vector<256x512xf32>, vector<64x512xf32> -> vector<64x512xf32>
    %68 = arith.addf %61, %67 : vector<64x512xf32>
    %c0_67 = arith.constant 0 : index
    %c0_68 = arith.constant 0 : index
    %69 = vector.load %arg4[%c0_67, %c0_68] : memref<1x512xf32, #tpu.memory_space<vmem>>, vector<1x512xf32>
    %70 = vector.broadcast %69 : vector<1x512xf32> to vector<64x512xf32>
    %71 = arith.addf %68, %70 : vector<64x512xf32>
    %cst_69 = arith.constant 0.000000e+00 : f32
    %72 = vector.broadcast %cst_69 : f32 to vector<64x512xf32>
    %73 = arith.maximumf %71, %72 : vector<64x512xf32>
    %74 = vector.extract_strided_slice %73 {offsets = [0, 0], sizes = [64, 256], strides = [1, 1]} : vector<64x512xf32> to vector<64x256xf32>
    %75 = vector.extract_strided_slice %73 {offsets = [0, 256], sizes = [64, 256], strides = [1, 1]} : vector<64x512xf32> to vector<64x256xf32>
    %76 = arith.maximumf %74, %75 : vector<64x256xf32>
    %cst_70 = arith.constant 0.000000e+00 : f32
    %77 = vector.broadcast %cst_70 : f32 to vector<88x256xf32>
    %c0_71 = arith.constant 0 : index
    %c0_72 = arith.constant 0 : index
    %78 = vector.load %arg13[%c0_71, %c0_72] : memref<88x256xf32, #tpu.memory_space<vmem>>, vector<88x256xf32>
    tpu.vector_store %arg13[%c0_71, %c0_72], %77 {strides = array<i32>} : memref<88x256xf32, #tpu.memory_space<vmem>>, vector<88x256xf32>,
    %c0_73 = arith.constant 0 : index
    %c0_74 = arith.constant 0 : index
    %79 = vector.load %arg13[%c0_73, %c0_74] : memref<88x256xf32, #tpu.memory_space<vmem>>, vector<64x256xf32>
    tpu.vector_store %arg13[%c0_73, %c0_74], %76 {strides = array<i32>} : memref<88x256xf32, #tpu.memory_space<vmem>>, vector<64x256xf32>,
    %c0_75 = arith.constant 0 : index
    %c0_76 = arith.constant 0 : index
    %80 = vector.load %arg13[%c0_75, %c0_76] : memref<88x256xf32, #tpu.memory_space<vmem>>, vector<64x256xf32>
    %c2_77 = arith.constant 2 : index
    %c0_78 = arith.constant 0 : index
    %81 = vector.load %arg13[%c2_77, %c0_78] : memref<88x256xf32, #tpu.memory_space<vmem>>, vector<64x256xf32>
    %82 = arith.maximumf %80, %81 : vector<64x256xf32>
    %c0_79 = arith.constant 0 : index
    %c0_80 = arith.constant 0 : index
    %c0_81 = arith.constant 0 : index
    %83 = vector.load %arg5[%c0_79, %c0_80, %c0_81] : memref<5x256x128xf32, #tpu.memory_space<vmem>>, vector<1x256x128xf32>
    %84 = vector.shape_cast %83 : vector<1x256x128xf32> to vector<256x128xf32>
    %cst_82 = arith.constant dense<0.000000e+00> : vector<64x128xf32>
    %85 = tpu.matmul %82, %84, %cst_82 {dimension_numbers = #tpu.dot_dimension_numbers<[1], [0], [0], [1], [0, 0, 1, 1], [], []>} : vector<64x256xf32>, vector<256x128xf32>, vector<64x128xf32> -> vector<64x128xf32>
    %c4_83 = arith.constant 4 : index
    %c0_84 = arith.constant 0 : index
    %86 = vector.load %arg13[%c4_83, %c0_84] : memref<88x256xf32, #tpu.memory_space<vmem>>, vector<64x256xf32>
    %c6_85 = arith.constant 6 : index
    %c0_86 = arith.constant 0 : index
    %87 = vector.load %arg13[%c6_85, %c0_86] : memref<88x256xf32, #tpu.memory_space<vmem>>, vector<64x256xf32>
    %88 = arith.maximumf %86, %87 : vector<64x256xf32>
    %c1_87 = arith.constant 1 : index
    %c0_88 = arith.constant 0 : index
    %c0_89 = arith.constant 0 : index
    %89 = vector.load %arg5[%c1_87, %c0_88, %c0_89] : memref<5x256x128xf32, #tpu.memory_space<vmem>>, vector<1x256x128xf32>
    %90 = vector.shape_cast %89 : vector<1x256x128xf32> to vector<256x128xf32>
    %cst_90 = arith.constant dense<0.000000e+00> : vector<64x128xf32>
    %91 = tpu.matmul %88, %90, %cst_90 {dimension_numbers = #tpu.dot_dimension_numbers<[1], [0], [0], [1], [0, 0, 1, 1], [], []>} : vector<64x256xf32>, vector<256x128xf32>, vector<64x128xf32> -> vector<64x128xf32>
    %92 = arith.addf %85, %91 : vector<64x128xf32>
    %c8_91 = arith.constant 8 : index
    %c0_92 = arith.constant 0 : index
    %93 = vector.load %arg13[%c8_91, %c0_92] : memref<88x256xf32, #tpu.memory_space<vmem>>, vector<64x256xf32>
    %c10 = arith.constant 10 : index
    %c0_93 = arith.constant 0 : index
    %94 = vector.load %arg13[%c10, %c0_93] : memref<88x256xf32, #tpu.memory_space<vmem>>, vector<64x256xf32>
    %95 = arith.maximumf %93, %94 : vector<64x256xf32>
    %c2_94 = arith.constant 2 : index
    %c0_95 = arith.constant 0 : index
    %c0_96 = arith.constant 0 : index
    %96 = vector.load %arg5[%c2_94, %c0_95, %c0_96] : memref<5x256x128xf32, #tpu.memory_space<vmem>>, vector<1x256x128xf32>
    %97 = vector.shape_cast %96 : vector<1x256x128xf32> to vector<256x128xf32>
    %cst_97 = arith.constant dense<0.000000e+00> : vector<64x128xf32>
    %98 = tpu.matmul %95, %97, %cst_97 {dimension_numbers = #tpu.dot_dimension_numbers<[1], [0], [0], [1], [0, 0, 1, 1], [], []>} : vector<64x256xf32>, vector<256x128xf32>, vector<64x128xf32> -> vector<64x128xf32>
    %99 = arith.addf %92, %98 : vector<64x128xf32>
    %c12 = arith.constant 12 : index
    %c0_98 = arith.constant 0 : index
    %100 = vector.load %arg13[%c12, %c0_98] : memref<88x256xf32, #tpu.memory_space<vmem>>, vector<64x256xf32>
    %c14 = arith.constant 14 : index
    %c0_99 = arith.constant 0 : index
    %101 = vector.load %arg13[%c14, %c0_99] : memref<88x256xf32, #tpu.memory_space<vmem>>, vector<64x256xf32>
    %102 = arith.maximumf %100, %101 : vector<64x256xf32>
    %c3_100 = arith.constant 3 : index
    %c0_101 = arith.constant 0 : index
    %c0_102 = arith.constant 0 : index
    %103 = vector.load %arg5[%c3_100, %c0_101, %c0_102] : memref<5x256x128xf32, #tpu.memory_space<vmem>>, vector<1x256x128xf32>
    %104 = vector.shape_cast %103 : vector<1x256x128xf32> to vector<256x128xf32>
    %cst_103 = arith.constant dense<0.000000e+00> : vector<64x128xf32>
    %105 = tpu.matmul %102, %104, %cst_103 {dimension_numbers = #tpu.dot_dimension_numbers<[1], [0], [0], [1], [0, 0, 1, 1], [], []>} : vector<64x256xf32>, vector<256x128xf32>, vector<64x128xf32> -> vector<64x128xf32>
    %106 = arith.addf %99, %105 : vector<64x128xf32>
    %c16 = arith.constant 16 : index
    %c0_104 = arith.constant 0 : index
    %107 = vector.load %arg13[%c16, %c0_104] : memref<88x256xf32, #tpu.memory_space<vmem>>, vector<64x256xf32>
    %c18 = arith.constant 18 : index
    %c0_105 = arith.constant 0 : index
    %108 = vector.load %arg13[%c18, %c0_105] : memref<88x256xf32, #tpu.memory_space<vmem>>, vector<64x256xf32>
    %109 = arith.maximumf %107, %108 : vector<64x256xf32>
    %c4_106 = arith.constant 4 : index
    %c0_107 = arith.constant 0 : index
    %c0_108 = arith.constant 0 : index
    %110 = vector.load %arg5[%c4_106, %c0_107, %c0_108] : memref<5x256x128xf32, #tpu.memory_space<vmem>>, vector<1x256x128xf32>
    %111 = vector.shape_cast %110 : vector<1x256x128xf32> to vector<256x128xf32>
    %cst_109 = arith.constant dense<0.000000e+00> : vector<64x128xf32>
    %112 = tpu.matmul %109, %111, %cst_109 {dimension_numbers = #tpu.dot_dimension_numbers<[1], [0], [0], [1], [0, 0, 1, 1], [], []>} : vector<64x256xf32>, vector<256x128xf32>, vector<64x128xf32> -> vector<64x128xf32>
    %113 = arith.addf %106, %112 : vector<64x128xf32>
    %c0_110 = arith.constant 0 : index
    %c0_111 = arith.constant 0 : index
    %114 = vector.load %arg6[%c0_110, %c0_111] : memref<1x128xf32, #tpu.memory_space<vmem>>, vector<1x128xf32>
    %115 = vector.broadcast %114 : vector<1x128xf32> to vector<64x128xf32>
    %116 = arith.addf %113, %115 : vector<64x128xf32>
    %cst_112 = arith.constant 0.000000e+00 : f32
    %117 = vector.broadcast %cst_112 : f32 to vector<64x128xf32>
    %118 = arith.maximumf %116, %117 : vector<64x128xf32>
    %c0_113 = arith.constant 0 : index
    %c0_114 = arith.constant 0 : index
    %119 = vector.load %arg7[%c0_113, %c0_114] : memref<128x128xf32, #tpu.memory_space<vmem>>, vector<128x128xf32>
    %cst_115 = arith.constant dense<0.000000e+00> : vector<64x128xf32>
    %120 = tpu.matmul %118, %119, %cst_115 {dimension_numbers = #tpu.dot_dimension_numbers<[1], [0], [0], [1], [0, 0, 1, 1], [], []>} : vector<64x128xf32>, vector<128x128xf32>, vector<64x128xf32> -> vector<64x128xf32>
    %c0_116 = arith.constant 0 : index
    %c0_117 = arith.constant 0 : index
    %121 = vector.load %arg8[%c0_116, %c0_117] : memref<1x128xf32, #tpu.memory_space<vmem>>, vector<1x128xf32>
    %122 = vector.broadcast %121 : vector<1x128xf32> to vector<64x128xf32>
    %123 = arith.addf %120, %122 : vector<64x128xf32>
    %cst_118 = arith.constant 0.000000e+00 : f32
    %124 = vector.broadcast %cst_118 : f32 to vector<64x128xf32>
    %125 = arith.maximumf %123, %124 : vector<64x128xf32>
    %c0_119 = arith.constant 0 : index
    %c0_120 = arith.constant 0 : index
    %126 = vector.load %arg9[%c0_119, %c0_120] : memref<128x128xf32, #tpu.memory_space<vmem>>, vector<128x128xf32>
    %cst_121 = arith.constant dense<0.000000e+00> : vector<64x128xf32>
    %127 = tpu.matmul %125, %126, %cst_121 {dimension_numbers = #tpu.dot_dimension_numbers<[1], [0], [0], [1], [0, 0, 1, 1], [], []>} : vector<64x128xf32>, vector<128x128xf32>, vector<64x128xf32> -> vector<64x128xf32>
    %c0_122 = arith.constant 0 : index
    %c0_123 = arith.constant 0 : index
    %128 = vector.load %arg10[%c0_122, %c0_123] : memref<1x128xf32, #tpu.memory_space<vmem>>, vector<1x128xf32>
    %129 = vector.broadcast %128 : vector<1x128xf32> to vector<64x128xf32>
    %130 = arith.addf %127, %129 : vector<64x128xf32>
    %131 = vector.extract_strided_slice %130 {offsets = [0, 0], sizes = [1, 128], strides = [1, 1]} : vector<64x128xf32> to vector<1x128xf32>
    %c0_124 = arith.constant 0 : index
    %c0_125 = arith.constant 0 : index
    %132 = vector.load %arg11[%c0_124, %c0_125] : memref<2x128xf32, #tpu.memory_space<vmem>>, vector<1x128xf32>
    tpu.vector_store %arg11[%c0_124, %c0_125], %131 {strides = array<i32>} : memref<2x128xf32, #tpu.memory_space<vmem>>, vector<1x128xf32>,
    %133 = vector.extract_strided_slice %130 {offsets = [32, 0], sizes = [1, 128], strides = [1, 1]} : vector<64x128xf32> to vector<1x128xf32>
    %c1_126 = arith.constant 1 : index
    %c0_127 = arith.constant 0 : index
    %134 = vector.load %arg11[%c1_126, %c0_127] : memref<2x128xf32, #tpu.memory_space<vmem>>, vector<1x128xf32>
    tpu.vector_store %arg11[%c1_126, %c0_127], %133 {strides = array<i32>} : memref<2x128xf32, #tpu.memory_space<vmem>>, vector<1x128xf32>,
    return
  }
}

</mosaic_0001>

<llo_original>
// kernel: net_forward.1
$region0: #{net_forward.1}
  #allocation0 [shape = 'u32[]', space=smem, size = 0x4, offset = 0x4, fixed_abs, tag = 'smem constant byte address 0x4 - core index']
  #allocation1 [shape = 'u32[72,128]{1,0:T(1,128)}', space=vmem, size = 0x9000, scoped, tag = 'internal scratch']
  #allocation2 [shape = 'f32[80,256]{1,0:T(8,128)}', space=vmem, size = 0x14000, scoped, tag = 'scratch operand']
  #allocation3 [shape = 'f32[88,256]{1,0:T(8,128)}', space=vmem, size = 0x16000, scoped, tag = 'scratch operand']
  %s0 = inlined_call_operand.vmem [shape: f32[72,96], index: 0, kind: input, shape index: {}]
  %s1 = inlined_call_operand.hbm [shape: f32[5,96,512], index: 1, kind: input, shape index: {}]
  %s2 = inlined_call_operand.hbm [shape: f32[1,512], index: 2, kind: input, shape index: {}]
  %s3 = inlined_call_operand.hbm [shape: f32[5,256,512], index: 3, kind: input, shape index: {}]
  %s4 = inlined_call_operand.hbm [shape: f32[1,512], index: 4, kind: input, shape index: {}]
  %s5 = inlined_call_operand.hbm [shape: f32[5,256,128], index: 5, kind: input, shape index: {}]
  %s6 = inlined_call_operand.hbm [shape: f32[1,128], index: 6, kind: input, shape index: {}]
  %s7 = inlined_call_operand.hbm [shape: f32[128,128], index: 7, kind: input, shape index: {}]
  %s8 = inlined_call_operand.hbm [shape: f32[1,128], index: 8, kind: input, shape index: {}]
  %s9 = inlined_call_operand.hbm [shape: f32[128,128], index: 9, kind: input, shape index: {}]
  %s10 = inlined_call_operand.hbm [shape: f32[1,128], index: 10, kind: input, shape index: {}]
  %s11 = inlined_call_operand.hbm [shape: f32[2,128], index: 11, kind: output, shape index: {}]
  %s12 = sld [smem:[#allocation0]]
  $region94: #{net_forward.1} parent=0
    _
  %s14 = ssub.s32 1, %s12
  %s15 = scalar_select 0, %s14, %s12
  $region1: #{net_forward.1} parent=0
    #allocation4 [shape = 'u8[983040]{0}', space=vmem, size = 0xf0000, scoped, tag = 'input window, operand 1, single buffered']
    #allocation5 [shape = 's32[1]{0}', space=sflag, size = 0x4, scoped, tag = 'scoped memory for net_forward.1']
    #allocation6 [shape = 's32[1]{0}', space=sflag, size = 0x4, scoped, tag = 'scoped memory for net_forward.1']
    #allocation7 [shape = 'u8[2048]{0}', space=vmem, size = 0x800, scoped, tag = 'input window, operand 2, single buffered']
    #allocation8 [shape = 's32[1]{0}', space=sflag, size = 0x4, scoped, tag = 'scoped memory for net_forward.1']
    #allocation9 [shape = 'u8[2621440]{0}', space=vmem, size = 0x280000, scoped, tag = 'input window, operand 3, single buffered']
    #allocation10 [shape = 'u8[2048]{0}', space=vmem, size = 0x800, scoped, tag = 'input window, operand 4, single buffered']
    #allocation11 [shape = 's32[1]{0}', space=sflag, size = 0x4, scoped, tag = 'scoped memory for net_forward.1']
    #allocation12 [shape = 'u8[655360]{0}', space=vmem, size = 0xa0000, scoped, tag = 'input window, operand 5, single buffered']
    #allocation13 [shape = 'u8[512]{0}', space=vmem, size = 0x400, scoped, tag = 'input window, operand 6, single buffered']
    #allocation14 [shape = 's32[1]{0}', space=sflag, size = 0x4, scoped, tag = 'scoped memory for net_forward.1']
    #allocation15 [shape = 'u8[65536]{0}', space=vmem, size = 0x10000, scoped, tag = 'input window, operand 7, single buffered']
    #allocation16 [shape = 'u8[512]{0}', space=vmem, size = 0x400, scoped, tag = 'input window, operand 8, single buffered']
    #allocation17 [shape = 's32[1]{0}', space=sflag, size = 0x4, scoped, tag = 'scoped memory for net_forward.1']
    #allocation18 [shape = 'u8[65536]{0}', space=vmem, size = 0x10000, scoped, tag = 'input window, operand 9, single buffered']
    #allocation19 [shape = 'u8[512]{0}', space=vmem, size = 0x400, scoped, tag = 'input window, operand 10, single buffered']
    #allocation20 [shape = 's32[1]{0}', space=sflag, size = 0x4, scoped, tag = 'scoped memory for net_forward.1']
    #allocation21 [shape = 'u8[1024]{0}', space=vmem, size = 0x400, scoped, tag = 'output window, operand 0, single buffered']
    %16 = vsyncpa [#allocation5], 0
    %17 = vsyncpa [#allocation8], 0
    %18 = vsyncpa [#allocation11], 0
    %19 = vsyncpa [#allocation14], 0
    %20 = vsyncpa [#allocation17], 0
    %21 = vsyncpa [#allocation20], 0
    %22 = vsyncpa [#allocation6], 0
    // Predicated region
    $region2: #{net_forward.1} parent=1 // pred_check
      _
    $region3: #{net_forward.1} parent=1 // pred_check_branch
      %24 = sbr.rel (0) target = $region5
    $region4: #{net_forward.1} parent=1 // pred_region
      _
    $region5: #{net_forward.1} parent=1 // pred_fallthru
      _
    // Predicated region
    $region6: #{net_forward.1} parent=1 // pred_check
      _
    $region7: #{net_forward.1} parent=1 // pred_check_branch
      %26 = sbr.rel (0) target = $region9
    $region8: #{net_forward.1} parent=1 // pred_region
      %28 = vsyncadd [#allocation5], 0
      %s29 = sshll.u32 %s1, 4
      %s30 = int_to_ptr.hbm [resolvable:$true] %s29
      %s31 = sshll.u32 [#allocation4], 4
      %s32 = int_to_ptr.vmem [resolvable:$true] %s31
      %37 = dma.hbm_to_vmem [thread:$0]  %s30, 30720, %s32, [#allocation5], 512, 512, 32
    $region9: #{net_forward.1} parent=1 // pred_fallthru
      _
    // Predicated region
    $region10: #{net_forward.1} parent=1 // pred_check
      _
    $region11: #{net_forward.1} parent=1 // pred_check_branch
      %39 = sbr.rel (0) target = $region13
    $region12: #{net_forward.1} parent=1 // pred_region
      %41 = vsyncadd [#allocation8], 0
      %s43 = sshll.u32 %s2, 4
      %s44 = int_to_ptr.hbm [resolvable:$true] %s43
      %s45 = sshll.u32 [#allocation7], 4
      %s46 = int_to_ptr.vmem [resolvable:$true] %s45
      %48 = dma.hbm_to_vmem [thread:$0]  %s44, 64, %s46, [#allocation8]
    $region13: #{net_forward.1} parent=1 // pred_fallthru
      _
    // Predicated region
    $region14: #{net_forward.1} parent=1 // pred_check
      _
    $region15: #{net_forward.1} parent=1 // pred_check_branch
      %50 = sbr.rel (0) target = $region17
    $region16: #{net_forward.1} parent=1 // pred_region
      %52 = vsyncadd [#allocation8], 0
      %s53 = sshll.u32 %s3, 4
      %s54 = int_to_ptr.hbm [resolvable:$true] %s53
      %s55 = sshll.u32 [#allocation9], 4
      %s56 = int_to_ptr.vmem [resolvable:$true] %s55
      %61 = dma.hbm_to_vmem [thread:$0]  %s54, 81920, %s56, [#allocation8], 512, 512, 32
    $region17: #{net_forward.1} parent=1 // pred_fallthru
      _
    // Predicated region
    $region18: #{net_forward.1} parent=1 // pred_check
      _
    $region19: #{net_forward.1} parent=1 // pred_check_branch
      %63 = sbr.rel (0) target = $region21
    $region20: #{net_forward.1} parent=1 // pred_region
      %65 = vsyncadd [#allocation11], 0
      %s67 = sshll.u32 %s4, 4
      %s68 = int_to_ptr.hbm [resolvable:$true] %s67
      %s69 = sshll.u32 [#allocation10], 4
      %s70 = int_to_ptr.vmem [resolvable:$true] %s69
      %72 = dma.hbm_to_vmem [thread:$0]  %s68, 64, %s70, [#allocation11]
    $region21: #{net_forward.1} parent=1 // pred_fallthru
      _
    // Predicated region
    $region22: #{net_forward.1} parent=1 // pred_check
      _
    $region23: #{net_forward.1} parent=1 // pred_check_branch
      %74 = sbr.rel (0) target = $region25
    $region24: #{net_forward.1} parent=1 // pred_region
      %76 = vsyncadd [#allocation11], 0
      %s77 = sshll.u32 %s5, 4
      %s78 = int_to_ptr.hbm [resolvable:$true] %s77
      %s79 = sshll.u32 [#allocation12], 4
      %s80 = int_to_ptr.vmem [resolvable:$true] %s79
      %85 = dma.hbm_to_vmem [thread:$0]  %s78, 20480, %s80, [#allocation11], 128, 128, 8
    $region25: #{net_forward.1} parent=1 // pred_fallthru
      _
    // Predicated region
    $region26: #{net_forward.1} parent=1 // pred_check
      _
    $region27: #{net_forward.1} parent=1 // pred_check_branch
      %87 = sbr.rel (0) target = $region29
    $region28: #{net_forward.1} parent=1 // pred_region
      %89 = vsyncadd [#allocation14], 0
      %s91 = sshll.u32 %s6, 4
      %s92 = int_to_ptr.hbm [resolvable:$true] %s91
      %s93 = sshll.u32 [#allocation13], 4
      %s94 = int_to_ptr.vmem [resolvable:$true] %s93
      %96 = dma.hbm_to_vmem [thread:$0]  %s92, 16, %s94, [#allocation14]
    $region29: #{net_forward.1} parent=1 // pred_fallthru
      _
    // Predicated region
    $region30: #{net_forward.1} parent=1 // pred_check
      _
    $region31: #{net_forward.1} parent=1 // pred_check_branch
      %98 = sbr.rel (0) target = $region33
    $region32: #{net_forward.1} parent=1 // pred_region
      %100 = vsyncadd [#allocation14], 0
      %s101 = sshll.u32 %s7, 4
      %s102 = int_to_ptr.hbm [resolvable:$true] %s101
      %s103 = sshll.u32 [#allocation15], 4
      %s104 = int_to_ptr.vmem [resolvable:$true] %s103
      %109 = dma.hbm_to_vmem [thread:$0]  %s102, 2048, %s104, [#allocation14], 128, 128, 8
    $region33: #{net_forward.1} parent=1 // pred_fallthru
      _
    // Predicated region
    $region34: #{net_forward.1} parent=1 // pred_check
      _
    $region35: #{net_forward.1} parent=1 // pred_check_branch
      %111 = sbr.rel (0) target = $region37
    $region36: #{net_forward.1} parent=1 // pred_region
      %113 = vsyncadd [#allocation17], 0
      %s115 = sshll.u32 %s8, 4
      %s116 = int_to_ptr.hbm [resolvable:$true] %s115
      %s117 = sshll.u32 [#allocation16], 4
      %s118 = int_to_ptr.vmem [resolvable:$true] %s117
      %120 = dma.hbm_to_vmem [thread:$0]  %s116, 16, %s118, [#allocation17]
    $region37: #{net_forward.1} parent=1 // pred_fallthru
      _
    // Predicated region
    $region38: #{net_forward.1} parent=1 // pred_check
      _
    $region39: #{net_forward.1} parent=1 // pred_check_branch
      %122 = sbr.rel (0) target = $region41
    $region40: #{net_forward.1} parent=1 // pred_region
      %124 = vsyncadd [#allocation17], 0
      %s125 = sshll.u32 %s9, 4
      %s126 = int_to_ptr.hbm [resolvable:$true] %s125
      %s127 = sshll.u32 [#allocation18], 4
      %s128 = int_to_ptr.vmem [resolvable:$true] %s127
      %133 = dma.hbm_to_vmem [thread:$0]  %s126, 2048, %s128, [#allocation17], 128, 128, 8
    $region41: #{net_forward.1} parent=1 // pred_fallthru
      _
    // Predicated region
    $region42: #{net_forward.1} parent=1 // pred_check
      _
    $region43: #{net_forward.1} parent=1 // pred_check_branch
      %135 = sbr.rel (0) target = $region45
    $region44: #{net_forward.1} parent=1 // pred_region
      %137 = vsyncadd [#allocation20], 0
      %s139 = sshll.u32 %s10, 4
      %s140 = int_to_ptr.hbm [resolvable:$true] %s139
      %s141 = sshll.u32 [#allocation19], 4
      %s142 = int_to_ptr.vmem [resolvable:$true] %s141
      %144 = dma.hbm_to_vmem [thread:$0]  %s140, 16, %s142, [#allocation20]
    $region45: #{net_forward.1} parent=1 // pred_fallthru
      _
    // Predicated region
    $region46: #{net_forward.1} parent=1 // pred_check
      _
    $region47: #{net_forward.1} parent=1 // pred_check_branch
      %146 = sbr.rel (0) target = $region49
    $region48: #{net_forward.1} parent=1 // pred_region
      %148 = dma.done [#allocation5], 30720
    $region49: #{net_forward.1} parent=1 // pred_fallthru
      _
    // Predicated region
    $region50: #{net_forward.1} parent=1 // pred_check
      _
    $region51: #{net_forward.1} parent=1 // pred_check_branch
      %150 = sbr.rel (0) target = $region53
    $region52: #{net_forward.1} parent=1 // pred_region
      %152 = dma.done [#allocation8], 64
    $region53: #{net_forward.1} parent=1 // pred_fallthru
      _
    // Predicated region
    $region54: #{net_forward.1} parent=1 // pred_check
      _
    $region55: #{net_forward.1} parent=1 // pred_check_branch
      %154 = sbr.rel (0) target = $region57
    $region56: #{net_forward.1} parent=1 // pred_region
      %156 = dma.done [#allocation8], 81920
    $region57: #{net_forward.1} parent=1 // pred_fallthru
      _
    // Predicated region
    $region58: #{net_forward.1} parent=1 // pred_check
      _
    $region59: #{net_forward.1} parent=1 // pred_check_branch
      %158 = sbr.rel (0) target = $region61
    $region60: #{net_forward.1} parent=1 // pred_region
      %160 = dma.done [#allocation11], 64
    $region61: #{net_forward.1} parent=1 // pred_fallthru
      _
    // Predicated region
    $region62: #{net_forward.1} parent=1 // pred_check
      _
    $region63: #{net_forward.1} parent=1 // pred_check_branch
      %162 = sbr.rel (0) target = $region65
    $region64: #{net_forward.1} parent=1 // pred_region
      %164 = dma.done [#allocation11], 20480
    $region65: #{net_forward.1} parent=1 // pred_fallthru
      _
    // Predicated region
    $region66: #{net_forward.1} parent=1 // pred_check
      _
    $region67: #{net_forward.1} parent=1 // pred_check_branch
      %166 = sbr.rel (0) target = $region69
    $region68: #{net_forward.1} parent=1 // pred_region
      %168 = dma.done [#allocation14], 16
    $region69: #{net_forward.1} parent=1 // pred_fallthru
      _
    // Predicated region
    $region70: #{net_forward.1} parent=1 // pred_check
      _
    $region71: #{net_forward.1} parent=1 // pred_check_branch
      %170 = sbr.rel (0) target = $region73
    $region72: #{net_forward.1} parent=1 // pred_region
      %172 = dma.done [#allocation14], 2048
    $region73: #{net_forward.1} parent=1 // pred_fallthru
      _
    // Predicated region
    $region74: #{net_forward.1} parent=1 // pred_check
      _
    $region75: #{net_forward.1} parent=1 // pred_check_branch
      %174 = sbr.rel (0) target = $region77
    $region76: #{net_forward.1} parent=1 // pred_region
      %176 = dma.done [#allocation17], 16
    $region77: #{net_forward.1} parent=1 // pred_fallthru
      _
    // Predicated region
    $region78: #{net_forward.1} parent=1 // pred_check
      _
    $region79: #{net_forward.1} parent=1 // pred_check_branch
      %178 = sbr.rel (0) target = $region81
    $region80: #{net_forward.1} parent=1 // pred_region
      %180 = dma.done [#allocation17], 2048
    $region81: #{net_forward.1} parent=1 // pred_fallthru
      _
    // Predicated region
    $region82: #{net_forward.1} parent=1 // pred_check
      _
    $region83: #{net_forward.1} parent=1 // pred_check_branch
      %182 = sbr.rel (0) target = $region85
    $region84: #{net_forward.1} parent=1 // pred_region
      %184 = dma.done [#allocation20], 16
    $region85: #{net_forward.1} parent=1 // pred_fallthru
      _
    %v185 = vld [vmem:[%s0] sm:$0xff]
    %v186 = vld [vmem:[%s0 + $0x8] sm:$0xff]
    %v187 = vld [vmem:[%s0 + $0x10] sm:$0xff]
    %v188 = vld [vmem:[%s0 + $0x18] sm:$0xff]
    %v189 = vld [vmem:[%s0 + $0x20] sm:$0xff]
    %v190 = vld [vmem:[%s0 + $0x28] sm:$0xff]
    %v191 = vld [vmem:[%s0 + $0x30] sm:$0xff]
    %v192 = vld [vmem:[%s0 + $0x38] sm:$0xff]
    %v193 = vld [vmem:[#allocation4] sm:$0xff]
    %v194 = vld [vmem:[#allocation4 + $0x8] sm:$0xff]
    %v195 = vld [vmem:[#allocation4 + $0x10] sm:$0xff]
    %v196 = vld [vmem:[#allocation4 + $0x18] sm:$0xff]
    %v197 = vld [vmem:[#allocation4 + $0x20] sm:$0xff]
    %v198 = vld [vmem:[#allocation4 + $0x28] sm:$0xff]
    %v199 = vld [vmem:[#allocation4 + $0x30] sm:$0xff]
    %v200 = vld [vmem:[#allocation4 + $0x38] sm:$0xff]
    %v201 = vld [vmem:[#allocation4 + $0x40] sm:$0xff]
    %v202 = vld [vmem:[#allocation4 + $0x48] sm:$0xff]
    %v203 = vld [vmem:[#allocation4 + $0x50] sm:$0xff]
    %v204 = vld [vmem:[#allocation4 + $0x58] sm:$0xff]
    %v205 = vld [vmem:[#allocation4 + $0x60] sm:$0xff]
    %v206 = vld [vmem:[#allocation4 + $0x68] sm:$0xff]
    %v207 = vld [vmem:[#allocation4 + $0x70] sm:$0xff]
    %v208 = vld [vmem:[#allocation4 + $0x78] sm:$0xff]
    %v209 = vld [vmem:[#allocation4 + $0x80] sm:$0xff]
    %v210 = vld [vmem:[#allocation4 + $0x88] sm:$0xff]
    %v211 = vld [vmem:[#allocation4 + $0x90] sm:$0xff]
    %v212 = vld [vmem:[#allocation4 + $0x98] sm:$0xff]
    %v213 = vld [vmem:[#allocation4 + $0xa0] sm:$0xff]
    %v214 = vld [vmem:[#allocation4 + $0xa8] sm:$0xff]
    %v215 = vld [vmem:[#allocation4 + $0xb0] sm:$0xff]
    %v216 = vld [vmem:[#allocation4 + $0xb8] sm:$0xff]
    %v217 = vld [vmem:[#allocation4 + $0xc0] sm:$0xff]
    %v218 = vld [vmem:[#allocation4 + $0xc8] sm:$0xff]
    %v219 = vld [vmem:[#allocation4 + $0xd0] sm:$0xff]
    %v220 = vld [vmem:[#allocation4 + $0xd8] sm:$0xff]
    %v221 = vld [vmem:[#allocation4 + $0xe0] sm:$0xff]
    %v222 = vld [vmem:[#allocation4 + $0xe8] sm:$0xff]
    %v223 = vld [vmem:[#allocation4 + $0xf0] sm:$0xff]
    %v224 = vld [vmem:[#allocation4 + $0xf8] sm:$0xff]
    %v225 = vld [vmem:[#allocation4 + $0x100] sm:$0xff]
    %v226 = vld [vmem:[#allocation4 + $0x108] sm:$0xff]
    %v227 = vld [vmem:[#allocation4 + $0x110] sm:$0xff]
    %v228 = vld [vmem:[#allocation4 + $0x118] sm:$0xff]
    %v229 = vld [vmem:[#allocation4 + $0x120] sm:$0xff]
    %v230 = vld [vmem:[#allocation4 + $0x128] sm:$0xff]
    %v231 = vld [vmem:[#allocation4 + $0x130] sm:$0xff]
    %v232 = vld [vmem:[#allocation4 + $0x138] sm:$0xff]
    %v233 = vld [vmem:[#allocation4 + $0x140] sm:$0xff]
    %v234 = vld [vmem:[#allocation4 + $0x148] sm:$0xff]
    %v235 = vld [vmem:[#allocation4 + $0x150] sm:$0xff]
    %v236 = vld [vmem:[#allocation4 + $0x158] sm:$0xff]
    %v237 = vld [vmem:[#allocation4 + $0x160] sm:$0xff]
    %v238 = vld [vmem:[#allocation4 + $0x168] sm:$0xff]
    %v239 = vld [vmem:[#allocation4 + $0x170] sm:$0xff]
    %v240 = vld [vmem:[#allocation4 + $0x178] sm:$0xff]
    %v241 = vld [vmem:[%s0 + $0x1] sm:$0xff]
    %v242 = vld [vmem:[%s0 + $0x9] sm:$0xff]
    %v243 = vld [vmem:[%s0 + $0x11] sm:$0xff]
    %v244 = vld [vmem:[%s0 + $0x19] sm:$0xff]
    %v245 = vld [vmem:[%s0 + $0x21] sm:$0xff]
    %v246 = vld [vmem:[%s0 + $0x29] sm:$0xff]
    %v247 = vld [vmem:[%s0 + $0x31] sm:$0xff]
    %v248 = vld [vmem:[%s0 + $0x39] sm:$0xff]
    %s249 = scalar_lea.vmem [#allocation4], 384
    %v250 = vld [vmem:[%s249] sm:$0xff]
    %v251 = vld [vmem:[%s249 + $0x8] sm:$0xff]
    %v252 = vld [vmem:[%s249 + $0x10] sm:$0xff]
    %v253 = vld [vmem:[%s249 + $0x18] sm:$0xff]
    %v254 = vld [vmem:[%s249 + $0x20] sm:$0xff]
    %v255 = vld [vmem:[%s249 + $0x28] sm:$0xff]
    %v256 = vld [vmem:[%s249 + $0x30] sm:$0xff]
    %v257 = vld [vmem:[%s249 + $0x38] sm:$0xff]
    %v258 = vld [vmem:[%s249 + $0x40] sm:$0xff]
    %v259 = vld [vmem:[%s249 + $0x48] sm:$0xff]
    %v260 = vld [vmem:[%s249 + $0x50] sm:$0xff]
    %v261 = vld [vmem:[%s249 + $0x58] sm:$0xff]
    %v262 = vld [vmem:[%s249 + $0x60] sm:$0xff]
    %v263 = vld [vmem:[%s249 + $0x68] sm:$0xff]
    %v264 = vld [vmem:[%s249 + $0x70] sm:$0xff]
    %v265 = vld [vmem:[%s249 + $0x78] sm:$0xff]
    %v266 = vld [vmem:[%s249 + $0x80] sm:$0xff]
    %v267 = vld [vmem:[%s249 + $0x88] sm:$0xff]
    %v268 = vld [vmem:[%s249 + $0x90] sm:$0xff]
    %v269 = vld [vmem:[%s249 + $0x98] sm:$0xff]
    %v270 = vld [vmem:[%s249 + $0xa0] sm:$0xff]
    %v271 = vld [vmem:[%s249 + $0xa8] sm:$0xff]
    %v272 = vld [vmem:[%s249 + $0xb0] sm:$0xff]
    %v273 = vld [vmem:[%s249 + $0xb8] sm:$0xff]
    %v274 = vld [vmem:[%s249 + $0xc0] sm:$0xff]
    %v275 = vld [vmem:[%s249 + $0xc8] sm:$0xff]
    %v276 = vld [vmem:[%s249 + $0xd0] sm:$0xff]
    %v277 = vld [vmem:[%s249 + $0xd8] sm:$0xff]
    %v278 = vld [vmem:[%s249 + $0xe0] sm:$0xff]
    %v279 = vld [vmem:[%s249 + $0xe8] sm:$0xff]
    %v280 = vld [vmem:[%s249 + $0xf0] sm:$0xff]
    %v281 = vld [vmem:[%s249 + $0xf8] sm:$0xff]
    %v282 = vld [vmem:[%s249 + $0x100] sm:$0xff]
    %v283 = vld [vmem:[%s249 + $0x108] sm:$0xff]
    %v284 = vld [vmem:[%s249 + $0x110] sm:$0xff]
    %v285 = vld [vmem:[%s249 + $0x118] sm:$0xff]
    %v286 = vld [vmem:[%s249 + $0x120] sm:$0xff]
    %v287 = vld [vmem:[%s249 + $0x128] sm:$0xff]
    %v288 = vld [vmem:[%s249 + $0x130] sm:$0xff]
    %v289 = vld [vmem:[%s249 + $0x138] sm:$0xff]
    %v290 = vld [vmem:[%s249 + $0x140] sm:$0xff]
    %v291 = vld [vmem:[%s249 + $0x148] sm:$0xff]
    %v292 = vld [vmem:[%s249 + $0x150] sm:$0xff]
    %v293 = vld [vmem:[%s249 + $0x158] sm:$0xff]
    %v294 = vld [vmem:[%s249 + $0x160] sm:$0xff]
    %v295 = vld [vmem:[%s249 + $0x168] sm:$0xff]
    %v296 = vld [vmem:[%s249 + $0x170] sm:$0xff]
    %v297 = vld [vmem:[%s249 + $0x178] sm:$0xff]
    %vm298 = vcmask 785408
    %v300 = vsel %vm298, %v241, 0
    %v303 = vsel %vm298, %v242, 0
    %v306 = vsel %vm298, %v243, 0
    %v309 = vsel %vm298, %v244, 0
    %v312 = vsel %vm298, %v245, 0
    %v315 = vsel %vm298, %v246, 0
    %v318 = vsel %vm298, %v247, 0
    %v321 = vsel %vm298, %v248, 0
    %323 = vmatpush.msra.mxu0 0.0
    %324 = vmatpush.msra.mxu0 0.0
    %325 = vmatpush.msra.mxu0 0.0
    %326 = vmatpush.msra.mxu0 0.0
    %327 = vmatpush.msra.mxu0 %v294
    %328 = vmatpush.msra.mxu0 %v290
    %329 = vmatpush.msra.mxu0 %v286
    %330 = vmatpush.msra.mxu0 %v282
    %331 = vmatpush.msra.mxu0 %v278
    %332 = vmatpush.msra.mxu0 %v274
    %333 = vmatpush.msra.mxu0 %v270
    %334 = vmatpush.msra.mxu0 %v266
    %335 = vmatpush.msra.mxu0 %v262
    %336 = vmatpush.msra.mxu0 %v258
    %337 = vmatpush.msra.mxu0 %v254
    %338 = vmatpush.msra.mxu0 %v250
    %339 = vmatmul.f32.gmra.mxu0 %v300
    %v340 = vpop.f32.mrf.mxu0
    %v341 = vadd.f32 0.0, %v340
    %342 = vmatmul.f32.gmra.mxu0 %v303
    %v343 = vpop.f32.mrf.mxu0
    %v344 = vadd.f32 0.0, %v343
    %345 = vmatmul.f32.gmra.mxu0 %v306
    %v346 = vpop.f32.mrf.mxu0
    %v347 = vadd.f32 0.0, %v346
    %348 = vmatmul.f32.gmra.mxu0 %v309
    %v349 = vpop.f32.mrf.mxu0
    %v350 = vadd.f32 0.0, %v349
    %351 = vmatmul.f32.gmra.mxu0 %v312
    %v352 = vpop.f32.mrf.mxu0
    %v353 = vadd.f32 0.0, %v352
    %354 = vmatmul.f32.gmra.mxu0 %v315
    %v355 = vpop.f32.mrf.mxu0
    %v356 = vadd.f32 0.0, %v355
    %357 = vmatmul.f32.gmra.mxu0 %v318
    %v358 = vpop.f32.mrf.mxu0
    %v359 = vadd.f32 0.0, %v358
    %360 = vmatmul.f32.gmra.mxu0 %v321
    %v361 = vpop.f32.mrf.mxu0
    %v362 = vadd.f32 0.0, %v361
    %363 = vdwg.mxu0
    %364 = vmatpush.msra.mxu0 0.0
    %365 = vmatpush.msra.mxu0 0.0
    %366 = vmatpush.msra.mxu0 0.0
    %367 = vmatpush.msra.mxu0 0.0
    %368 = vmatpush.msra.mxu0 %v295
    %369 = vmatpush.msra.mxu0 %v291
    %370 = vmatpush.msra.mxu0 %v287
    %371 = vmatpush.msra.mxu0 %v283
    %372 = vmatpush.msra.mxu0 %v279
    %373 = vmatpush.msra.mxu0 %v275
    %374 = vmatpush.msra.mxu0 %v271
    %375 = vmatpush.msra.mxu0 %v267
    %376 = vmatpush.msra.mxu0 %v263
    %377 = vmatpush.msra.mxu0 %v259
    %378 = vmatpush.msra.mxu0 %v255
    %379 = vmatpush.msra.mxu0 %v251
    %380 = vmatmul.f32.gmra.mxu0 %v300
    %v381 = vpop.f32.mrf.mxu0
    %v382 = vadd.f32 0.0, %v381
    %383 = vmatmul.f32.gmra.mxu0 %v303
    %v384 = vpop.f32.mrf.mxu0
    %v385 = vadd.f32 0.0, %v384
    %386 = vmatmul.f32.gmra.mxu0 %v306
    %v387 = vpop.f32.mrf.mxu0
    %v388 = vadd.f32 0.0, %v387
    %389 = vmatmul.f32.gmra.mxu0 %v309
    %v390 = vpop.f32.mrf.mxu0
    %v391 = vadd.f32 0.0, %v390
    %392 = vmatmul.f32.gmra.mxu0 %v312
    %v393 = vpop.f32.mrf.mxu0
    %v394 = vadd.f32 0.0, %v393
    %395 = vmatmul.f32.gmra.mxu0 %v315
    %v396 = vpop.f32.mrf.mxu0
    %v397 = vadd.f32 0.0, %v396
    %398 = vmatmul.f32.gmra.mxu0 %v318
    %v399 = vpop.f32.mrf.mxu0
    %v400 = vadd.f32 0.0, %v399
    %401 = vmatmul.f32.gmra.mxu0 %v321
    %v402 = vpop.f32.mrf.mxu0
    %v403 = vadd.f32 0.0, %v402
    %404 = vdwg.mxu0
    %405 = vmatpush.msra.mxu0 0.0
    %406 = vmatpush.msra.mxu0 0.0
    %407 = vmatpush.msra.mxu0 0.0
    %408 = vmatpush.msra.mxu0 0.0
    %409 = vmatpush.msra.mxu0 %v296
    %410 = vmatpush.msra.mxu0 %v292
    %411 = vmatpush.msra.mxu0 %v288
    %412 = vmatpush.msra.mxu0 %v284
    %413 = vmatpush.msra.mxu0 %v280
    %414 = vmatpush.msra.mxu0 %v276
    %415 = vmatpush.msra.mxu0 %v272
    %416 = vmatpush.msra.mxu0 %v268
    %417 = vmatpush.msra.mxu0 %v264
    %418 = vmatpush.msra.mxu0 %v260
    %419 = vmatpush.msra.mxu0 %v256
    %420 = vmatpush.msra.mxu0 %v252
    %421 = vmatmul.f32.gmra.mxu0 %v300
    %v422 = vpop.f32.mrf.mxu0
    %v423 = vadd.f32 0.0, %v422
    %424 = vmatmul.f32.gmra.mxu0 %v303
    %v425 = vpop.f32.mrf.mxu0
    %v426 = vadd.f32 0.0, %v425
    %427 = vmatmul.f32.gmra.mxu0 %v306
    %v428 = vpop.f32.mrf.mxu0
    %v429 = vadd.f32 0.0, %v428
    %430 = vmatmul.f32.gmra.mxu0 %v309
    %v431 = vpop.f32.mrf.mxu0
    %v432 = vadd.f32 0.0, %v431
    %433 = vmatmul.f32.gmra.mxu0 %v312
    %v434 = vpop.f32.mrf.mxu0
    %v435 = vadd.f32 0.0, %v434
    %436 = vmatmul.f32.gmra.mxu0 %v315
    %v437 = vpop.f32.mrf.mxu0
    %v438 = vadd.f32 0.0, %v437
    %439 = vmatmul.f32.gmra.mxu0 %v318
    %v440 = vpop.f32.mrf.mxu0
    %v441 = vadd.f32 0.0, %v440
    %442 = vmatmul.f32.gmra.mxu0 %v321
    %v443 = vpop.f32.mrf.mxu0
    %v444 = vadd.f32 0.0, %v443
    %445 = vdwg.mxu0
    %446 = vmatpush.msra.mxu0 0.0
    %447 = vmatpush.msra.mxu0 0.0
    %448 = vmatpush.msra.mxu0 0.0
    %449 = vmatpush.msra.mxu0 0.0
    %450 = vmatpush.msra.mxu0 %v297
    %451 = vmatpush.msra.mxu0 %v293
    %452 = vmatpush.msra.mxu0 %v289
    %453 = vmatpush.msra.mxu0 %v285
    %454 = vmatpush.msra.mxu0 %v281
    %455 = vmatpush.msra.mxu0 %v277
    %456 = vmatpush.msra.mxu0 %v273
    %457 = vmatpush.msra.mxu0 %v269
    %458 = vmatpush.msra.mxu0 %v265
    %459 = vmatpush.msra.mxu0 %v261
    %460 = vmatpush.msra.mxu0 %v257
    %461 = vmatpush.msra.mxu0 %v253
    %462 = vmatmul.f32.gmra.mxu0 %v300
    %v463 = vpop.f32.mrf.mxu0
    %v464 = vadd.f32 0.0, %v463
    %465 = vmatmul.f32.gmra.mxu0 %v303
    %v466 = vpop.f32.mrf.mxu0
    %v467 = vadd.f32 0.0, %v466
    %468 = vmatmul.f32.gmra.mxu0 %v306
    %v469 = vpop.f32.mrf.mxu0
    %v470 = vadd.f32 0.0, %v469
    %471 = vmatmul.f32.gmra.mxu0 %v309
    %v472 = vpop.f32.mrf.mxu0
    %v473 = vadd.f32 0.0, %v472
    %474 = vmatmul.f32.gmra.mxu0 %v312
    %v475 = vpop.f32.mrf.mxu0
    %v476 = vadd.f32 0.0, %v475
    %477 = vmatmul.f32.gmra.mxu0 %v315
    %v478 = vpop.f32.mrf.mxu0
    %v479 = vadd.f32 0.0, %v478
    %480 = vmatmul.f32.gmra.mxu0 %v318
    %v481 = vpop.f32.mrf.mxu0
    %v482 = vadd.f32 0.0, %v481
    %483 = vmatmul.f32.gmra.mxu0 %v321
    %v484 = vpop.f32.mrf.mxu0
    %v485 = vadd.f32 0.0, %v484
    %486 = vdwg.mxu0
    %v488 = vsel %vm298, %v185, 0
    %v491 = vsel %vm298, %v186, 0
    %v494 = vsel %vm298, %v187, 0
    %v497 = vsel %vm298, %v188, 0
    %v500 = vsel %vm298, %v189, 0
    %v503 = vsel %vm298, %v190, 0
    %v506 = vsel %vm298, %v191, 0
    %v509 = vsel %vm298, %v192, 0
    %511 = vmatpush.msra.mxu0 0.0
    %512 = vmatpush.msra.mxu0 0.0
    %513 = vmatpush.msra.mxu0 0.0
    %514 = vmatpush.msra.mxu0 0.0
    %515 = vmatpush.msra.mxu0 %v237
    %516 = vmatpush.msra.mxu0 %v233
    %517 = vmatpush.msra.mxu0 %v229
    %518 = vmatpush.msra.mxu0 %v225
    %519 = vmatpush.msra.mxu0 %v221
    %520 = vmatpush.msra.mxu0 %v217
    %521 = vmatpush.msra.mxu0 %v213
    %522 = vmatpush.msra.mxu0 %v209
    %523 = vmatpush.msra.mxu0 %v205
    %524 = vmatpush.msra.mxu0 %v201
    %525 = vmatpush.msra.mxu0 %v197
    %526 = vmatpush.msra.mxu0 %v193
    %527 = vmatmul.f32.gmra.mxu0 %v488
    %v528 = vpop.f32.mrf.mxu0
    %v529 = vadd.f32 %v341, %v528
    %530 = vmatmul.f32.gmra.mxu0 %v491
    %v531 = vpop.f32.mrf.mxu0
    %v532 = vadd.f32 %v344, %v531
    %533 = vmatmul.f32.gmra.mxu0 %v494
    %v534 = vpop.f32.mrf.mxu0
    %v535 = vadd.f32 %v347, %v534
    %536 = vmatmul.f32.gmra.mxu0 %v497
    %v537 = vpop.f32.mrf.mxu0
    %v538 = vadd.f32 %v350, %v537
    %539 = vmatmul.f32.gmra.mxu0 %v500
    %v540 = vpop.f32.mrf.mxu0
    %v541 = vadd.f32 %v353, %v540
    %542 = vmatmul.f32.gmra.mxu0 %v503
    %v543 = vpop.f32.mrf.mxu0
    %v544 = vadd.f32 %v356, %v543
    %545 = vmatmul.f32.gmra.mxu0 %v506
    %v546 = vpop.f32.mrf.mxu0
    %v547 = vadd.f32 %v359, %v546
    %548 = vmatmul.f32.gmra.mxu0 %v509
    %v549 = vpop.f32.mrf.mxu0
    %v550 = vadd.f32 %v362, %v549
    %551 = vdwg.mxu0
    %552 = vmatpush.msra.mxu0 0.0
    %553 = vmatpush.msra.mxu0 0.0
    %554 = vmatpush.msra.mxu0 0.0
    %555 = vmatpush.msra.mxu0 0.0
    %556 = vmatpush.msra.mxu0 %v238
    %557 = vmatpush.msra.mxu0 %v234
    %558 = vmatpush.msra.mxu0 %v230
    %559 = vmatpush.msra.mxu0 %v226
    %560 = vmatpush.msra.mxu0 %v222
    %561 = vmatpush.msra.mxu0 %v218
    %562 = vmatpush.msra.mxu0 %v214
    %563 = vmatpush.msra.mxu0 %v210
    %564 = vmatpush.msra.mxu0 %v206
    %565 = vmatpush.msra.mxu0 %v202
    %566 = vmatpush.msra.mxu0 %v198
    %567 = vmatpush.msra.mxu0 %v194
    %568 = vmatmul.f32.gmra.mxu0 %v488
    %v569 = vpop.f32.mrf.mxu0
    %v570 = vadd.f32 %v382, %v569
    %571 = vmatmul.f32.gmra.mxu0 %v491
    %v572 = vpop.f32.mrf.mxu0
    %v573 = vadd.f32 %v385, %v572
    %574 = vmatmul.f32.gmra.mxu0 %v494
    %v575 = vpop.f32.mrf.mxu0
    %v576 = vadd.f32 %v388, %v575
    %577 = vmatmul.f32.gmra.mxu0 %v497
    %v578 = vpop.f32.mrf.mxu0
    %v579 = vadd.f32 %v391, %v578
    %580 = vmatmul.f32.gmra.mxu0 %v500
    %v581 = vpop.f32.mrf.mxu0
    %v582 = vadd.f32 %v394, %v581
    %583 = vmatmul.f32.gmra.mxu0 %v503
    %v584 = vpop.f32.mrf.mxu0
    %v585 = vadd.f32 %v397, %v584
    %586 = vmatmul.f32.gmra.mxu0 %v506
    %v587 = vpop.f32.mrf.mxu0
    %v588 = vadd.f32 %v400, %v587
    %589 = vmatmul.f32.gmra.mxu0 %v509
    %v590 = vpop.f32.mrf.mxu0
    %v591 = vadd.f32 %v403, %v590
    %592 = vdwg.mxu0
    %593 = vmatpush.msra.mxu0 0.0
    %594 = vmatpush.msra.mxu0 0.0
    %595 = vmatpush.msra.mxu0 0.0
    %596 = vmatpush.msra.mxu0 0.0
    %597 = vmatpush.msra.mxu0 %v239
    %598 = vmatpush.msra.mxu0 %v235
    %599 = vmatpush.msra.mxu0 %v231
    %600 = vmatpush.msra.mxu0 %v227
    %601 = vmatpush.msra.mxu0 %v223
    %602 = vmatpush.msra.mxu0 %v219
    %603 = vmatpush.msra.mxu0 %v215
    %604 = vmatpush.msra.mxu0 %v211
    %605 = vmatpush.msra.mxu0 %v207
    %606 = vmatpush.msra.mxu0 %v203
    %607 = vmatpush.msra.mxu0 %v199
    %608 = vmatpush.msra.mxu0 %v195
    %609 = vmatmul.f32.gmra.mxu0 %v488
    %v610 = vpop.f32.mrf.mxu0
    %v611 = vadd.f32 %v423, %v610
    %612 = vmatmul.f32.gmra.mxu0 %v491
    %v613 = vpop.f32.mrf.mxu0
    %v614 = vadd.f32 %v426, %v613
    %615 = vmatmul.f32.gmra.mxu0 %v494
    %v616 = vpop.f32.mrf.mxu0
    %v617 = vadd.f32 %v429, %v616
    %618 = vmatmul.f32.gmra.mxu0 %v497
    %v619 = vpop.f32.mrf.mxu0
    %v620 = vadd.f32 %v432, %v619
    %621 = vmatmul.f32.gmra.mxu0 %v500
    %v622 = vpop.f32.mrf.mxu0
    %v623 = vadd.f32 %v435, %v622
    %624 = vmatmul.f32.gmra.mxu0 %v503
    %v625 = vpop.f32.mrf.mxu0
    %v626 = vadd.f32 %v438, %v625
    %627 = vmatmul.f32.gmra.mxu0 %v506
    %v628 = vpop.f32.mrf.mxu0
    %v629 = vadd.f32 %v441, %v628
    %630 = vmatmul.f32.gmra.mxu0 %v509
    %v631 = vpop.f32.mrf.mxu0
    %v632 = vadd.f32 %v444, %v631
    %633 = vdwg.mxu0
    %634 = vmatpush.msra.mxu0 0.0
    %635 = vmatpush.msra.mxu0 0.0
    %636 = vmatpush.msra.mxu0 0.0
    %637 = vmatpush.msra.mxu0 0.0
    %638 = vmatpush.msra.mxu0 %v240
    %639 = vmatpush.msra.mxu0 %v236
    %640 = vmatpush.msra.mxu0 %v232
    %641 = vmatpush.msra.mxu0 %v228
    %642 = vmatpush.msra.mxu0 %v224
    %643 = vmatpush.msra.mxu0 %v220
    %644 = vmatpush.msra.mxu0 %v216
    %645 = vmatpush.msra.mxu0 %v212
    %646 = vmatpush.msra.mxu0 %v208
    %647 = vmatpush.msra.mxu0 %v204
    %648 = vmatpush.msra.mxu0 %v200
    %649 = vmatpush.msra.mxu0 %v196
    %650 = vmatmul.f32.gmra.mxu0 %v488
    %v651 = vpop.f32.mrf.mxu0
    %v652 = vadd.f32 %v464, %v651
    %653 = vmatmul.f32.gmra.mxu0 %v491
    %v654 = vpop.f32.mrf.mxu0
    %v655 = vadd.f32 %v467, %v654
    %656 = vmatmul.f32.gmra.mxu0 %v494
    %v657 = vpop.f32.mrf.mxu0
    %v658 = vadd.f32 %v470, %v657
    %659 = vmatmul.f32.gmra.mxu0 %v497
    %v660 = vpop.f32.mrf.mxu0
    %v661 = vadd.f32 %v473, %v660
    %662 = vmatmul.f32.gmra.mxu0 %v500
    %v663 = vpop.f32.mrf.mxu0
    %v664 = vadd.f32 %v476, %v663
    %665 = vmatmul.f32.gmra.mxu0 %v503
    %v666 = vpop.f32.mrf.mxu0
    %v667 = vadd.f32 %v479, %v666
    %668 = vmatmul.f32.gmra.mxu0 %v506
    %v669 = vpop.f32.mrf.mxu0
    %v670 = vadd.f32 %v482, %v669
    %671 = vmatmul.f32.gmra.mxu0 %v509
    %v672 = vpop.f32.mrf.mxu0
    %v673 = vadd.f32 %v485, %v672
    %674 = vdwg.mxu0
    %v675 = vld [vmem:[%s0 + $0x2] sm:$0xff]
    %v676 = vld [vmem:[%s0 + $0xa] sm:$0xff]
    %v677 = vld [vmem:[%s0 + $0x12] sm:$0xff]
    %v678 = vld [vmem:[%s0 + $0x1a] sm:$0xff]
    %v679 = vld [vmem:[%s0 + $0x22] sm:$0xff]
    %v680 = vld [vmem:[%s0 + $0x2a] sm:$0xff]
    %v681 = vld [vmem:[%s0 + $0x32] sm:$0xff]
    %v682 = vld [vmem:[%s0 + $0x3a] sm:$0xff]
    %s683 = scalar_lea.vmem [#allocation4], 768
    %v684 = vld [vmem:[%s683] sm:$0xff]
    %v685 = vld [vmem:[%s683 + $0x8] sm:$0xff]
    %v686 = vld [vmem:[%s683 + $0x10] sm:$0xff]
    %v687 = vld [vmem:[%s683 + $0x18] sm:$0xff]
    %v688 = vld [vmem:[%s683 + $0x20] sm:$0xff]
    %v689 = vld [vmem:[%s683 + $0x28] sm:$0xff]
    %v690 = vld [vmem:[%s683 + $0x30] sm:$0xff]
    %v691 = vld [vmem:[%s683 + $0x38] sm:$0xff]
    %v692 = vld [vmem:[%s683 + $0x40] sm:$0xff]
    %v693 = vld [vmem:[%s683 + $0x48] sm:$0xff]
    %v694 = vld [vmem:[%s683 + $0x50] sm:$0xff]
    %v695 = vld [vmem:[%s683 + $0x58] sm:$0xff]
    %v696 = vld [vmem:[%s683 + $0x60] sm:$0xff]
    %v697 = vld [vmem:[%s683 + $0x68] sm:$0xff]
    %v698 = vld [vmem:[%s683 + $0x70] sm:$0xff]
    %v699 = vld [vmem:[%s683 + $0x78] sm:$0xff]
    %v700 = vld [vmem:[%s683 + $0x80] sm:$0xff]
    %v701 = vld [vmem:[%s683 + $0x88] sm:$0xff]
    %v702 = vld [vmem:[%s683 + $0x90] sm:$0xff]
    %v703 = vld [vmem:[%s683 + $0x98] sm:$0xff]
    %v704 = vld [vmem:[%s683 + $0xa0] sm:$0xff]
    %v705 = vld [vmem:[%s683 + $0xa8] sm:$0xff]
    %v706 = vld [vmem:[%s683 + $0xb0] sm:$0xff]
    %v707 = vld [vmem:[%s683 + $0xb8] sm:$0xff]
    %v708 = vld [vmem:[%s683 + $0xc0] sm:$0xff]
    %v709 = vld [vmem:[%s683 + $0xc8] sm:$0xff]
    %v710 = vld [vmem:[%s683 + $0xd0] sm:$0xff]
    %v711 = vld [vmem:[%s683 + $0xd8] sm:$0xff]
    %v712 = vld [vmem:[%s683 + $0xe0] sm:$0xff]
    %v713 = vld [vmem:[%s683 + $0xe8] sm:$0xff]
    %v714 = vld [vmem:[%s683 + $0xf0] sm:$0xff]
    %v715 = vld [vmem:[%s683 + $0xf8] sm:$0xff]
    %v716 = vld [vmem:[%s683 + $0x100] sm:$0xff]
    %v717 = vld [vmem:[%s683 + $0x108] sm:$0xff]
    %v718 = vld [vmem:[%s683 + $0x110] sm:$0xff]
    %v719 = vld [vmem:[%s683 + $0x118] sm:$0xff]
    %v720 = vld [vmem:[%s683 + $0x120] sm:$0xff]
    %v721 = vld [vmem:[%s683 + $0x128] sm:$0xff]
    %v722 = vld [vmem:[%s683 + $0x130] sm:$0xff]
    %v723 = vld [vmem:[%s683 + $0x138] sm:$0xff]
    %v724 = vld [vmem:[%s683 + $0x140] sm:$0xff]
    %v725 = vld [vmem:[%s683 + $0x148] sm:$0xff]
    %v726 = vld [vmem:[%s683 + $0x150] sm:$0xff]
    %v727 = vld [vmem:[%s683 + $0x158] sm:$0xff]
    %v728 = vld [vmem:[%s683 + $0x160] sm:$0xff]
    %v729 = vld [vmem:[%s683 + $0x168] sm:$0xff]
    %v730 = vld [vmem:[%s683 + $0x170] sm:$0xff]
    %v731 = vld [vmem:[%s683 + $0x178] sm:$0xff]
    %v733 = vsel %vm298, %v675, 0
    %v736 = vsel %vm298, %v676, 0
    %v739 = vsel %vm298, %v677, 0
    %v742 = vsel %vm298, %v678, 0
    %v745 = vsel %vm298, %v679, 0
    %v748 = vsel %vm298, %v680, 0
    %v751 = vsel %vm298, %v681, 0
    %v754 = vsel %vm298, %v682, 0
    %756 = vmatpush.msra.mxu0 0.0
    %757 = vmatpush.msra.mxu0 0.0
    %758 = vmatpush.msra.mxu0 0.0
    %759 = vmatpush.msra.mxu0 0.0
    %760 = vmatpush.msra.mxu0 %v728
    %761 = vmatpush.msra.mxu0 %v724
    %762 = vmatpush.msra.mxu0 %v720
    %763 = vmatpush.msra.mxu0 %v716
    %764 = vmatpush.msra.mxu0 %v712
    %765 = vmatpush.msra.mxu0 %v708
    %766 = vmatpush.msra.mxu0 %v704
    %767 = vmatpush.msra.mxu0 %v700
    %768 = vmatpush.msra.mxu0 %v696
    %769 = vmatpush.msra.mxu0 %v692
    %770 = vmatpush.msra.mxu0 %v688
    %771 = vmatpush.msra.mxu0 %v684
    %772 = vmatmul.f32.gmra.mxu0 %v733
    %v773 = vpop.f32.mrf.mxu0
    %v774 = vadd.f32 0.0, %v773
    %775 = vmatmul.f32.gmra.mxu0 %v736
    %v776 = vpop.f32.mrf.mxu0
    %v777 = vadd.f32 0.0, %v776
    %778 = vmatmul.f32.gmra.mxu0 %v739
    %v779 = vpop.f32.mrf.mxu0
    %v780 = vadd.f32 0.0, %v779
    %781 = vmatmul.f32.gmra.mxu0 %v742
    %v782 = vpop.f32.mrf.mxu0
    %v783 = vadd.f32 0.0, %v782
    %784 = vmatmul.f32.gmra.mxu0 %v745
    %v785 = vpop.f32.mrf.mxu0
    %v786 = vadd.f32 0.0, %v785
    %787 = vmatmul.f32.gmra.mxu0 %v748
    %v788 = vpop.f32.mrf.mxu0
    %v789 = vadd.f32 0.0, %v788
    %790 = vmatmul.f32.gmra.mxu0 %v751
    %v791 = vpop.f32.mrf.mxu0
    %v792 = vadd.f32 0.0, %v791
    %793 = vmatmul.f32.gmra.mxu0 %v754
    %v794 = vpop.f32.mrf.mxu0
    %v795 = vadd.f32 0.0, %v794
    %796 = vdwg.mxu0
    %797 = vmatpush.msra.mxu0 0.0
    %798 = vmatpush.msra.mxu0 0.0
    %799 = vmatpush.msra.mxu0 0.0
    %800 = vmatpush.msra.mxu0 0.0
    %801 = vmatpush.msra.mxu0 %v729
    %802 = vmatpush.msra.mxu0 %v725
    %803 = vmatpush.msra.mxu0 %v721
    %804 = vmatpush.msra.mxu0 %v717
    %805 = vmatpush.msra.mxu0 %v713
    %806 = vmatpush.msra.mxu0 %v709
    %807 = vmatpush.msra.mxu0 %v705
    %808 = vmatpush.msra.mxu0 %v701
    %809 = vmatpush.msra.mxu0 %v697
    %810 = vmatpush.msra.mxu0 %v693
    %811 = vmatpush.msra.mxu0 %v689
    %812 = vmatpush.msra.mxu0 %v685
    %813 = vmatmul.f32.gmra.mxu0 %v733
    %v814 = vpop.f32.mrf.mxu0
    %v815 = vadd.f32 0.0, %v814
    %816 = vmatmul.f32.gmra.mxu0 %v736
    %v817 = vpop.f32.mrf.mxu0
    %v818 = vadd.f32 0.0, %v817
    %819 = vmatmul.f32.gmra.mxu0 %v739
    %v820 = vpop.f32.mrf.mxu0
    %v821 = vadd.f32 0.0, %v820
    %822 = vmatmul.f32.gmra.mxu0 %v742
    %v823 = vpop.f32.mrf.mxu0
    %v824 = vadd.f32 0.0, %v823
    %825 = vmatmul.f32.gmra.mxu0 %v745
    %v826 = vpop.f32.mrf.mxu0
    %v827 = vadd.f32 0.0, %v826
    %828 = vmatmul.f32.gmra.mxu0 %v748
    %v829 = vpop.f32.mrf.mxu0
    %v830 = vadd.f32 0.0, %v829
    %831 = vmatmul.f32.gmra.mxu0 %v751
    %v832 = vpop.f32.mrf.mxu0
    %v833 = vadd.f32 0.0, %v832
    %834 = vmatmul.f32.gmra.mxu0 %v754
    %v835 = vpop.f32.mrf.mxu0
    %v836 = vadd.f32 0.0, %v835
    %837 = vdwg.mxu0
    %838 = vmatpush.msra.mxu0 0.0
    %839 = vmatpush.msra.mxu0 0.0
    %840 = vmatpush.msra.mxu0 0.0
    %841 = vmatpush.msra.mxu0 0.0
    %842 = vmatpush.msra.mxu0 %v730
    %843 = vmatpush.msra.mxu0 %v726
    %844 = vmatpush.msra.mxu0 %v722
    %845 = vmatpush.msra.mxu0 %v718
    %846 = vmatpush.msra.mxu0 %v714
    %847 = vmatpush.msra.mxu0 %v710
    %848 = vmatpush.msra.mxu0 %v706
    %849 = vmatpush.msra.mxu0 %v702
    %850 = vmatpush.msra.mxu0 %v698
    %851 = vmatpush.msra.mxu0 %v694
    %852 = vmatpush.msra.mxu0 %v690
    %853 = vmatpush.msra.mxu0 %v686
    %854 = vmatmul.f32.gmra.mxu0 %v733
    %v855 = vpop.f32.mrf.mxu0
    %v856 = vadd.f32 0.0, %v855
    %857 = vmatmul.f32.gmra.mxu0 %v736
    %v858 = vpop.f32.mrf.mxu0
    %v859 = vadd.f32 0.0, %v858
    %860 = vmatmul.f32.gmra.mxu0 %v739
    %v861 = vpop.f32.mrf.mxu0
    %v862 = vadd.f32 0.0, %v861
    %863 = vmatmul.f32.gmra.mxu0 %v742
    %v864 = vpop.f32.mrf.mxu0
    %v865 = vadd.f32 0.0, %v864
    %866 = vmatmul.f32.gmra.mxu0 %v745
    %v867 = vpop.f32.mrf.mxu0
    %v868 = vadd.f32 0.0, %v867
    %869 = vmatmul.f32.gmra.mxu0 %v748
    %v870 = vpop.f32.mrf.mxu0
    %v871 = vadd.f32 0.0, %v870
    %872 = vmatmul.f32.gmra.mxu0 %v751
    %v873 = vpop.f32.mrf.mxu0
    %v874 = vadd.f32 0.0, %v873
    %875 = vmatmul.f32.gmra.mxu0 %v754
    %v876 = vpop.f32.mrf.mxu0
    %v877 = vadd.f32 0.0, %v876
    %878 = vdwg.mxu0
    %879 = vmatpush.msra.mxu0 0.0
    %880 = vmatpush.msra.mxu0 0.0
    %881 = vmatpush.msra.mxu0 0.0
    %882 = vmatpush.msra.mxu0 0.0
    %883 = vmatpush.msra.mxu0 %v731
    %884 = vmatpush.msra.mxu0 %v727
    %885 = vmatpush.msra.mxu0 %v723
    %886 = vmatpush.msra.mxu0 %v719
    %887 = vmatpush.msra.mxu0 %v715
    %888 = vmatpush.msra.mxu0 %v711
    %889 = vmatpush.msra.mxu0 %v707
    %890 = vmatpush.msra.mxu0 %v703
    %891 = vmatpush.msra.mxu0 %v699
    %892 = vmatpush.msra.mxu0 %v695
    %893 = vmatpush.msra.mxu0 %v691
    %894 = vmatpush.msra.mxu0 %v687
    %895 = vmatmul.f32.gmra.mxu0 %v733
    %v896 = vpop.f32.mrf.mxu0
    %v897 = vadd.f32 0.0, %v896
    %898 = vmatmul.f32.gmra.mxu0 %v736
    %v899 = vpop.f32.mrf.mxu0
    %v900 = vadd.f32 0.0, %v899
    %901 = vmatmul.f32.gmra.mxu0 %v739
    %v902 = vpop.f32.mrf.mxu0
    %v903 = vadd.f32 0.0, %v902
    %904 = vmatmul.f32.gmra.mxu0 %v742
    %v905 = vpop.f32.mrf.mxu0
    %v906 = vadd.f32 0.0, %v905
    %907 = vmatmul.f32.gmra.mxu0 %v745
    %v908 = vpop.f32.mrf.mxu0
    %v909 = vadd.f32 0.0, %v908
    %910 = vmatmul.f32.gmra.mxu0 %v748
    %v911 = vpop.f32.mrf.mxu0
    %v912 = vadd.f32 0.0, %v911
    %913 = vmatmul.f32.gmra.mxu0 %v751
    %v914 = vpop.f32.mrf.mxu0
    %v915 = vadd.f32 0.0, %v914
    %916 = vmatmul.f32.gmra.mxu0 %v754
    %v917 = vpop.f32.mrf.mxu0
    %v918 = vadd.f32 0.0, %v917
    %919 = vdwg.mxu0
    %v920 = vadd.f32 %v529, %v774
    %v921 = vadd.f32 %v570, %v815
    %v922 = vadd.f32 %v611, %v856
    %v923 = vadd.f32 %v652, %v897
    %v924 = vadd.f32 %v532, %v777
    %v925 = vadd.f32 %v573, %v818
    %v926 = vadd.f32 %v614, %v859
    %v927 = vadd.f32 %v655, %v900
    %v928 = vadd.f32 %v535, %v780
    %v929 = vadd.f32 %v576, %v821
    %v930 = vadd.f32 %v617, %v862
    %v931 = vadd.f32 %v658, %v903
    %v932 = vadd.f32 %v538, %v783
    %v933 = vadd.f32 %v579, %v824
    %v934 = vadd.f32 %v620, %v865
    %v935 = vadd.f32 %v661, %v906
    %v936 = vadd.f32 %v541, %v786
    %v937 = vadd.f32 %v582, %v827
    %v938 = vadd.f32 %v623, %v868
    %v939 = vadd.f32 %v664, %v909
    %v940 = vadd.f32 %v544, %v789
    %v941 = vadd.f32 %v585, %v830
    %v942 = vadd.f32 %v626, %v871
    %v943 = vadd.f32 %v667, %v912
    %v944 = vadd.f32 %v547, %v792
    %v945 = vadd.f32 %v588, %v833
    %v946 = vadd.f32 %v629, %v874
    %v947 = vadd.f32 %v670, %v915
    %v948 = vadd.f32 %v550, %v795
    %v949 = vadd.f32 %v591, %v836
    %v950 = vadd.f32 %v632, %v877
    %v951 = vadd.f32 %v673, %v918
    %v952 = vld [vmem:[%s0 + $0x3] sm:$0xff]
    %v953 = vld [vmem:[%s0 + $0xb] sm:$0xff]
    %v954 = vld [vmem:[%s0 + $0x13] sm:$0xff]
    %v955 = vld [vmem:[%s0 + $0x1b] sm:$0xff]
    %v956 = vld [vmem:[%s0 + $0x23] sm:$0xff]
    %v957 = vld [vmem:[%s0 + $0x2b] sm:$0xff]
    %v958 = vld [vmem:[%s0 + $0x33] sm:$0xff]
    %v959 = vld [vmem:[%s0 + $0x3b] sm:$0xff]
    %s960 = scalar_lea.vmem [#allocation4], 1152
    %v961 = vld [vmem:[%s960] sm:$0xff]
    %v962 = vld [vmem:[%s960 + $0x8] sm:$0xff]
    %v963 = vld [vmem:[%s960 + $0x10] sm:$0xff]
    %v964 = vld [vmem:[%s960 + $0x18] sm:$0xff]
    %v965 = vld [vmem:[%s960 + $0x20] sm:$0xff]
    %v966 = vld [vmem:[%s960 + $0x28] sm:$0xff]
    %v967 = vld [vmem:[%s960 + $0x30] sm:$0xff]
    %v968 = vld [vmem:[%s960 + $0x38] sm:$0xff]
    %v969 = vld [vmem:[%s960 + $0x40] sm:$0xff]
    %v970 = vld [vmem:[%s960 + $0x48] sm:$0xff]
    %v971 = vld [vmem:[%s960 + $0x50] sm:$0xff]
    %v972 = vld [vmem:[%s960 + $0x58] sm:$0xff]
    %v973 = vld [vmem:[%s960 + $0x60] sm:$0xff]
    %v974 = vld [vmem:[%s960 + $0x68] sm:$0xff]
    %v975 = vld [vmem:[%s960 + $0x70] sm:$0xff]
    %v976 = vld [vmem:[%s960 + $0x78] sm:$0xff]
    %v977 = vld [vmem:[%s960 + $0x80] sm:$0xff]
    %v978 = vld [vmem:[%s960 + $0x88] sm:$0xff]
    %v979 = vld [vmem:[%s960 + $0x90] sm:$0xff]
    %v980 = vld [vmem:[%s960 + $0x98] sm:$0xff]
    %v981 = vld [vmem:[%s960 + $0xa0] sm:$0xff]
    %v982 = vld [vmem:[%s960 + $0xa8] sm:$0xff]
    %v983 = vld [vmem:[%s960 + $0xb0] sm:$0xff]
    %v984 = vld [vmem:[%s960 + $0xb8] sm:$0xff]
    %v985 = vld [vmem:[%s960 + $0xc0] sm:$0xff]
    %v986 = vld [vmem:[%s960 + $0xc8] sm:$0xff]
    %v987 = vld [vmem:[%s960 + $0xd0] sm:$0xff]
    %v988 = vld [vmem:[%s960 + $0xd8] sm:$0xff]
    %v989 = vld [vmem:[%s960 + $0xe0] sm:$0xff]
    %v990 = vld [vmem:[%s960 + $0xe8] sm:$0xff]
    %v991 = vld [vmem:[%s960 + $0xf0] sm:$0xff]
    %v992 = vld [vmem:[%s960 + $0xf8] sm:$0xff]
    %v993 = vld [vmem:[%s960 + $0x100] sm:$0xff]
    %v994 = vld [vmem:[%s960 + $0x108] sm:$0xff]
    %v995 = vld [vmem:[%s960 + $0x110] sm:$0xff]
    %v996 = vld [vmem:[%s960 + $0x118] sm:$0xff]
    %v997 = vld [vmem:[%s960 + $0x120] sm:$0xff]
    %v998 = vld [vmem:[%s960 + $0x128] sm:$0xff]
    %v999 = vld [vmem:[%s960 + $0x130] sm:$0xff]
    %v1000 = vld [vmem:[%s960 + $0x138] sm:$0xff]
    %v1001 = vld [vmem:[%s960 + $0x140] sm:$0xff]
    %v1002 = vld [vmem:[%s960 + $0x148] sm:$0xff]
    %v1003 = vld [vmem:[%s960 + $0x150] sm:$0xff]
    %v1004 = vld [vmem:[%s960 + $0x158] sm:$0xff]
    %v1005 = vld [vmem:[%s960 + $0x160] sm:$0xff]
    %v1006 = vld [vmem:[%s960 + $0x168] sm:$0xff]
    %v1007 = vld [vmem:[%s960 + $0x170] sm:$0xff]
    %v1008 = vld [vmem:[%s960 + $0x178] sm:$0xff]
    %v1010 = vsel %vm298, %v952, 0
    %v1013 = vsel %vm298, %v953, 0
    %v1016 = vsel %vm298, %v954, 0
    %v1019 = vsel %vm298, %v955, 0
    %v1022 = vsel %vm298, %v956, 0
    %v1025 = vsel %vm298, %v957, 0
    %v1028 = vsel %vm298, %v958, 0
    %v1031 = vsel %vm298, %v959, 0
    %1033 = vmatpush.msra.mxu0 0.0
    %1034 = vmatpush.msra.mxu0 0.0
    %1035 = vmatpush.msra.mxu0 0.0
    %1036 = vmatpush.msra.mxu0 0.0
    %1037 = vmatpush.msra.mxu0 %v1005
    %1038 = vmatpush.msra.mxu0 %v1001
    %1039 = vmatpush.msra.mxu0 %v997
    %1040 = vmatpush.msra.mxu0 %v993
    %1041 = vmatpush.msra.mxu0 %v989
    %1042 = vmatpush.msra.mxu0 %v985
    %1043 = vmatpush.msra.mxu0 %v981
    %1044 = vmatpush.msra.mxu0 %v977
    %1045 = vmatpush.msra.mxu0 %v973
    %1046 = vmatpush.msra.mxu0 %v969
    %1047 = vmatpush.msra.mxu0 %v965
    %1048 = vmatpush.msra.mxu0 %v961
    %1049 = vmatmul.f32.gmra.mxu0 %v1010
    %v1050 = vpop.f32.mrf.mxu0
    %v1051 = vadd.f32 0.0, %v1050
    %1052 = vmatmul.f32.gmra.mxu0 %v1013
    %v1053 = vpop.f32.mrf.mxu0
    %v1054 = vadd.f32 0.0, %v1053
    %1055 = vmatmul.f32.gmra.mxu0 %v1016
    %v1056 = vpop.f32.mrf.mxu0
    %v1057 = vadd.f32 0.0, %v1056
    %1058 = vmatmul.f32.gmra.mxu0 %v1019
    %v1059 = vpop.f32.mrf.mxu0
    %v1060 = vadd.f32 0.0, %v1059
    %1061 = vmatmul.f32.gmra.mxu0 %v1022
    %v1062 = vpop.f32.mrf.mxu0
    %v1063 = vadd.f32 0.0, %v1062
    %1064 = vmatmul.f32.gmra.mxu0 %v1025
    %v1065 = vpop.f32.mrf.mxu0
    %v1066 = vadd.f32 0.0, %v1065
    %1067 = vmatmul.f32.gmra.mxu0 %v1028
    %v1068 = vpop.f32.mrf.mxu0
    %v1069 = vadd.f32 0.0, %v1068
    %1070 = vmatmul.f32.gmra.mxu0 %v1031
    %v1071 = vpop.f32.mrf.mxu0
    %v1072 = vadd.f32 0.0, %v1071
    %1073 = vdwg.mxu0
    %1074 = vmatpush.msra.mxu0 0.0
    %1075 = vmatpush.msra.mxu0 0.0
    %1076 = vmatpush.msra.mxu0 0.0
    %1077 = vmatpush.msra.mxu0 0.0
    %1078 = vmatpush.msra.mxu0 %v1006
    %1079 = vmatpush.msra.mxu0 %v1002
    %1080 = vmatpush.msra.mxu0 %v998
    %1081 = vmatpush.msra.mxu0 %v994
    %1082 = vmatpush.msra.mxu0 %v990
    %1083 = vmatpush.msra.mxu0 %v986
    %1084 = vmatpush.msra.mxu0 %v982
    %1085 = vmatpush.msra.mxu0 %v978
    %1086 = vmatpush.msra.mxu0 %v974
    %1087 = vmatpush.msra.mxu0 %v970
    %1088 = vmatpush.msra.mxu0 %v966
    %1089 = vmatpush.msra.mxu0 %v962
    %1090 = vmatmul.f32.gmra.mxu0 %v1010
    %v1091 = vpop.f32.mrf.mxu0
    %v1092 = vadd.f32 0.0, %v1091
    %1093 = vmatmul.f32.gmra.mxu0 %v1013
    %v1094 = vpop.f32.mrf.mxu0
    %v1095 = vadd.f32 0.0, %v1094
    %1096 = vmatmul.f32.gmra.mxu0 %v1016
    %v1097 = vpop.f32.mrf.mxu0
    %v1098 = vadd.f32 0.0, %v1097
    %1099 = vmatmul.f32.gmra.mxu0 %v1019
    %v1100 = vpop.f32.mrf.mxu0
    %v1101 = vadd.f32 0.0, %v1100
    %1102 = vmatmul.f32.gmra.mxu0 %v1022
    %v1103 = vpop.f32.mrf.mxu0
    %v1104 = vadd.f32 0.0, %v1103
    %1105 = vmatmul.f32.gmra.mxu0 %v1025
    %v1106 = vpop.f32.mrf.mxu0
    %v1107 = vadd.f32 0.0, %v1106
    %1108 = vmatmul.f32.gmra.mxu0 %v1028
    %v1109 = vpop.f32.mrf.mxu0
    %v1110 = vadd.f32 0.0, %v1109
    %1111 = vmatmul.f32.gmra.mxu0 %v1031
    %v1112 = vpop.f32.mrf.mxu0
    %v1113 = vadd.f32 0.0, %v1112
    %1114 = vdwg.mxu0
    %1115 = vmatpush.msra.mxu0 0.0
    %1116 = vmatpush.msra.mxu0 0.0
    %1117 = vmatpush.msra.mxu0 0.0
    %1118 = vmatpush.msra.mxu0 0.0
    %1119 = vmatpush.msra.mxu0 %v1007
    %1120 = vmatpush.msra.mxu0 %v1003
    %1121 = vmatpush.msra.mxu0 %v999
    %1122 = vmatpush.msra.mxu0 %v995
    %1123 = vmatpush.msra.mxu0 %v991
    %1124 = vmatpush.msra.mxu0 %v987
    %1125 = vmatpush.msra.mxu0 %v983
    %1126 = vmatpush.msra.mxu0 %v979
    %1127 = vmatpush.msra.mxu0 %v975
    %1128 = vmatpush.msra.mxu0 %v971
    %1129 = vmatpush.msra.mxu0 %v967
    %1130 = vmatpush.msra.mxu0 %v963
    %1131 = vmatmul.f32.gmra.mxu0 %v1010
    %v1132 = vpop.f32.mrf.mxu0
    %v1133 = vadd.f32 0.0, %v1132
    %1134 = vmatmul.f32.gmra.mxu0 %v1013
    %v1135 = vpop.f32.mrf.mxu0
    %v1136 = vadd.f32 0.0, %v1135
    %1137 = vmatmul.f32.gmra.mxu0 %v1016
    %v1138 = vpop.f32.mrf.mxu0
    %v1139 = vadd.f32 0.0, %v1138
    %1140 = vmatmul.f32.gmra.mxu0 %v1019
    %v1141 = vpop.f32.mrf.mxu0
    %v1142 = vadd.f32 0.0, %v1141
    %1143 = vmatmul.f32.gmra.mxu0 %v1022
    %v1144 = vpop.f32.mrf.mxu0
    %v1145 = vadd.f32 0.0, %v1144
    %1146 = vmatmul.f32.gmra.mxu0 %v1025
    %v1147 = vpop.f32.mrf.mxu0
    %v1148 = vadd.f32 0.0, %v1147
    %1149 = vmatmul.f32.gmra.mxu0 %v1028
    %v1150 = vpop.f32.mrf.mxu0
    %v1151 = vadd.f32 0.0, %v1150
    %1152 = vmatmul.f32.gmra.mxu0 %v1031
    %v1153 = vpop.f32.mrf.mxu0
    %v1154 = vadd.f32 0.0, %v1153
    %1155 = vdwg.mxu0
    %1156 = vmatpush.msra.mxu0 0.0
    %1157 = vmatpush.msra.mxu0 0.0
    %1158 = vmatpush.msra.mxu0 0.0
    %1159 = vmatpush.msra.mxu0 0.0
    %1160 = vmatpush.msra.mxu0 %v1008
    %1161 = vmatpush.msra.mxu0 %v1004
    %1162 = vmatpush.msra.mxu0 %v1000
    %1163 = vmatpush.msra.mxu0 %v996
    %1164 = vmatpush.msra.mxu0 %v992
    %1165 = vmatpush.msra.mxu0 %v988
    %1166 = vmatpush.msra.mxu0 %v984
    %1167 = vmatpush.msra.mxu0 %v980
    %1168 = vmatpush.msra.mxu0 %v976
    %1169 = vmatpush.msra.mxu0 %v972
    %1170 = vmatpush.msra.mxu0 %v968
    %1171 = vmatpush.msra.mxu0 %v964
    %1172 = vmatmul.f32.gmra.mxu0 %v1010
    %v1173 = vpop.f32.mrf.mxu0
    %v1174 = vadd.f32 0.0, %v1173
    %1175 = vmatmul.f32.gmra.mxu0 %v1013
    %v1176 = vpop.f32.mrf.mxu0
    %v1177 = vadd.f32 0.0, %v1176
    %1178 = vmatmul.f32.gmra.mxu0 %v1016
    %v1179 = vpop.f32.mrf.mxu0
    %v1180 = vadd.f32 0.0, %v1179
    %1181 = vmatmul.f32.gmra.mxu0 %v1019
    %v1182 = vpop.f32.mrf.mxu0
    %v1183 = vadd.f32 0.0, %v1182
    %1184 = vmatmul.f32.gmra.mxu0 %v1022
    %v1185 = vpop.f32.mrf.mxu0
    %v1186 = vadd.f32 0.0, %v1185
    %1187 = vmatmul.f32.gmra.mxu0 %v1025
    %v1188 = vpop.f32.mrf.mxu0
    %v1189 = vadd.f32 0.0, %v1188
    %1190 = vmatmul.f32.gmra.mxu0 %v1028
    %v1191 = vpop.f32.mrf.mxu0
    %v1192 = vadd.f32 0.0, %v1191
    %1193 = vmatmul.f32.gmra.mxu0 %v1031
    %v1194 = vpop.f32.mrf.mxu0
    %v1195 = vadd.f32 0.0, %v1194
    %1196 = vdwg.mxu0
    %v1197 = vadd.f32 %v920, %v1051
    %v1198 = vadd.f32 %v921, %v1092
    %v1199 = vadd.f32 %v922, %v1133
    %v1200 = vadd.f32 %v923, %v1174
    %v1201 = vadd.f32 %v924, %v1054
    %v1202 = vadd.f32 %v925, %v1095
    %v1203 = vadd.f32 %v926, %v1136
    %v1204 = vadd.f32 %v927, %v1177
    %v1205 = vadd.f32 %v928, %v1057
    %v1206 = vadd.f32 %v929, %v1098
    %v1207 = vadd.f32 %v930, %v1139
    %v1208 = vadd.f32 %v931, %v1180
    %v1209 = vadd.f32 %v932, %v1060
    %v1210 = vadd.f32 %v933, %v1101
    %v1211 = vadd.f32 %v934, %v1142
    %v1212 = vadd.f32 %v935, %v1183
    %v1213 = vadd.f32 %v936, %v1063
    %v1214 = vadd.f32 %v937, %v1104
    %v1215 = vadd.f32 %v938, %v1145
    %v1216 = vadd.f32 %v939, %v1186
    %v1217 = vadd.f32 %v940, %v1066
    %v1218 = vadd.f32 %v941, %v1107
    %v1219 = vadd.f32 %v942, %v1148
    %v1220 = vadd.f32 %v943, %v1189
    %v1221 = vadd.f32 %v944, %v1069
    %v1222 = vadd.f32 %v945, %v1110
    %v1223 = vadd.f32 %v946, %v1151
    %v1224 = vadd.f32 %v947, %v1192
    %v1225 = vadd.f32 %v948, %v1072
    %v1226 = vadd.f32 %v949, %v1113
    %v1227 = vadd.f32 %v950, %v1154
    %v1228 = vadd.f32 %v951, %v1195
    %v1229 = vld [vmem:[%s0 + $0x4] sm:$0xff]
    %v1230 = vld [vmem:[%s0 + $0xc] sm:$0xff]
    %v1231 = vld [vmem:[%s0 + $0x14] sm:$0xff]
    %v1232 = vld [vmem:[%s0 + $0x1c] sm:$0xff]
    %v1233 = vld [vmem:[%s0 + $0x24] sm:$0xff]
    %v1234 = vld [vmem:[%s0 + $0x2c] sm:$0xff]
    %v1235 = vld [vmem:[%s0 + $0x34] sm:$0xff]
    %v1236 = vld [vmem:[%s0 + $0x3c] sm:$0xff]
    %s1237 = scalar_lea.vmem [#allocation4], 1536
    %v1238 = vld [vmem:[%s1237] sm:$0xff]
    %v1239 = vld [vmem:[%s1237 + $0x8] sm:$0xff]
    %v1240 = vld [vmem:[%s1237 + $0x10] sm:$0xff]
    %v1241 = vld [vmem:[%s1237 + $0x18] sm:$0xff]
    %v1242 = vld [vmem:[%s1237 + $0x20] sm:$0xff]
    %v1243 = vld [vmem:[%s1237 + $0x28] sm:$0xff]
    %v1244 = vld [vmem:[%s1237 + $0x30] sm:$0xff]
    %v1245 = vld [vmem:[%s1237 + $0x38] sm:$0xff]
    %v1246 = vld [vmem:[%s1237 + $0x40] sm:$0xff]
    %v1247 = vld [vmem:[%s1237 + $0x48] sm:$0xff]
    %v1248 = vld [vmem:[%s1237 + $0x50] sm:$0xff]
    %v1249 = vld [vmem:[%s1237 + $0x58] sm:$0xff]
    %v1250 = vld [vmem:[%s1237 + $0x60] sm:$0xff]
    %v1251 = vld [vmem:[%s1237 + $0x68] sm:$0xff]
    %v1252 = vld [vmem:[%s1237 + $0x70] sm:$0xff]
    %v1253 = vld [vmem:[%s1237 + $0x78] sm:$0xff]
    %v1254 = vld [vmem:[%s1237 + $0x80] sm:$0xff]
    %v1255 = vld [vmem:[%s1237 + $0x88] sm:$0xff]
    %v1256 = vld [vmem:[%s1237 + $0x90] sm:$0xff]
    %v1257 = vld [vmem:[%s1237 + $0x98] sm:$0xff]
    %v1258 = vld [vmem:[%s1237 + $0xa0] sm:$0xff]
    %v1259 = vld [vmem:[%s1237 + $0xa8] sm:$0xff]
    %v1260 = vld [vmem:[%s1237 + $0xb0] sm:$0xff]
    %v1261 = vld [vmem:[%s1237 + $0xb8] sm:$0xff]
    %v1262 = vld [vmem:[%s1237 + $0xc0] sm:$0xff]
    %v1263 = vld [vmem:[%s1237 + $0xc8] sm:$0xff]
    %v1264 = vld [vmem:[%s1237 + $0xd0] sm:$0xff]
    %v1265 = vld [vmem:[%s1237 + $0xd8] sm:$0xff]
    %v1266 = vld [vmem:[%s1237 + $0xe0] sm:$0xff]
    %v1267 = vld [vmem:[%s1237 + $0xe8] sm:$0xff]
    %v1268 = vld [vmem:[%s1237 + $0xf0] sm:$0xff]
    %v1269 = vld [vmem:[%s1237 + $0xf8] sm:$0xff]
    %v1270 = vld [vmem:[%s1237 + $0x100] sm:$0xff]
    %v1271 = vld [vmem:[%s1237 + $0x108] sm:$0xff]
    %v1272 = vld [vmem:[%s1237 + $0x110] sm:$0xff]
    %v1273 = vld [vmem:[%s1237 + $0x118] sm:$0xff]
    %v1274 = vld [vmem:[%s1237 + $0x120] sm:$0xff]
    %v1275 = vld [vmem:[%s1237 + $0x128] sm:$0xff]
    %v1276 = vld [vmem:[%s1237 + $0x130] sm:$0xff]
    %v1277 = vld [vmem:[%s1237 + $0x138] sm:$0xff]
    %v1278 = vld [vmem:[%s1237 + $0x140] sm:$0xff]
    %v1279 = vld [vmem:[%s1237 + $0x148] sm:$0xff]
    %v1280 = vld [vmem:[%s1237 + $0x150] sm:$0xff]
    %v1281 = vld [vmem:[%s1237 + $0x158] sm:$0xff]
    %v1282 = vld [vmem:[%s1237 + $0x160] sm:$0xff]
    %v1283 = vld [vmem:[%s1237 + $0x168] sm:$0xff]
    %v1284 = vld [vmem:[%s1237 + $0x170] sm:$0xff]
    %v1285 = vld [vmem:[%s1237 + $0x178] sm:$0xff]
    %v1287 = vsel %vm298, %v1229, 0
    %v1290 = vsel %vm298, %v1230, 0
    %v1293 = vsel %vm298, %v1231, 0
    %v1296 = vsel %vm298, %v1232, 0
    %v1299 = vsel %vm298, %v1233, 0
    %v1302 = vsel %vm298, %v1234, 0
    %v1305 = vsel %vm298, %v1235, 0
    %v1308 = vsel %vm298, %v1236, 0
    %1310 = vmatpush.msra.mxu0 0.0
    %1311 = vmatpush.msra.mxu0 0.0
    %1312 = vmatpush.msra.mxu0 0.0
    %1313 = vmatpush.msra.mxu0 0.0
    %1314 = vmatpush.msra.mxu0 %v1282
    %1315 = vmatpush.msra.mxu0 %v1278
    %1316 = vmatpush.msra.mxu0 %v1274
    %1317 = vmatpush.msra.mxu0 %v1270
    %1318 = vmatpush.msra.mxu0 %v1266
    %1319 = vmatpush.msra.mxu0 %v1262
    %1320 = vmatpush.msra.mxu0 %v1258
    %1321 = vmatpush.msra.mxu0 %v1254
    %1322 = vmatpush.msra.mxu0 %v1250
    %1323 = vmatpush.msra.mxu0 %v1246
    %1324 = vmatpush.msra.mxu0 %v1242
    %1325 = vmatpush.msra.mxu0 %v1238
    %1326 = vmatmul.f32.gmra.mxu0 %v1287
    %v1327 = vpop.f32.mrf.mxu0
    %v1328 = vadd.f32 0.0, %v1327
    %1329 = vmatmul.f32.gmra.mxu0 %v1290
    %v1330 = vpop.f32.mrf.mxu0
    %v1331 = vadd.f32 0.0, %v1330
    %1332 = vmatmul.f32.gmra.mxu0 %v1293
    %v1333 = vpop.f32.mrf.mxu0
    %v1334 = vadd.f32 0.0, %v1333
    %1335 = vmatmul.f32.gmra.mxu0 %v1296
    %v1336 = vpop.f32.mrf.mxu0
    %v1337 = vadd.f32 0.0, %v1336
    %1338 = vmatmul.f32.gmra.mxu0 %v1299
    %v1339 = vpop.f32.mrf.mxu0
    %v1340 = vadd.f32 0.0, %v1339
    %1341 = vmatmul.f32.gmra.mxu0 %v1302
    %v1342 = vpop.f32.mrf.mxu0
    %v1343 = vadd.f32 0.0, %v1342
    %1344 = vmatmul.f32.gmra.mxu0 %v1305
    %v1345 = vpop.f32.mrf.mxu0
    %v1346 = vadd.f32 0.0, %v1345
    %1347 = vmatmul.f32.gmra.mxu0 %v1308
    %v1348 = vpop.f32.mrf.mxu0
    %v1349 = vadd.f32 0.0, %v1348
    %1350 = vdwg.mxu0
    %1351 = vmatpush.msra.mxu0 0.0
    %1352 = vmatpush.msra.mxu0 0.0
    %1353 = vmatpush.msra.mxu0 0.0
    %1354 = vmatpush.msra.mxu0 0.0
    %1355 = vmatpush.msra.mxu0 %v1283
    %1356 = vmatpush.msra.mxu0 %v1279
    %1357 = vmatpush.msra.mxu0 %v1275
    %1358 = vmatpush.msra.mxu0 %v1271
    %1359 = vmatpush.msra.mxu0 %v1267
    %1360 = vmatpush.msra.mxu0 %v1263
    %1361 = vmatpush.msra.mxu0 %v1259
    %1362 = vmatpush.msra.mxu0 %v1255
    %1363 = vmatpush.msra.mxu0 %v1251
    %1364 = vmatpush.msra.mxu0 %v1247
    %1365 = vmatpush.msra.mxu0 %v1243
    %1366 = vmatpush.msra.mxu0 %v1239
    %1367 = vmatmul.f32.gmra.mxu0 %v1287
    %v1368 = vpop.f32.mrf.mxu0
    %v1369 = vadd.f32 0.0, %v1368
    %1370 = vmatmul.f32.gmra.mxu0 %v1290
    %v1371 = vpop.f32.mrf.mxu0
    %v1372 = vadd.f32 0.0, %v1371
    %1373 = vmatmul.f32.gmra.mxu0 %v1293
    %v1374 = vpop.f32.mrf.mxu0
    %v1375 = vadd.f32 0.0, %v1374
    %1376 = vmatmul.f32.gmra.mxu0 %v1296
    %v1377 = vpop.f32.mrf.mxu0
    %v1378 = vadd.f32 0.0, %v1377
    %1379 = vmatmul.f32.gmra.mxu0 %v1299
    %v1380 = vpop.f32.mrf.mxu0
    %v1381 = vadd.f32 0.0, %v1380
    %1382 = vmatmul.f32.gmra.mxu0 %v1302
    %v1383 = vpop.f32.mrf.mxu0
    %v1384 = vadd.f32 0.0, %v1383
    %1385 = vmatmul.f32.gmra.mxu0 %v1305
    %v1386 = vpop.f32.mrf.mxu0
    %v1387 = vadd.f32 0.0, %v1386
    %1388 = vmatmul.f32.gmra.mxu0 %v1308
    %v1389 = vpop.f32.mrf.mxu0
    %v1390 = vadd.f32 0.0, %v1389
    %1391 = vdwg.mxu0
    %1392 = vmatpush.msra.mxu0 0.0
    %1393 = vmatpush.msra.mxu0 0.0
    %1394 = vmatpush.msra.mxu0 0.0
    %1395 = vmatpush.msra.mxu0 0.0
    %1396 = vmatpush.msra.mxu0 %v1284
    %1397 = vmatpush.msra.mxu0 %v1280
    %1398 = vmatpush.msra.mxu0 %v1276
    %1399 = vmatpush.msra.mxu0 %v1272
    %1400 = vmatpush.msra.mxu0 %v1268
    %1401 = vmatpush.msra.mxu0 %v1264
    %1402 = vmatpush.msra.mxu0 %v1260
    %1403 = vmatpush.msra.mxu0 %v1256
    %1404 = vmatpush.msra.mxu0 %v1252
    %1405 = vmatpush.msra.mxu0 %v1248
    %1406 = vmatpush.msra.mxu0 %v1244
    %1407 = vmatpush.msra.mxu0 %v1240
    %1408 = vmatmul.f32.gmra.mxu0 %v1287
    %v1409 = vpop.f32.mrf.mxu0
    %v1410 = vadd.f32 0.0, %v1409
    %1411 = vmatmul.f32.gmra.mxu0 %v1290
    %v1412 = vpop.f32.mrf.mxu0
    %v1413 = vadd.f32 0.0, %v1412
    %1414 = vmatmul.f32.gmra.mxu0 %v1293
    %v1415 = vpop.f32.mrf.mxu0
    %v1416 = vadd.f32 0.0, %v1415
    %1417 = vmatmul.f32.gmra.mxu0 %v1296
    %v1418 = vpop.f32.mrf.mxu0
    %v1419 = vadd.f32 0.0, %v1418
    %1420 = vmatmul.f32.gmra.mxu0 %v1299
    %v1421 = vpop.f32.mrf.mxu0
    %v1422 = vadd.f32 0.0, %v1421
    %1423 = vmatmul.f32.gmra.mxu0 %v1302
    %v1424 = vpop.f32.mrf.mxu0
    %v1425 = vadd.f32 0.0, %v1424
    %1426 = vmatmul.f32.gmra.mxu0 %v1305
    %v1427 = vpop.f32.mrf.mxu0
    %v1428 = vadd.f32 0.0, %v1427
    %1429 = vmatmul.f32.gmra.mxu0 %v1308
    %v1430 = vpop.f32.mrf.mxu0
    %v1431 = vadd.f32 0.0, %v1430
    %1432 = vdwg.mxu0
    %1433 = vmatpush.msra.mxu0 0.0
    %1434 = vmatpush.msra.mxu0 0.0
    %1435 = vmatpush.msra.mxu0 0.0
    %1436 = vmatpush.msra.mxu0 0.0
    %1437 = vmatpush.msra.mxu0 %v1285
    %1438 = vmatpush.msra.mxu0 %v1281
    %1439 = vmatpush.msra.mxu0 %v1277
    %1440 = vmatpush.msra.mxu0 %v1273
    %1441 = vmatpush.msra.mxu0 %v1269
    %1442 = vmatpush.msra.mxu0 %v1265
    %1443 = vmatpush.msra.mxu0 %v1261
    %1444 = vmatpush.msra.mxu0 %v1257
    %1445 = vmatpush.msra.mxu0 %v1253
    %1446 = vmatpush.msra.mxu0 %v1249
    %1447 = vmatpush.msra.mxu0 %v1245
    %1448 = vmatpush.msra.mxu0 %v1241
    %1449 = vmatmul.f32.gmra.mxu0 %v1287
    %v1450 = vpop.f32.mrf.mxu0
    %v1451 = vadd.f32 0.0, %v1450
    %1452 = vmatmul.f32.gmra.mxu0 %v1290
    %v1453 = vpop.f32.mrf.mxu0
    %v1454 = vadd.f32 0.0, %v1453
    %1455 = vmatmul.f32.gmra.mxu0 %v1293
    %v1456 = vpop.f32.mrf.mxu0
    %v1457 = vadd.f32 0.0, %v1456
    %1458 = vmatmul.f32.gmra.mxu0 %v1296
    %v1459 = vpop.f32.mrf.mxu0
    %v1460 = vadd.f32 0.0, %v1459
    %1461 = vmatmul.f32.gmra.mxu0 %v1299
    %v1462 = vpop.f32.mrf.mxu0
    %v1463 = vadd.f32 0.0, %v1462
    %1464 = vmatmul.f32.gmra.mxu0 %v1302
    %v1465 = vpop.f32.mrf.mxu0
    %v1466 = vadd.f32 0.0, %v1465
    %1467 = vmatmul.f32.gmra.mxu0 %v1305
    %v1468 = vpop.f32.mrf.mxu0
    %v1469 = vadd.f32 0.0, %v1468
    %1470 = vmatmul.f32.gmra.mxu0 %v1308
    %v1471 = vpop.f32.mrf.mxu0
    %v1472 = vadd.f32 0.0, %v1471
    %1473 = vdwg.mxu0
    %v1474 = vadd.f32 %v1197, %v1328
    %v1475 = vadd.f32 %v1198, %v1369
    %v1476 = vadd.f32 %v1199, %v1410
    %v1477 = vadd.f32 %v1200, %v1451
    %v1478 = vadd.f32 %v1201, %v1331
    %v1479 = vadd.f32 %v1202, %v1372
    %v1480 = vadd.f32 %v1203, %v1413
    %v1481 = vadd.f32 %v1204, %v1454
    %v1482 = vadd.f32 %v1205, %v1334
    %v1483 = vadd.f32 %v1206, %v1375
    %v1484 = vadd.f32 %v1207, %v1416
    %v1485 = vadd.f32 %v1208, %v1457
    %v1486 = vadd.f32 %v1209, %v1337
    %v1487 = vadd.f32 %v1210, %v1378
    %v1488 = vadd.f32 %v1211, %v1419
    %v1489 = vadd.f32 %v1212, %v1460
    %v1490 = vadd.f32 %v1213, %v1340
    %v1491 = vadd.f32 %v1214, %v1381
    %v1492 = vadd.f32 %v1215, %v1422
    %v1493 = vadd.f32 %v1216, %v1463
    %v1494 = vadd.f32 %v1217, %v1343
    %v1495 = vadd.f32 %v1218, %v1384
    %v1496 = vadd.f32 %v1219, %v1425
    %v1497 = vadd.f32 %v1220, %v1466
    %v1498 = vadd.f32 %v1221, %v1346
    %v1499 = vadd.f32 %v1222, %v1387
    %v1500 = vadd.f32 %v1223, %v1428
    %v1501 = vadd.f32 %v1224, %v1469
    %v1502 = vadd.f32 %v1225, %v1349
    %v1503 = vadd.f32 %v1226, %v1390
    %v1504 = vadd.f32 %v1227, %v1431
    %v1505 = vadd.f32 %v1228, %v1472
    %v1506 = vld [vmem:[#allocation7] sm:$0xf]
    %v1508 = vperm.slane %v1506, 0
    %v1509 = vperm.slane %v1506, 1
    %v1510 = vperm.slane %v1506, 2
    %v1511 = vperm.slane %v1506, 3
    %v1516 = vadd.f32 %v1474, %v1508
    %v1517 = vadd.f32 %v1475, %v1509
    %v1518 = vadd.f32 %v1476, %v1510
    %v1519 = vadd.f32 %v1477, %v1511
    %v1520 = vadd.f32 %v1478, %v1508
    %v1521 = vadd.f32 %v1479, %v1509
    %v1522 = vadd.f32 %v1480, %v1510
    %v1523 = vadd.f32 %v1481, %v1511
    %v1524 = vadd.f32 %v1482, %v1508
    %v1525 = vadd.f32 %v1483, %v1509
    %v1526 = vadd.f32 %v1484, %v1510
    %v1527 = vadd.f32 %v1485, %v1511
    %v1528 = vadd.f32 %v1486, %v1508
    %v1529 = vadd.f32 %v1487, %v1509
    %v1530 = vadd.f32 %v1488, %v1510
    %v1531 = vadd.f32 %v1489, %v1511
    %v1532 = vadd.f32 %v1490, %v1508
    %v1533 = vadd.f32 %v1491, %v1509
    %v1534 = vadd.f32 %v1492, %v1510
    %v1535 = vadd.f32 %v1493, %v1511
    %v1536 = vadd.f32 %v1494, %v1508
    %v1537 = vadd.f32 %v1495, %v1509
    %v1538 = vadd.f32 %v1496, %v1510
    %v1539 = vadd.f32 %v1497, %v1511
    %v1540 = vadd.f32 %v1498, %v1508
    %v1541 = vadd.f32 %v1499, %v1509
    %v1542 = vadd.f32 %v1500, %v1510
    %v1543 = vadd.f32 %v1501, %v1511
    %v1544 = vadd.f32 %v1502, %v1508
    %v1545 = vadd.f32 %v1503, %v1509
    %v1546 = vadd.f32 %v1504, %v1510
    %v1547 = vadd.f32 %v1505, %v1511
    %v1548 = vmax.f32 %v1516, 0.0
    %v1549 = vmax.f32 %v1517, 0.0
    %v1550 = vmax.f32 %v1518, 0.0
    %v1551 = vmax.f32 %v1519, 0.0
    %v1552 = vmax.f32 %v1520, 0.0
    %v1553 = vmax.f32 %v1521, 0.0
    %v1554 = vmax.f32 %v1522, 0.0
    %v1555 = vmax.f32 %v1523, 0.0
    %v1556 = vmax.f32 %v1524, 0.0
    %v1557 = vmax.f32 %v1525, 0.0
    %v1558 = vmax.f32 %v1526, 0.0
    %v1559 = vmax.f32 %v1527, 0.0
    %v1560 = vmax.f32 %v1528, 0.0
    %v1561 = vmax.f32 %v1529, 0.0
    %v1562 = vmax.f32 %v1530, 0.0
    %v1563 = vmax.f32 %v1531, 0.0
    %v1564 = vmax.f32 %v1532, 0.0
    %v1565 = vmax.f32 %v1533, 0.0
    %v1566 = vmax.f32 %v1534, 0.0
    %v1567 = vmax.f32 %v1535, 0.0
    %v1568 = vmax.f32 %v1536, 0.0
    %v1569 = vmax.f32 %v1537, 0.0
    %v1570 = vmax.f32 %v1538, 0.0
    %v1571 = vmax.f32 %v1539, 0.0
    %v1572 = vmax.f32 %v1540, 0.0
    %v1573 = vmax.f32 %v1541, 0.0
    %v1574 = vmax.f32 %v1542, 0.0
    %v1575 = vmax.f32 %v1543, 0.0
    %v1576 = vmax.f32 %v1544, 0.0
    %v1577 = vmax.f32 %v1545, 0.0
    %v1578 = vmax.f32 %v1546, 0.0
    %v1579 = vmax.f32 %v1547, 0.0
    %v1580 = vmax.f32 %v1548, %v1550
    %v1581 = vmax.f32 %v1549, %v1551
    %v1582 = vmax.f32 %v1552, %v1554
    %v1583 = vmax.f32 %v1553, %v1555
    %v1584 = vmax.f32 %v1556, %v1558
    %v1585 = vmax.f32 %v1557, %v1559
    %v1586 = vmax.f32 %v1560, %v1562
    %v1587 = vmax.f32 %v1561, %v1563
    %v1588 = vmax.f32 %v1564, %v1566
    %v1589 = vmax.f32 %v1565, %v1567
    %v1590 = vmax.f32 %v1568, %v1570
    %v1591 = vmax.f32 %v1569, %v1571
    %v1592 = vmax.f32 %v1572, %v1574
    %v1593 = vmax.f32 %v1573, %v1575
    %v1594 = vmax.f32 %v1576, %v1578
    %v1595 = vmax.f32 %v1577, %v1579
    %1596 = vst [vmem:[#allocation2] sm:$0xff] 0.0
    %1597 = vst [vmem:[#allocation2 + $0x8] sm:$0xff] 0.0
    %1598 = vst [vmem:[#allocation2 + $0x10] sm:$0xff] 0.0
    %1599 = vst [vmem:[#allocation2 + $0x18] sm:$0xff] 0.0
    %1600 = vst [vmem:[#allocation2 + $0x20] sm:$0xff] 0.0
    %1601 = vst [vmem:[#allocation2 + $0x28] sm:$0xff] 0.0
    %1602 = vst [vmem:[#allocation2 + $0x30] sm:$0xff] 0.0
    %1603 = vst [vmem:[#allocation2 + $0x38] sm:$0xff] 0.0
    %1604 = vst [vmem:[#allocation2 + $0x40] sm:$0xff] 0.0
    %1605 = vst [vmem:[#allocation2 + $0x48] sm:$0xff] 0.0
    %1606 = vst [vmem:[#allocation2 + $0x50] sm:$0xff] 0.0
    %1607 = vst [vmem:[#allocation2 + $0x58] sm:$0xff] 0.0
    %1608 = vst [vmem:[#allocation2 + $0x60] sm:$0xff] 0.0
    %1609 = vst [vmem:[#allocation2 + $0x68] sm:$0xff] 0.0
    %1610 = vst [vmem:[#allocation2 + $0x70] sm:$0xff] 0.0
    %1611 = vst [vmem:[#allocation2 + $0x78] sm:$0xff] 0.0
    %1612 = vst [vmem:[#allocation2 + $0x80] sm:$0xff] 0.0
    %1613 = vst [vmem:[#allocation2 + $0x88] sm:$0xff] 0.0
    %1614 = vst [vmem:[#allocation2 + $0x90] sm:$0xff] 0.0
    %1615 = vst [vmem:[#allocation2 + $0x98] sm:$0xff] 0.0
    %1616 = vst [vmem:[#allocation2] sm:$0xff] %v1580
    %1617 = vst [vmem:[#allocation2 + $0x8] sm:$0xff] %v1581
    %1618 = vst [vmem:[#allocation2 + $0x10] sm:$0xff] %v1582
    %1619 = vst [vmem:[#allocation2 + $0x18] sm:$0xff] %v1583
    %1620 = vst [vmem:[#allocation2 + $0x20] sm:$0xff] %v1584
    %1621 = vst [vmem:[#allocation2 + $0x28] sm:$0xff] %v1585
    %1622 = vst [vmem:[#allocation2 + $0x30] sm:$0xff] %v1586
    %1623 = vst [vmem:[#allocation2 + $0x38] sm:$0xff] %v1587
    %1624 = vst [vmem:[#allocation2 + $0x40] sm:$0xff] %v1588
    %1625 = vst [vmem:[#allocation2 + $0x48] sm:$0xff] %v1589
    %1626 = vst [vmem:[#allocation2 + $0x50] sm:$0xff] %v1590
    %1627 = vst [vmem:[#allocation2 + $0x58] sm:$0xff] %v1591
    %1628 = vst [vmem:[#allocation2 + $0x60] sm:$0xff] %v1592
    %1629 = vst [vmem:[#allocation2 + $0x68] sm:$0xff] %v1593
    %1630 = vst [vmem:[#allocation2 + $0x70] sm:$0xff] %v1594
    %1631 = vst [vmem:[#allocation2 + $0x78] sm:$0xff] %v1595
    %v1632 = vld [vmem:[#allocation2] sm:$0xff]
    %v1633 = vld [vmem:[#allocation2 + $0x8] sm:$0xff]
    %v1634 = vld [vmem:[#allocation2 + $0x10] sm:$0xff]
    %v1635 = vld [vmem:[#allocation2 + $0x18] sm:$0xff]
    %v1636 = vld [vmem:[#allocation2 + $0x20] sm:$0xff]
    %v1637 = vld [vmem:[#allocation2 + $0x28] sm:$0xff]
    %v1638 = vld [vmem:[#allocation2 + $0x30] sm:$0xff]
    %v1639 = vld [vmem:[#allocation2 + $0x38] sm:$0xff]
    %v1640 = vld [vmem:[#allocation2 + $0x40] sm:$0xff]
    %v1641 = vld [vmem:[#allocation2 + $0x48] sm:$0xff]
    %v1642 = vld [vmem:[#allocation2 + $0x50] sm:$0xff]
    %v1643 = vld [vmem:[#allocation2 + $0x58] sm:$0xff]
    %v1644 = vld [vmem:[#allocation2 + $0x60] sm:$0xff]
    %v1645 = vld [vmem:[#allocation2 + $0x68] sm:$0xff]
    %v1646 = vld [vmem:[#allocation2 + $0x70] sm:$0xff]
    %v1647 = vld [vmem:[#allocation2 + $0x78] sm:$0xff]
    %v1648 = vld [vmem:[#allocation2] sm:$0xfe]
    %v1649 = vld [vmem:[#allocation2 + $0x8] sm:$0xfe]
    %v1650 = vld [vmem:[#allocation2 + $0x80] sm:$0x1]
    %v1651 = vld [vmem:[#allocation2 + $0x88] sm:$0x1]
    %vm1670 = vcmask 1046528
    %v1671 = vrot.slane %v1648, 1
    %v1672 = vrot.slane %v1634, 1
    %v1673 = vsel %vm1670, %v1671, %v1672
    %v1674 = vrot.slane %v1649, 1
    %v1675 = vrot.slane %v1635, 1
    %v1676 = vsel %vm1670, %v1674, %v1675
    %v1677 = vrot.slane %v1636, 1
    %v1678 = vsel %vm1670, %v1672, %v1677
    %v1679 = vrot.slane %v1637, 1
    %v1680 = vsel %vm1670, %v1675, %v1679
    %v1681 = vrot.slane %v1638, 1
    %v1682 = vsel %vm1670, %v1677, %v1681
    %v1683 = vrot.slane %v1639, 1
    %v1684 = vsel %vm1670, %v1679, %v1683
    %v1685 = vrot.slane %v1640, 1
    %v1686 = vsel %vm1670, %v1681, %v1685
    %v1687 = vrot.slane %v1641, 1
    %v1688 = vsel %vm1670, %v1683, %v1687
    %v1689 = vrot.slane %v1642, 1
    %v1690 = vsel %vm1670, %v1685, %v1689
    %v1691 = vrot.slane %v1643, 1
    %v1692 = vsel %vm1670, %v1687, %v1691
    %v1693 = vrot.slane %v1644, 1
    %v1694 = vsel %vm1670, %v1689, %v1693
    %v1695 = vrot.slane %v1645, 1
    %v1696 = vsel %vm1670, %v1691, %v1695
    %v1697 = vrot.slane %v1646, 1
    %v1698 = vsel %vm1670, %v1693, %v1697
    %v1699 = vrot.slane %v1647, 1
    %v1700 = vsel %vm1670, %v1695, %v1699
    %v1701 = vrot.slane %v1650, 1
    %v1702 = vsel %vm1670, %v1697, %v1701
    %v1703 = vrot.slane %v1651, 1
    %v1704 = vsel %vm1670, %v1699, %v1703
    %v1721 = vmax.f32 %v1632, %v1673
    %v1722 = vmax.f32 %v1633, %v1676
    %v1723 = vmax.f32 %v1634, %v1678
    %v1724 = vmax.f32 %v1635, %v1680
    %v1725 = vmax.f32 %v1636, %v1682
    %v1726 = vmax.f32 %v1637, %v1684
    %v1727 = vmax.f32 %v1638, %v1686
    %v1728 = vmax.f32 %v1639, %v1688
    %v1729 = vmax.f32 %v1640, %v1690
    %v1730 = vmax.f32 %v1641, %v1692
    %v1731 = vmax.f32 %v1642, %v1694
    %v1732 = vmax.f32 %v1643, %v1696
    %v1733 = vmax.f32 %v1644, %v1698
    %v1734 = vmax.f32 %v1645, %v1700
    %v1735 = vmax.f32 %v1646, %v1702
    %v1736 = vmax.f32 %v1647, %v1704
    %v1737 = vld [vmem:[#allocation9] sm:$0xff]
    %v1738 = vld [vmem:[#allocation9 + $0x8] sm:$0xff]
    %v1739 = vld [vmem:[#allocation9 + $0x10] sm:$0xff]
    %v1740 = vld [vmem:[#allocation9 + $0x18] sm:$0xff]
    %v1741 = vld [vmem:[#allocation9 + $0x20] sm:$0xff]
    %v1742 = vld [vmem:[#allocation9 + $0x28] sm:$0xff]
    %v1743 = vld [vmem:[#allocation9 + $0x30] sm:$0xff]
    %v1744 = vld [vmem:[#allocation9 + $0x38] sm:$0xff]
    %v1745 = vld [vmem:[#allocation9 + $0x40] sm:$0xff]
    %v1746 = vld [vmem:[#allocation9 + $0x48] sm:$0xff]
    %v1747 = vld [vmem:[#allocation9 + $0x50] sm:$0xff]
    %v1748 = vld [vmem:[#allocation9 + $0x58] sm:$0xff]
    %v1749 = vld [vmem:[#allocation9 + $0x60] sm:$0xff]
    %v1750 = vld [vmem:[#allocation9 + $0x68] sm:$0xff]
    %v1751 = vld [vmem:[#allocation9 + $0x70] sm:$0xff]
    %v1752 = vld [vmem:[#allocation9 + $0x78] sm:$0xff]
    %v1753 = vld [vmem:[#allocation9 + $0x80] sm:$0xff]
    %v1754 = vld [vmem:[#allocation9 + $0x88] sm:$0xff]
    %v1755 = vld [vmem:[#allocation9 + $0x90] sm:$0xff]
    %v1756 = vld [vmem:[#allocation9 + $0x98] sm:$0xff]
    %v1757 = vld [vmem:[#allocation9 + $0xa0] sm:$0xff]
    %v1758 = vld [vmem:[#allocation9 + $0xa8] sm:$0xff]
    %v1759 = vld [vmem:[#allocation9 + $0xb0] sm:$0xff]
    %v1760 = vld [vmem:[#allocation9 + $0xb8] sm:$0xff]
    %v1761 = vld [vmem:[#allocation9 + $0xc0] sm:$0xff]
    %v1762 = vld [vmem:[#allocation9 + $0xc8] sm:$0xff]
    %v1763 = vld [vmem:[#allocation9 + $0xd0] sm:$0xff]
    %v1764 = vld [vmem:[#allocation9 + $0xd8] sm:$0xff]
    %v1765 = vld [vmem:[#allocation9 + $0xe0] sm:$0xff]
    %v1766 = vld [vmem:[#allocation9 + $0xe8] sm:$0xff]
    %v1767 = vld [vmem:[#allocation9 + $0xf0] sm:$0xff]
    %v1768 = vld [vmem:[#allocation9 + $0xf8] sm:$0xff]
    %v1769 = vld [vmem:[#allocation9 + $0x100] sm:$0xff]
    %v1770 = vld [vmem:[#allocation9 + $0x108] sm:$0xff]
    %v1771 = vld [vmem:[#allocation9 + $0x110] sm:$0xff]
    %v1772 = vld [vmem:[#allocation9 + $0x118] sm:$0xff]
    %v1773 = vld [vmem:[#allocation9 + $0x120] sm:$0xff]
    %v1774 = vld [vmem:[#allocation9 + $0x128] sm:$0xff]
    %v1775 = vld [vmem:[#allocation9 + $0x130] sm:$0xff]
    %v1776 = vld [vmem:[#allocation9 + $0x138] sm:$0xff]
    %v1777 = vld [vmem:[#allocation9 + $0x140] sm:$0xff]
    %v1778 = vld [vmem:[#allocation9 + $0x148] sm:$0xff]
    %v1779 = vld [vmem:[#allocation9 + $0x150] sm:$0xff]
    %v1780 = vld [vmem:[#allocation9 + $0x158] sm:$0xff]
    %v1781 = vld [vmem:[#allocation9 + $0x160] sm:$0xff]
    %v1782 = vld [vmem:[#allocation9 + $0x168] sm:$0xff]
    %v1783 = vld [vmem:[#allocation9 + $0x170] sm:$0xff]
    %v1784 = vld [vmem:[#allocation9 + $0x178] sm:$0xff]
    %v1785 = vld [vmem:[#allocation9 + $0x180] sm:$0xff]
    %v1786 = vld [vmem:[#allocation9 + $0x188] sm:$0xff]
    %v1787 = vld [vmem:[#allocation9 + $0x190] sm:$0xff]
    %v1788 = vld [vmem:[#allocation9 + $0x198] sm:$0xff]
    %v1789 = vld [vmem:[#allocation9 + $0x1a0] sm:$0xff]
    %v1790 = vld [vmem:[#allocation9 + $0x1a8] sm:$0xff]
    %v1791 = vld [vmem:[#allocation9 + $0x1b0] sm:$0xff]
    %v1792 = vld [vmem:[#allocation9 + $0x1b8] sm:$0xff]
    %v1793 = vld [vmem:[#allocation9 + $0x1c0] sm:$0xff]
    %v1794 = vld [vmem:[#allocation9 + $0x1c8] sm:$0xff]
    %v1795 = vld [vmem:[#allocation9 + $0x1d0] sm:$0xff]
    %v1796 = vld [vmem:[#allocation9 + $0x1d8] sm:$0xff]
    %v1797 = vld [vmem:[#allocation9 + $0x1e0] sm:$0xff]
    %v1798 = vld [vmem:[#allocation9 + $0x1e8] sm:$0xff]
    %v1799 = vld [vmem:[#allocation9 + $0x1f0] sm:$0xff]
    %v1800 = vld [vmem:[#allocation9 + $0x1f8] sm:$0xff]
    %v1801 = vld [vmem:[#allocation9 + $0x200] sm:$0xff]
    %v1802 = vld [vmem:[#allocation9 + $0x208] sm:$0xff]
    %v1803 = vld [vmem:[#allocation9 + $0x210] sm:$0xff]
    %v1804 = vld [vmem:[#allocation9 + $0x218] sm:$0xff]
    %v1805 = vld [vmem:[#allocation9 + $0x220] sm:$0xff]
    %v1806 = vld [vmem:[#allocation9 + $0x228] sm:$0xff]
    %v1807 = vld [vmem:[#allocation9 + $0x230] sm:$0xff]
    %v1808 = vld [vmem:[#allocation9 + $0x238] sm:$0xff]
    %v1809 = vld [vmem:[#allocation9 + $0x240] sm:$0xff]
    %v1810 = vld [vmem:[#allocation9 + $0x248] sm:$0xff]
    %v1811 = vld [vmem:[#allocation9 + $0x250] sm:$0xff]
    %v1812 = vld [vmem:[#allocation9 + $0x258] sm:$0xff]
    %v1813 = vld [vmem:[#allocation9 + $0x260] sm:$0xff]
    %v1814 = vld [vmem:[#allocation9 + $0x268] sm:$0xff]
    %v1815 = vld [vmem:[#allocation9 + $0x270] sm:$0xff]
    %v1816 = vld [vmem:[#allocation9 + $0x278] sm:$0xff]
    %v1817 = vld [vmem:[#allocation9 + $0x280] sm:$0xff]
    %v1818 = vld [vmem:[#allocation9 + $0x288] sm:$0xff]
    %v1819 = vld [vmem:[#allocation9 + $0x290] sm:$0xff]
    %v1820 = vld [vmem:[#allocation9 + $0x298] sm:$0xff]
    %v1821 = vld [vmem:[#allocation9 + $0x2a0] sm:$0xff]
    %v1822 = vld [vmem:[#allocation9 + $0x2a8] sm:$0xff]
    %v1823 = vld [vmem:[#allocation9 + $0x2b0] sm:$0xff]
    %v1824 = vld [vmem:[#allocation9 + $0x2b8] sm:$0xff]
    %v1825 = vld [vmem:[#allocation9 + $0x2c0] sm:$0xff]
    %v1826 = vld [vmem:[#allocation9 + $0x2c8] sm:$0xff]
    %v1827 = vld [vmem:[#allocation9 + $0x2d0] sm:$0xff]
    %v1828 = vld [vmem:[#allocation9 + $0x2d8] sm:$0xff]
    %v1829 = vld [vmem:[#allocation9 + $0x2e0] sm:$0xff]
    %v1830 = vld [vmem:[#allocation9 + $0x2e8] sm:$0xff]
    %v1831 = vld [vmem:[#allocation9 + $0x2f0] sm:$0xff]
    %v1832 = vld [vmem:[#allocation9 + $0x2f8] sm:$0xff]
    %v1833 = vld [vmem:[#allocation9 + $0x300] sm:$0xff]
    %v1834 = vld [vmem:[#allocation9 + $0x308] sm:$0xff]
    %v1835 = vld [vmem:[#allocation9 + $0x310] sm:$0xff]
    %v1836 = vld [vmem:[#allocation9 + $0x318] sm:$0xff]
    %v1837 = vld [vmem:[#allocation9 + $0x320] sm:$0xff]
    %v1838 = vld [vmem:[#allocation9 + $0x328] sm:$0xff]
    %v1839 = vld [vmem:[#allocation9 + $0x330] sm:$0xff]
    %v1840 = vld [vmem:[#allocation9 + $0x338] sm:$0xff]
    %v1841 = vld [vmem:[#allocation9 + $0x340] sm:$0xff]
    %v1842 = vld [vmem:[#allocation9 + $0x348] sm:$0xff]
    %v1843 = vld [vmem:[#allocation9 + $0x350] sm:$0xff]
    %v1844 = vld [vmem:[#allocation9 + $0x358] sm:$0xff]
    %v1845 = vld [vmem:[#allocation9 + $0x360] sm:$0xff]
    %v1846 = vld [vmem:[#allocation9 + $0x368] sm:$0xff]
    %v1847 = vld [vmem:[#allocation9 + $0x370] sm:$0xff]
    %v1848 = vld [vmem:[#allocation9 + $0x378] sm:$0xff]
    %v1849 = vld [vmem:[#allocation9 + $0x380] sm:$0xff]
    %v1850 = vld [vmem:[#allocation9 + $0x388] sm:$0xff]
    %v1851 = vld [vmem:[#allocation9 + $0x390] sm:$0xff]
    %v1852 = vld [vmem:[#allocation9 + $0x398] sm:$0xff]
    %v1853 = vld [vmem:[#allocation9 + $0x3a0] sm:$0xff]
    %v1854 = vld [vmem:[#allocation9 + $0x3a8] sm:$0xff]
    %v1855 = vld [vmem:[#allocation9 + $0x3b0] sm:$0xff]
    %v1856 = vld [vmem:[#allocation9 + $0x3b8] sm:$0xff]
    %v1857 = vld [vmem:[#allocation9 + $0x3c0] sm:$0xff]
    %v1858 = vld [vmem:[#allocation9 + $0x3c8] sm:$0xff]
    %v1859 = vld [vmem:[#allocation9 + $0x3d0] sm:$0xff]
    %v1860 = vld [vmem:[#allocation9 + $0x3d8] sm:$0xff]
    %v1861 = vld [vmem:[#allocation9 + $0x3e0] sm:$0xff]
    %v1862 = vld [vmem:[#allocation9 + $0x3e8] sm:$0xff]
    %v1863 = vld [vmem:[#allocation9 + $0x3f0] sm:$0xff]
    %v1864 = vld [vmem:[#allocation9 + $0x3f8] sm:$0xff]
    %v1865 = vld [vmem:[#allocation2] sm:$0xfc]
    %v1866 = vld [vmem:[#allocation2 + $0x8] sm:$0xfc]
    %v1867 = vld [vmem:[#allocation2 + $0x80] sm:$0x3]
    %v1868 = vld [vmem:[#allocation2 + $0x88] sm:$0x3]
    %v1869 = vld [vmem:[#allocation2] sm:$0xf8]
    %v1870 = vld [vmem:[#allocation2 + $0x8] sm:$0xf8]
    %v1871 = vld [vmem:[#allocation2 + $0x80] sm:$0x7]
    %v1872 = vld [vmem:[#allocation2 + $0x88] sm:$0x7]
    %v1877 = vrot.slane %v1869, 1
    %v1878 = vsel %vm1670, %v1877, %v1672
    %v1879 = vrot.slane %v1870, 1
    %v1880 = vsel %vm1670, %v1879, %v1675
    %v1881 = vrot.slane %v1871, 1
    %v1882 = vsel %vm1670, %v1697, %v1881
    %v1883 = vrot.slane %v1872, 1
    %v1884 = vsel %vm1670, %v1699, %v1883
    %v1891 = vmax.f32 %v1865, %v1878
    %v1892 = vmax.f32 %v1866, %v1880
    %v1893 = vmax.f32 %v1646, %v1882
    %v1894 = vmax.f32 %v1647, %v1884
    %v1895 = vmax.f32 %v1867, %v1881
    %v1896 = vmax.f32 %v1868, %v1883
    %s1897 = scalar_lea.vmem [#allocation9], 1024
    %v1898 = vld [vmem:[%s1897] sm:$0xff]
    %v1899 = vld [vmem:[%s1897 + $0x8] sm:$0xff]
    %v1900 = vld [vmem:[%s1897 + $0x10] sm:$0xff]
    %v1901 = vld [vmem:[%s1897 + $0x18] sm:$0xff]
    %v1902 = vld [vmem:[%s1897 + $0x20] sm:$0xff]
    %v1903 = vld [vmem:[%s1897 + $0x28] sm:$0xff]
    %v1904 = vld [vmem:[%s1897 + $0x30] sm:$0xff]
    %v1905 = vld [vmem:[%s1897 + $0x38] sm:$0xff]
    %v1906 = vld [vmem:[%s1897 + $0x40] sm:$0xff]
    %v1907 = vld [vmem:[%s1897 + $0x48] sm:$0xff]
    %v1908 = vld [vmem:[%s1897 + $0x50] sm:$0xff]
    %v1909 = vld [vmem:[%s1897 + $0x58] sm:$0xff]
    %v1910 = vld [vmem:[%s1897 + $0x60] sm:$0xff]
    %v1911 = vld [vmem:[%s1897 + $0x68] sm:$0xff]
    %v1912 = vld [vmem:[%s1897 + $0x70] sm:$0xff]
    %v1913 = vld [vmem:[%s1897 + $0x78] sm:$0xff]
    %v1914 = vld [vmem:[%s1897 + $0x80] sm:$0xff]
    %v1915 = vld [vmem:[%s1897 + $0x88] sm:$0xff]
    %v1916 = vld [vmem:[%s1897 + $0x90] sm:$0xff]
    %v1917 = vld [vmem:[%s1897 + $0x98] sm:$0xff]
    %v1918 = vld [vmem:[%s1897 + $0xa0] sm:$0xff]
    %v1919 = vld [vmem:[%s1897 + $0xa8] sm:$0xff]
    %v1920 = vld [vmem:[%s1897 + $0xb0] sm:$0xff]
    %v1921 = vld [vmem:[%s1897 + $0xb8] sm:$0xff]
    %v1922 = vld [vmem:[%s1897 + $0xc0] sm:$0xff]
    %v1923 = vld [vmem:[%s1897 + $0xc8] sm:$0xff]
    %v1924 = vld [vmem:[%s1897 + $0xd0] sm:$0xff]
    %v1925 = vld [vmem:[%s1897 + $0xd8] sm:$0xff]
    %v1926 = vld [vmem:[%s1897 + $0xe0] sm:$0xff]
    %v1927 = vld [vmem:[%s1897 + $0xe8] sm:$0xff]
    %v1928 = vld [vmem:[%s1897 + $0xf0] sm:$0xff]
    %v1929 = vld [vmem:[%s1897 + $0xf8] sm:$0xff]
    %v1930 = vld [vmem:[%s1897 + $0x100] sm:$0xff]
    %v1931 = vld [vmem:[%s1897 + $0x108] sm:$0xff]
    %v1932 = vld [vmem:[%s1897 + $0x110] sm:$0xff]
    %v1933 = vld [vmem:[%s1897 + $0x118] sm:$0xff]
    %v1934 = vld [vmem:[%s1897 + $0x120] sm:$0xff]
    %v1935 = vld [vmem:[%s1897 + $0x128] sm:$0xff]
    %v1936 = vld [vmem:[%s1897 + $0x130] sm:$0xff]
    %v1937 = vld [vmem:[%s1897 + $0x138] sm:$0xff]
    %v1938 = vld [vmem:[%s1897 + $0x140] sm:$0xff]
    %v1939 = vld [vmem:[%s1897 + $0x148] sm:$0xff]
    %v1940 = vld [vmem:[%s1897 + $0x150] sm:$0xff]
    %v1941 = vld [vmem:[%s1897 + $0x158] sm:$0xff]
    %v1942 = vld [vmem:[%s1897 + $0x160] sm:$0xff]
    %v1943 = vld [vmem:[%s1897 + $0x168] sm:$0xff]
    %v1944 = vld [vmem:[%s1897 + $0x170] sm:$0xff]
    %v1945 = vld [vmem:[%s1897 + $0x178] sm:$0xff]
    %v1946 = vld [vmem:[%s1897 + $0x180] sm:$0xff]
    %v1947 = vld [vmem:[%s1897 + $0x188] sm:$0xff]
    %v1948 = vld [vmem:[%s1897 + $0x190] sm:$0xff]
    %v1949 = vld [vmem:[%s1897 + $0x198] sm:$0xff]
    %v1950 = vld [vmem:[%s1897 + $0x1a0] sm:$0xff]
    %v1951 = vld [vmem:[%s1897 + $0x1a8] sm:$0xff]
    %v1952 = vld [vmem:[%s1897 + $0x1b0] sm:$0xff]
    %v1953 = vld [vmem:[%s1897 + $0x1b8] sm:$0xff]
    %v1954 = vld [vmem:[%s1897 + $0x1c0] sm:$0xff]
    %v1955 = vld [vmem:[%s1897 + $0x1c8] sm:$0xff]
    %v1956 = vld [vmem:[%s1897 + $0x1d0] sm:$0xff]
    %v1957 = vld [vmem:[%s1897 + $0x1d8] sm:$0xff]
    %v1958 = vld [vmem:[%s1897 + $0x1e0] sm:$0xff]
    %v1959 = vld [vmem:[%s1897 + $0x1e8] sm:$0xff]
    %v1960 = vld [vmem:[%s1897 + $0x1f0] sm:$0xff]
    %v1961 = vld [vmem:[%s1897 + $0x1f8] sm:$0xff]
    %v1962 = vld [vmem:[%s1897 + $0x200] sm:$0xff]
    %v1963 = vld [vmem:[%s1897 + $0x208] sm:$0xff]
    %v1964 = vld [vmem:[%s1897 + $0x210] sm:$0xff]
    %v1965 = vld [vmem:[%s1897 + $0x218] sm:$0xff]
    %v1966 = vld [vmem:[%s1897 + $0x220] sm:$0xff]
    %v1967 = vld [vmem:[%s1897 + $0x228] sm:$0xff]
    %v1968 = vld [vmem:[%s1897 + $0x230] sm:$0xff]
    %v1969 = vld [vmem:[%s1897 + $0x238] sm:$0xff]
    %v1970 = vld [vmem:[%s1897 + $0x240] sm:$0xff]
    %v1971 = vld [vmem:[%s1897 + $0x248] sm:$0xff]
    %v1972 = vld [vmem:[%s1897 + $0x250] sm:$0xff]
    %v1973 = vld [vmem:[%s1897 + $0x258] sm:$0xff]
    %v1974 = vld [vmem:[%s1897 + $0x260] sm:$0xff]
    %v1975 = vld [vmem:[%s1897 + $0x268] sm:$0xff]
    %v1976 = vld [vmem:[%s1897 + $0x270] sm:$0xff]
    %v1977 = vld [vmem:[%s1897 + $0x278] sm:$0xff]
    %v1978 = vld [vmem:[%s1897 + $0x280] sm:$0xff]
    %v1979 = vld [vmem:[%s1897 + $0x288] sm:$0xff]
    %v1980 = vld [vmem:[%s1897 + $0x290] sm:$0xff]
    %v1981 = vld [vmem:[%s1897 + $0x298] sm:$0xff]
    %v1982 = vld [vmem:[%s1897 + $0x2a0] sm:$0xff]
    %v1983 = vld [vmem:[%s1897 + $0x2a8] sm:$0xff]
    %v1984 = vld [vmem:[%s1897 + $0x2b0] sm:$0xff]
    %v1985 = vld [vmem:[%s1897 + $0x2b8] sm:$0xff]
    %v1986 = vld [vmem:[%s1897 + $0x2c0] sm:$0xff]
    %v1987 = vld [vmem:[%s1897 + $0x2c8] sm:$0xff]
    %v1988 = vld [vmem:[%s1897 + $0x2d0] sm:$0xff]
    %v1989 = vld [vmem:[%s1897 + $0x2d8] sm:$0xff]
    %v1990 = vld [vmem:[%s1897 + $0x2e0] sm:$0xff]
    %v1991 = vld [vmem:[%s1897 + $0x2e8] sm:$0xff]
    %v1992 = vld [vmem:[%s1897 + $0x2f0] sm:$0xff]
    %v1993 = vld [vmem:[%s1897 + $0x2f8] sm:$0xff]
    %v1994 = vld [vmem:[%s1897 + $0x300] sm:$0xff]
    %v1995 = vld [vmem:[%s1897 + $0x308] sm:$0xff]
    %v1996 = vld [vmem:[%s1897 + $0x310] sm:$0xff]
    %v1997 = vld [vmem:[%s1897 + $0x318] sm:$0xff]
    %v1998 = vld [vmem:[%s1897 + $0x320] sm:$0xff]
    %v1999 = vld [vmem:[%s1897 + $0x328] sm:$0xff]
    %v2000 = vld [vmem:[%s1897 + $0x330] sm:$0xff]
    %v2001 = vld [vmem:[%s1897 + $0x338] sm:$0xff]
    %v2002 = vld [vmem:[%s1897 + $0x340] sm:$0xff]
    %v2003 = vld [vmem:[%s1897 + $0x348] sm:$0xff]
    %v2004 = vld [vmem:[%s1897 + $0x350] sm:$0xff]
    %v2005 = vld [vmem:[%s1897 + $0x358] sm:$0xff]
    %v2006 = vld [vmem:[%s1897 + $0x360] sm:$0xff]
    %v2007 = vld [vmem:[%s1897 + $0x368] sm:$0xff]
    %v2008 = vld [vmem:[%s1897 + $0x370] sm:$0xff]
    %v2009 = vld [vmem:[%s1897 + $0x378] sm:$0xff]
    %v2010 = vld [vmem:[%s1897 + $0x380] sm:$0xff]
    %v2011 = vld [vmem:[%s1897 + $0x388] sm:$0xff]
    %v2012 = vld [vmem:[%s1897 + $0x390] sm:$0xff]
    %v2013 = vld [vmem:[%s1897 + $0x398] sm:$0xff]
    %v2014 = vld [vmem:[%s1897 + $0x3a0] sm:$0xff]
    %v2015 = vld [vmem:[%s1897 + $0x3a8] sm:$0xff]
    %v2016 = vld [vmem:[%s1897 + $0x3b0] sm:$0xff]
    %v2017 = vld [vmem:[%s1897 + $0x3b8] sm:$0xff]
    %v2018 = vld [vmem:[%s1897 + $0x3c0] sm:$0xff]
    %v2019 = vld [vmem:[%s1897 + $0x3c8] sm:$0xff]
    %v2020 = vld [vmem:[%s1897 + $0x3d0] sm:$0xff]
    %v2021 = vld [vmem:[%s1897 + $0x3d8] sm:$0xff]
    %v2022 = vld [vmem:[%s1897 + $0x3e0] sm:$0xff]
    %v2023 = vld [vmem:[%s1897 + $0x3e8] sm:$0xff]
    %v2024 = vld [vmem:[%s1897 + $0x3f0] sm:$0xff]
    %v2025 = vld [vmem:[%s1897 + $0x3f8] sm:$0xff]
    %vm2044 = vcmask 1045504
    %v2045 = vrot.slane %v1891, 2
    %v2046 = vrot.slane %v1723, 2
    %v2047 = vsel %vm2044, %v2045, %v2046
    %v2048 = vrot.slane %v1892, 2
    %v2049 = vrot.slane %v1724, 2
    %v2050 = vsel %vm2044, %v2048, %v2049
    %v2051 = vrot.slane %v1725, 2
    %v2052 = vsel %vm2044, %v2046, %v2051
    %v2053 = vrot.slane %v1726, 2
    %v2054 = vsel %vm2044, %v2049, %v2053
    %v2055 = vrot.slane %v1727, 2
    %v2056 = vsel %vm2044, %v2051, %v2055
    %v2057 = vrot.slane %v1728, 2
    %v2058 = vsel %vm2044, %v2053, %v2057
    %v2059 = vrot.slane %v1729, 2
    %v2060 = vsel %vm2044, %v2055, %v2059
    %v2061 = vrot.slane %v1730, 2
    %v2062 = vsel %vm2044, %v2057, %v2061
    %v2063 = vrot.slane %v1731, 2
    %v2064 = vsel %vm2044, %v2059, %v2063
    %v2065 = vrot.slane %v1732, 2
    %v2066 = vsel %vm2044, %v2061, %v2065
    %v2067 = vrot.slane %v1733, 2
    %v2068 = vsel %vm2044, %v2063, %v2067
    %v2069 = vrot.slane %v1734, 2
    %v2070 = vsel %vm2044, %v2065, %v2069
    %v2071 = vrot.slane %v1893, 2
    %v2072 = vsel %vm2044, %v2067, %v2071
    %v2073 = vrot.slane %v1894, 2
    %v2074 = vsel %vm2044, %v2069, %v2073
    %v2075 = vrot.slane %v1895, 2
    %v2076 = vsel %vm2044, %v2071, %v2075
    %v2077 = vrot.slane %v1896, 2
    %v2078 = vsel %vm2044, %v2073, %v2077
    %2095 = vmatpush.msra.mxu0 %v1958
    %2096 = vmatpush.msra.mxu0 %v1954
    %2097 = vmatpush.msra.mxu0 %v1950
    %2098 = vmatpush.msra.mxu0 %v1946
    %2099 = vmatpush.msra.mxu0 %v1942
    %2100 = vmatpush.msra.mxu0 %v1938
    %2101 = vmatpush.msra.mxu0 %v1934
    %2102 = vmatpush.msra.mxu0 %v1930
    %2103 = vmatpush.msra.mxu0 %v1926
    %2104 = vmatpush.msra.mxu0 %v1922
    %2105 = vmatpush.msra.mxu0 %v1918
    %2106 = vmatpush.msra.mxu0 %v1914
    %2107 = vmatpush.msra.mxu0 %v1910
    %2108 = vmatpush.msra.mxu0 %v1906
    %2109 = vmatpush.msra.mxu0 %v1902
    %2110 = vmatpush.msra.mxu0 %v1898
    %2111 = vmatmul.f32.gmra.mxu0 %v2047
    %v2112 = vpop.f32.mrf.mxu0
    %v2113 = vadd.f32 0.0, %v2112
    %2114 = vmatmul.f32.gmra.mxu0 %v2052
    %v2115 = vpop.f32.mrf.mxu0
    %v2116 = vadd.f32 0.0, %v2115
    %2117 = vmatmul.f32.gmra.mxu0 %v2056
    %v2118 = vpop.f32.mrf.mxu0
    %v2119 = vadd.f32 0.0, %v2118
    %2120 = vmatmul.f32.gmra.mxu0 %v2060
    %v2121 = vpop.f32.mrf.mxu0
    %v2122 = vadd.f32 0.0, %v2121
    %2123 = vmatmul.f32.gmra.mxu0 %v2064
    %v2124 = vpop.f32.mrf.mxu0
    %v2125 = vadd.f32 0.0, %v2124
    %2126 = vmatmul.f32.gmra.mxu0 %v2068
    %v2127 = vpop.f32.mrf.mxu0
    %v2128 = vadd.f32 0.0, %v2127
    %2129 = vmatmul.f32.gmra.mxu0 %v2072
    %v2130 = vpop.f32.mrf.mxu0
    %v2131 = vadd.f32 0.0, %v2130
    %2132 = vmatmul.f32.gmra.mxu0 %v2076
    %v2133 = vpop.f32.mrf.mxu0
    %v2134 = vadd.f32 0.0, %v2133
    %2135 = vdwg.mxu0
    %2136 = vmatpush.msra.mxu0 %v2022
    %2137 = vmatpush.msra.mxu0 %v2018
    %2138 = vmatpush.msra.mxu0 %v2014
    %2139 = vmatpush.msra.mxu0 %v2010
    %2140 = vmatpush.msra.mxu0 %v2006
    %2141 = vmatpush.msra.mxu0 %v2002
    %2142 = vmatpush.msra.mxu0 %v1998
    %2143 = vmatpush.msra.mxu0 %v1994
    %2144 = vmatpush.msra.mxu0 %v1990
    %2145 = vmatpush.msra.mxu0 %v1986
    %2146 = vmatpush.msra.mxu0 %v1982
    %2147 = vmatpush.msra.mxu0 %v1978
    %2148 = vmatpush.msra.mxu0 %v1974
    %2149 = vmatpush.msra.mxu0 %v1970
    %2150 = vmatpush.msra.mxu0 %v1966
    %2151 = vmatpush.msra.mxu0 %v1962
    %2152 = vmatmul.f32.gmra.mxu0 %v2050
    %v2153 = vpop.f32.mrf.mxu0
    %v2154 = vadd.f32 %v2113, %v2153
    %2155 = vmatmul.f32.gmra.mxu0 %v2054
    %v2156 = vpop.f32.mrf.mxu0
    %v2157 = vadd.f32 %v2116, %v2156
    %2158 = vmatmul.f32.gmra.mxu0 %v2058
    %v2159 = vpop.f32.mrf.mxu0
    %v2160 = vadd.f32 %v2119, %v2159
    %2161 = vmatmul.f32.gmra.mxu0 %v2062
    %v2162 = vpop.f32.mrf.mxu0
    %v2163 = vadd.f32 %v2122, %v2162
    %2164 = vmatmul.f32.gmra.mxu0 %v2066
    %v2165 = vpop.f32.mrf.mxu0
    %v2166 = vadd.f32 %v2125, %v2165
    %2167 = vmatmul.f32.gmra.mxu0 %v2070
    %v2168 = vpop.f32.mrf.mxu0
    %v2169 = vadd.f32 %v2128, %v2168
    %2170 = vmatmul.f32.gmra.mxu0 %v2074
    %v2171 = vpop.f32.mrf.mxu0
    %v2172 = vadd.f32 %v2131, %v2171
    %2173 = vmatmul.f32.gmra.mxu0 %v2078
    %v2174 = vpop.f32.mrf.mxu0
    %v2175 = vadd.f32 %v2134, %v2174
    %2176 = vdwg.mxu0
    %2177 = vmatpush.msra.mxu0 %v1959
    %2178 = vmatpush.msra.mxu0 %v1955
    %2179 = vmatpush.msra.mxu0 %v1951
    %2180 = vmatpush.msra.mxu0 %v1947
    %2181 = vmatpush.msra.mxu0 %v1943
    %2182 = vmatpush.msra.mxu0 %v1939
    %2183 = vmatpush.msra.mxu0 %v1935
    %2184 = vmatpush.msra.mxu0 %v1931
    %2185 = vmatpush.msra.mxu0 %v1927
    %2186 = vmatpush.msra.mxu0 %v1923
    %2187 = vmatpush.msra.mxu0 %v1919
    %2188 = vmatpush.msra.mxu0 %v1915
    %2189 = vmatpush.msra.mxu0 %v1911
    %2190 = vmatpush.msra.mxu0 %v1907
    %2191 = vmatpush.msra.mxu0 %v1903
    %2192 = vmatpush.msra.mxu0 %v1899
    %2193 = vmatmul.f32.gmra.mxu0 %v2047
    %v2194 = vpop.f32.mrf.mxu0
    %v2195 = vadd.f32 0.0, %v2194
    %2196 = vmatmul.f32.gmra.mxu0 %v2052
    %v2197 = vpop.f32.mrf.mxu0
    %v2198 = vadd.f32 0.0, %v2197
    %2199 = vmatmul.f32.gmra.mxu0 %v2056
    %v2200 = vpop.f32.mrf.mxu0
    %v2201 = vadd.f32 0.0, %v2200
    %2202 = vmatmul.f32.gmra.mxu0 %v2060
    %v2203 = vpop.f32.mrf.mxu0
    %v2204 = vadd.f32 0.0, %v2203
    %2205 = vmatmul.f32.gmra.mxu0 %v2064
    %v2206 = vpop.f32.mrf.mxu0
    %v2207 = vadd.f32 0.0, %v2206
    %2208 = vmatmul.f32.gmra.mxu0 %v2068
    %v2209 = vpop.f32.mrf.mxu0
    %v2210 = vadd.f32 0.0, %v2209
    %2211 = vmatmul.f32.gmra.mxu0 %v2072
    %v2212 = vpop.f32.mrf.mxu0
    %v2213 = vadd.f32 0.0, %v2212
    %2214 = vmatmul.f32.gmra.mxu0 %v2076
    %v2215 = vpop.f32.mrf.mxu0
    %v2216 = vadd.f32 0.0, %v2215
    %2217 = vdwg.mxu0
    %2218 = vmatpush.msra.mxu0 %v2023
    %2219 = vmatpush.msra.mxu0 %v2019
    %2220 = vmatpush.msra.mxu0 %v2015
    %2221 = vmatpush.msra.mxu0 %v2011
    %2222 = vmatpush.msra.mxu0 %v2007
    %2223 = vmatpush.msra.mxu0 %v2003
    %2224 = vmatpush.msra.mxu0 %v1999
    %2225 = vmatpush.msra.mxu0 %v1995
    %2226 = vmatpush.msra.mxu0 %v1991
    %2227 = vmatpush.msra.mxu0 %v1987
    %2228 = vmatpush.msra.mxu0 %v1983
    %2229 = vmatpush.msra.mxu0 %v1979
    %2230 = vmatpush.msra.mxu0 %v1975
    %2231 = vmatpush.msra.mxu0 %v1971
    %2232 = vmatpush.msra.mxu0 %v1967
    %2233 = vmatpush.msra.mxu0 %v1963
    %2234 = vmatmul.f32.gmra.mxu0 %v2050
    %v2235 = vpop.f32.mrf.mxu0
    %v2236 = vadd.f32 %v2195, %v2235
    %2237 = vmatmul.f32.gmra.mxu0 %v2054
    %v2238 = vpop.f32.mrf.mxu0
    %v2239 = vadd.f32 %v2198, %v2238
    %2240 = vmatmul.f32.gmra.mxu0 %v2058
    %v2241 = vpop.f32.mrf.mxu0
    %v2242 = vadd.f32 %v2201, %v2241
    %2243 = vmatmul.f32.gmra.mxu0 %v2062
    %v2244 = vpop.f32.mrf.mxu0
    %v2245 = vadd.f32 %v2204, %v2244
    %2246 = vmatmul.f32.gmra.mxu0 %v2066
    %v2247 = vpop.f32.mrf.mxu0
    %v2248 = vadd.f32 %v2207, %v2247
    %2249 = vmatmul.f32.gmra.mxu0 %v2070
    %v2250 = vpop.f32.mrf.mxu0
    %v2251 = vadd.f32 %v2210, %v2250
    %2252 = vmatmul.f32.gmra.mxu0 %v2074
    %v2253 = vpop.f32.mrf.mxu0
    %v2254 = vadd.f32 %v2213, %v2253
    %2255 = vmatmul.f32.gmra.mxu0 %v2078
    %v2256 = vpop.f32.mrf.mxu0
    %v2257 = vadd.f32 %v2216, %v2256
    %2258 = vdwg.mxu0
    %2259 = vmatpush.msra.mxu0 %v1960
    %2260 = vmatpush.msra.mxu0 %v1956
    %2261 = vmatpush.msra.mxu0 %v1952
    %2262 = vmatpush.msra.mxu0 %v1948
    %2263 = vmatpush.msra.mxu0 %v1944
    %2264 = vmatpush.msra.mxu0 %v1940
    %2265 = vmatpush.msra.mxu0 %v1936
    %2266 = vmatpush.msra.mxu0 %v1932
    %2267 = vmatpush.msra.mxu0 %v1928
    %2268 = vmatpush.msra.mxu0 %v1924
    %2269 = vmatpush.msra.mxu0 %v1920
    %2270 = vmatpush.msra.mxu0 %v1916
    %2271 = vmatpush.msra.mxu0 %v1912
    %2272 = vmatpush.msra.mxu0 %v1908
    %2273 = vmatpush.msra.mxu0 %v1904
    %2274 = vmatpush.msra.mxu0 %v1900
    %2275 = vmatmul.f32.gmra.mxu0 %v2047
    %v2276 = vpop.f32.mrf.mxu0
    %v2277 = vadd.f32 0.0, %v2276
    %2278 = vmatmul.f32.gmra.mxu0 %v2052
    %v2279 = vpop.f32.mrf.mxu0
    %v2280 = vadd.f32 0.0, %v2279
    %2281 = vmatmul.f32.gmra.mxu0 %v2056
    %v2282 = vpop.f32.mrf.mxu0
    %v2283 = vadd.f32 0.0, %v2282
    %2284 = vmatmul.f32.gmra.mxu0 %v2060
    %v2285 = vpop.f32.mrf.mxu0
    %v2286 = vadd.f32 0.0, %v2285
    %2287 = vmatmul.f32.gmra.mxu0 %v2064
    %v2288 = vpop.f32.mrf.mxu0
    %v2289 = vadd.f32 0.0, %v2288
    %2290 = vmatmul.f32.gmra.mxu0 %v2068
    %v2291 = vpop.f32.mrf.mxu0
    %v2292 = vadd.f32 0.0, %v2291
    %2293 = vmatmul.f32.gmra.mxu0 %v2072
    %v2294 = vpop.f32.mrf.mxu0
    %v2295 = vadd.f32 0.0, %v2294
    %2296 = vmatmul.f32.gmra.mxu0 %v2076
    %v2297 = vpop.f32.mrf.mxu0
    %v2298 = vadd.f32 0.0, %v2297
    %2299 = vdwg.mxu0
    %2300 = vmatpush.msra.mxu0 %v2024
    %2301 = vmatpush.msra.mxu0 %v2020
    %2302 = vmatpush.msra.mxu0 %v2016
    %2303 = vmatpush.msra.mxu0 %v2012
    %2304 = vmatpush.msra.mxu0 %v2008
    %2305 = vmatpush.msra.mxu0 %v2004
    %2306 = vmatpush.msra.mxu0 %v2000
    %2307 = vmatpush.msra.mxu0 %v1996
    %2308 = vmatpush.msra.mxu0 %v1992
    %2309 = vmatpush.msra.mxu0 %v1988
    %2310 = vmatpush.msra.mxu0 %v1984
    %2311 = vmatpush.msra.mxu0 %v1980
    %2312 = vmatpush.msra.mxu0 %v1976
    %2313 = vmatpush.msra.mxu0 %v1972
    %2314 = vmatpush.msra.mxu0 %v1968
    %2315 = vmatpush.msra.mxu0 %v1964
    %2316 = vmatmul.f32.gmra.mxu0 %v2050
    %v2317 = vpop.f32.mrf.mxu0
    %v2318 = vadd.f32 %v2277, %v2317
    %2319 = vmatmul.f32.gmra.mxu0 %v2054
    %v2320 = vpop.f32.mrf.mxu0
    %v2321 = vadd.f32 %v2280, %v2320
    %2322 = vmatmul.f32.gmra.mxu0 %v2058
    %v2323 = vpop.f32.mrf.mxu0
    %v2324 = vadd.f32 %v2283, %v2323
    %2325 = vmatmul.f32.gmra.mxu0 %v2062
    %v2326 = vpop.f32.mrf.mxu0
    %v2327 = vadd.f32 %v2286, %v2326
    %2328 = vmatmul.f32.gmra.mxu0 %v2066
    %v2329 = vpop.f32.mrf.mxu0
    %v2330 = vadd.f32 %v2289, %v2329
    %2331 = vmatmul.f32.gmra.mxu0 %v2070
    %v2332 = vpop.f32.mrf.mxu0
    %v2333 = vadd.f32 %v2292, %v2332
    %2334 = vmatmul.f32.gmra.mxu0 %v2074
    %v2335 = vpop.f32.mrf.mxu0
    %v2336 = vadd.f32 %v2295, %v2335
    %2337 = vmatmul.f32.gmra.mxu0 %v2078
    %v2338 = vpop.f32.mrf.mxu0
    %v2339 = vadd.f32 %v2298, %v2338
    %2340 = vdwg.mxu0
    %2341 = vmatpush.msra.mxu0 %v1961
    %2342 = vmatpush.msra.mxu0 %v1957
    %2343 = vmatpush.msra.mxu0 %v1953
    %2344 = vmatpush.msra.mxu0 %v1949
    %2345 = vmatpush.msra.mxu0 %v1945
    %2346 = vmatpush.msra.mxu0 %v1941
    %2347 = vmatpush.msra.mxu0 %v1937
    %2348 = vmatpush.msra.mxu0 %v1933
    %2349 = vmatpush.msra.mxu0 %v1929
    %2350 = vmatpush.msra.mxu0 %v1925
    %2351 = vmatpush.msra.mxu0 %v1921
    %2352 = vmatpush.msra.mxu0 %v1917
    %2353 = vmatpush.msra.mxu0 %v1913
    %2354 = vmatpush.msra.mxu0 %v1909
    %2355 = vmatpush.msra.mxu0 %v1905
    %2356 = vmatpush.msra.mxu0 %v1901
    %2357 = vmatmul.f32.gmra.mxu0 %v2047
    %v2358 = vpop.f32.mrf.mxu0
    %v2359 = vadd.f32 0.0, %v2358
    %2360 = vmatmul.f32.gmra.mxu0 %v2052
    %v2361 = vpop.f32.mrf.mxu0
    %v2362 = vadd.f32 0.0, %v2361
    %2363 = vmatmul.f32.gmra.mxu0 %v2056
    %v2364 = vpop.f32.mrf.mxu0
    %v2365 = vadd.f32 0.0, %v2364
    %2366 = vmatmul.f32.gmra.mxu0 %v2060
    %v2367 = vpop.f32.mrf.mxu0
    %v2368 = vadd.f32 0.0, %v2367
    %2369 = vmatmul.f32.gmra.mxu0 %v2064
    %v2370 = vpop.f32.mrf.mxu0
    %v2371 = vadd.f32 0.0, %v2370
    %2372 = vmatmul.f32.gmra.mxu0 %v2068
    %v2373 = vpop.f32.mrf.mxu0
    %v2374 = vadd.f32 0.0, %v2373
    %2375 = vmatmul.f32.gmra.mxu0 %v2072
    %v2376 = vpop.f32.mrf.mxu0
    %v2377 = vadd.f32 0.0, %v2376
    %2378 = vmatmul.f32.gmra.mxu0 %v2076
    %v2379 = vpop.f32.mrf.mxu0
    %v2380 = vadd.f32 0.0, %v2379
    %2381 = vdwg.mxu0
    %2382 = vmatpush.msra.mxu0 %v2025
    %2383 = vmatpush.msra.mxu0 %v2021
    %2384 = vmatpush.msra.mxu0 %v2017
    %2385 = vmatpush.msra.mxu0 %v2013
    %2386 = vmatpush.msra.mxu0 %v2009
    %2387 = vmatpush.msra.mxu0 %v2005
    %2388 = vmatpush.msra.mxu0 %v2001
    %2389 = vmatpush.msra.mxu0 %v1997
    %2390 = vmatpush.msra.mxu0 %v1993
    %2391 = vmatpush.msra.mxu0 %v1989
    %2392 = vmatpush.msra.mxu0 %v1985
    %2393 = vmatpush.msra.mxu0 %v1981
    %2394 = vmatpush.msra.mxu0 %v1977
    %2395 = vmatpush.msra.mxu0 %v1973
    %2396 = vmatpush.msra.mxu0 %v1969
    %2397 = vmatpush.msra.mxu0 %v1965
    %2398 = vmatmul.f32.gmra.mxu0 %v2050
    %v2399 = vpop.f32.mrf.mxu0
    %v2400 = vadd.f32 %v2359, %v2399
    %2401 = vmatmul.f32.gmra.mxu0 %v2054
    %v2402 = vpop.f32.mrf.mxu0
    %v2403 = vadd.f32 %v2362, %v2402
    %2404 = vmatmul.f32.gmra.mxu0 %v2058
    %v2405 = vpop.f32.mrf.mxu0
    %v2406 = vadd.f32 %v2365, %v2405
    %2407 = vmatmul.f32.gmra.mxu0 %v2062
    %v2408 = vpop.f32.mrf.mxu0
    %v2409 = vadd.f32 %v2368, %v2408
    %2410 = vmatmul.f32.gmra.mxu0 %v2066
    %v2411 = vpop.f32.mrf.mxu0
    %v2412 = vadd.f32 %v2371, %v2411
    %2413 = vmatmul.f32.gmra.mxu0 %v2070
    %v2414 = vpop.f32.mrf.mxu0
    %v2415 = vadd.f32 %v2374, %v2414
    %2416 = vmatmul.f32.gmra.mxu0 %v2074
    %v2417 = vpop.f32.mrf.mxu0
    %v2418 = vadd.f32 %v2377, %v2417
    %2419 = vmatmul.f32.gmra.mxu0 %v2078
    %v2420 = vpop.f32.mrf.mxu0
    %v2421 = vadd.f32 %v2380, %v2420
    %2422 = vdwg.mxu0
    %2423 = vmatpush.msra.mxu0 %v1797
    %2424 = vmatpush.msra.mxu0 %v1793
    %2425 = vmatpush.msra.mxu0 %v1789
    %2426 = vmatpush.msra.mxu0 %v1785
    %2427 = vmatpush.msra.mxu0 %v1781
    %2428 = vmatpush.msra.mxu0 %v1777
    %2429 = vmatpush.msra.mxu0 %v1773
    %2430 = vmatpush.msra.mxu0 %v1769
    %2431 = vmatpush.msra.mxu0 %v1765
    %2432 = vmatpush.msra.mxu0 %v1761
    %2433 = vmatpush.msra.mxu0 %v1757
    %2434 = vmatpush.msra.mxu0 %v1753
    %2435 = vmatpush.msra.mxu0 %v1749
    %2436 = vmatpush.msra.mxu0 %v1745
    %2437 = vmatpush.msra.mxu0 %v1741
    %2438 = vmatpush.msra.mxu0 %v1737
    %2439 = vmatmul.f32.gmra.mxu0 %v1721
    %v2440 = vpop.f32.mrf.mxu0
    %v2441 = vadd.f32 %v2154, %v2440
    %2442 = vmatmul.f32.gmra.mxu0 %v1723
    %v2443 = vpop.f32.mrf.mxu0
    %v2444 = vadd.f32 %v2157, %v2443
    %2445 = vmatmul.f32.gmra.mxu0 %v1725
    %v2446 = vpop.f32.mrf.mxu0
    %v2447 = vadd.f32 %v2160, %v2446
    %2448 = vmatmul.f32.gmra.mxu0 %v1727
    %v2449 = vpop.f32.mrf.mxu0
    %v2450 = vadd.f32 %v2163, %v2449
    %2451 = vmatmul.f32.gmra.mxu0 %v1729
    %v2452 = vpop.f32.mrf.mxu0
    %v2453 = vadd.f32 %v2166, %v2452
    %2454 = vmatmul.f32.gmra.mxu0 %v1731
    %v2455 = vpop.f32.mrf.mxu0
    %v2456 = vadd.f32 %v2169, %v2455
    %2457 = vmatmul.f32.gmra.mxu0 %v1733
    %v2458 = vpop.f32.mrf.mxu0
    %v2459 = vadd.f32 %v2172, %v2458
    %2460 = vmatmul.f32.gmra.mxu0 %v1735
    %v2461 = vpop.f32.mrf.mxu0
    %v2462 = vadd.f32 %v2175, %v2461
    %2463 = vdwg.mxu0
    %2464 = vmatpush.msra.mxu0 %v1861
    %2465 = vmatpush.msra.mxu0 %v1857
    %2466 = vmatpush.msra.mxu0 %v1853
    %2467 = vmatpush.msra.mxu0 %v1849
    %2468 = vmatpush.msra.mxu0 %v1845
    %2469 = vmatpush.msra.mxu0 %v1841
    %2470 = vmatpush.msra.mxu0 %v1837
    %2471 = vmatpush.msra.mxu0 %v1833
    %2472 = vmatpush.msra.mxu0 %v1829
    %2473 = vmatpush.msra.mxu0 %v1825
    %2474 = vmatpush.msra.mxu0 %v1821
    %2475 = vmatpush.msra.mxu0 %v1817
    %2476 = vmatpush.msra.mxu0 %v1813
    %2477 = vmatpush.msra.mxu0 %v1809
    %2478 = vmatpush.msra.mxu0 %v1805
    %2479 = vmatpush.msra.mxu0 %v1801
    %2480 = vmatmul.f32.gmra.mxu0 %v1722
    %v2481 = vpop.f32.mrf.mxu0
    %v2482 = vadd.f32 %v2441, %v2481
    %2483 = vmatmul.f32.gmra.mxu0 %v1724
    %v2484 = vpop.f32.mrf.mxu0
    %v2485 = vadd.f32 %v2444, %v2484
    %2486 = vmatmul.f32.gmra.mxu0 %v1726
    %v2487 = vpop.f32.mrf.mxu0
    %v2488 = vadd.f32 %v2447, %v2487
    %2489 = vmatmul.f32.gmra.mxu0 %v1728
    %v2490 = vpop.f32.mrf.mxu0
    %v2491 = vadd.f32 %v2450, %v2490
    %2492 = vmatmul.f32.gmra.mxu0 %v1730
    %v2493 = vpop.f32.mrf.mxu0
    %v2494 = vadd.f32 %v2453, %v2493
    %2495 = vmatmul.f32.gmra.mxu0 %v1732
    %v2496 = vpop.f32.mrf.mxu0
    %v2497 = vadd.f32 %v2456, %v2496
    %2498 = vmatmul.f32.gmra.mxu0 %v1734
    %v2499 = vpop.f32.mrf.mxu0
    %v2500 = vadd.f32 %v2459, %v2499
    %2501 = vmatmul.f32.gmra.mxu0 %v1736
    %v2502 = vpop.f32.mrf.mxu0
    %v2503 = vadd.f32 %v2462, %v2502
    %2504 = vdwg.mxu0
    %2505 = vmatpush.msra.mxu0 %v1798
    %2506 = vmatpush.msra.mxu0 %v1794
    %2507 = vmatpush.msra.mxu0 %v1790
    %2508 = vmatpush.msra.mxu0 %v1786
    %2509 = vmatpush.msra.mxu0 %v1782
    %2510 = vmatpush.msra.mxu0 %v1778
    %2511 = vmatpush.msra.mxu0 %v1774
    %2512 = vmatpush.msra.mxu0 %v1770
    %2513 = vmatpush.msra.mxu0 %v1766
    %2514 = vmatpush.msra.mxu0 %v1762
    %2515 = vmatpush.msra.mxu0 %v1758
    %2516 = vmatpush.msra.mxu0 %v1754
    %2517 = vmatpush.msra.mxu0 %v1750
    %2518 = vmatpush.msra.mxu0 %v1746
    %2519 = vmatpush.msra.mxu0 %v1742
    %2520 = vmatpush.msra.mxu0 %v1738
    %2521 = vmatmul.f32.gmra.mxu0 %v1721
    %v2522 = vpop.f32.mrf.mxu0
    %v2523 = vadd.f32 %v2236, %v2522
    %2524 = vmatmul.f32.gmra.mxu0 %v1723
    %v2525 = vpop.f32.mrf.mxu0
    %v2526 = vadd.f32 %v2239, %v2525
    %2527 = vmatmul.f32.gmra.mxu0 %v1725
    %v2528 = vpop.f32.mrf.mxu0
    %v2529 = vadd.f32 %v2242, %v2528
    %2530 = vmatmul.f32.gmra.mxu0 %v1727
    %v2531 = vpop.f32.mrf.mxu0
    %v2532 = vadd.f32 %v2245, %v2531
    %2533 = vmatmul.f32.gmra.mxu0 %v1729
    %v2534 = vpop.f32.mrf.mxu0
    %v2535 = vadd.f32 %v2248, %v2534
    %2536 = vmatmul.f32.gmra.mxu0 %v1731
    %v2537 = vpop.f32.mrf.mxu0
    %v2538 = vadd.f32 %v2251, %v2537
    %2539 = vmatmul.f32.gmra.mxu0 %v1733
    %v2540 = vpop.f32.mrf.mxu0
    %v2541 = vadd.f32 %v2254, %v2540
    %2542 = vmatmul.f32.gmra.mxu0 %v1735
    %v2543 = vpop.f32.mrf.mxu0
    %v2544 = vadd.f32 %v2257, %v2543
    %2545 = vdwg.mxu0
    %2546 = vmatpush.msra.mxu0 %v1862
    %2547 = vmatpush.msra.mxu0 %v1858
    %2548 = vmatpush.msra.mxu0 %v1854
    %2549 = vmatpush.msra.mxu0 %v1850
    %2550 = vmatpush.msra.mxu0 %v1846
    %2551 = vmatpush.msra.mxu0 %v1842
    %2552 = vmatpush.msra.mxu0 %v1838
    %2553 = vmatpush.msra.mxu0 %v1834
    %2554 = vmatpush.msra.mxu0 %v1830
    %2555 = vmatpush.msra.mxu0 %v1826
    %2556 = vmatpush.msra.mxu0 %v1822
    %2557 = vmatpush.msra.mxu0 %v1818
    %2558 = vmatpush.msra.mxu0 %v1814
    %2559 = vmatpush.msra.mxu0 %v1810
    %2560 = vmatpush.msra.mxu0 %v1806
    %2561 = vmatpush.msra.mxu0 %v1802
    %2562 = vmatmul.f32.gmra.mxu0 %v1722
    %v2563 = vpop.f32.mrf.mxu0
    %v2564 = vadd.f32 %v2523, %v2563
    %2565 = vmatmul.f32.gmra.mxu0 %v1724
    %v2566 = vpop.f32.mrf.mxu0
    %v2567 = vadd.f32 %v2526, %v2566
    %2568 = vmatmul.f32.gmra.mxu0 %v1726
    %v2569 = vpop.f32.mrf.mxu0
    %v2570 = vadd.f32 %v2529, %v2569
    %2571 = vmatmul.f32.gmra.mxu0 %v1728
    %v2572 = vpop.f32.mrf.mxu0
    %v2573 = vadd.f32 %v2532, %v2572
    %2574 = vmatmul.f32.gmra.mxu0 %v1730
    %v2575 = vpop.f32.mrf.mxu0
    %v2576 = vadd.f32 %v2535, %v2575
    %2577 = vmatmul.f32.gmra.mxu0 %v1732
    %v2578 = vpop.f32.mrf.mxu0
    %v2579 = vadd.f32 %v2538, %v2578
    %2580 = vmatmul.f32.gmra.mxu0 %v1734
    %v2581 = vpop.f32.mrf.mxu0
    %v2582 = vadd.f32 %v2541, %v2581
    %2583 = vmatmul.f32.gmra.mxu0 %v1736
    %v2584 = vpop.f32.mrf.mxu0
    %v2585 = vadd.f32 %v2544, %v2584
    %2586 = vdwg.mxu0
    %2587 = vmatpush.msra.mxu0 %v1799
    %2588 = vmatpush.msra.mxu0 %v1795
    %2589 = vmatpush.msra.mxu0 %v1791
    %2590 = vmatpush.msra.mxu0 %v1787
    %2591 = vmatpush.msra.mxu0 %v1783
    %2592 = vmatpush.msra.mxu0 %v1779
    %2593 = vmatpush.msra.mxu0 %v1775
    %2594 = vmatpush.msra.mxu0 %v1771
    %2595 = vmatpush.msra.mxu0 %v1767
    %2596 = vmatpush.msra.mxu0 %v1763
    %2597 = vmatpush.msra.mxu0 %v1759
    %2598 = vmatpush.msra.mxu0 %v1755
    %2599 = vmatpush.msra.mxu0 %v1751
    %2600 = vmatpush.msra.mxu0 %v1747
    %2601 = vmatpush.msra.mxu0 %v1743
    %2602 = vmatpush.msra.mxu0 %v1739
    %2603 = vmatmul.f32.gmra.mxu0 %v1721
    %v2604 = vpop.f32.mrf.mxu0
    %v2605 = vadd.f32 %v2318, %v2604
    %2606 = vmatmul.f32.gmra.mxu0 %v1723
    %v2607 = vpop.f32.mrf.mxu0
    %v2608 = vadd.f32 %v2321, %v2607
    %2609 = vmatmul.f32.gmra.mxu0 %v1725
    %v2610 = vpop.f32.mrf.mxu0
    %v2611 = vadd.f32 %v2324, %v2610
    %2612 = vmatmul.f32.gmra.mxu0 %v1727
    %v2613 = vpop.f32.mrf.mxu0
    %v2614 = vadd.f32 %v2327, %v2613
    %2615 = vmatmul.f32.gmra.mxu0 %v1729
    %v2616 = vpop.f32.mrf.mxu0
    %v2617 = vadd.f32 %v2330, %v2616
    %2618 = vmatmul.f32.gmra.mxu0 %v1731
    %v2619 = vpop.f32.mrf.mxu0
    %v2620 = vadd.f32 %v2333, %v2619
    %2621 = vmatmul.f32.gmra.mxu0 %v1733
    %v2622 = vpop.f32.mrf.mxu0
    %v2623 = vadd.f32 %v2336, %v2622
    %2624 = vmatmul.f32.gmra.mxu0 %v1735
    %v2625 = vpop.f32.mrf.mxu0
    %v2626 = vadd.f32 %v2339, %v2625
    %2627 = vdwg.mxu0
    %2628 = vmatpush.msra.mxu0 %v1863
    %2629 = vmatpush.msra.mxu0 %v1859
    %2630 = vmatpush.msra.mxu0 %v1855
    %2631 = vmatpush.msra.mxu0 %v1851
    %2632 = vmatpush.msra.mxu0 %v1847
    %2633 = vmatpush.msra.mxu0 %v1843
    %2634 = vmatpush.msra.mxu0 %v1839
    %2635 = vmatpush.msra.mxu0 %v1835
    %2636 = vmatpush.msra.mxu0 %v1831
    %2637 = vmatpush.msra.mxu0 %v1827
    %2638 = vmatpush.msra.mxu0 %v1823
    %2639 = vmatpush.msra.mxu0 %v1819
    %2640 = vmatpush.msra.mxu0 %v1815
    %2641 = vmatpush.msra.mxu0 %v1811
    %2642 = vmatpush.msra.mxu0 %v1807
    %2643 = vmatpush.msra.mxu0 %v1803
    %2644 = vmatmul.f32.gmra.mxu0 %v1722
    %v2645 = vpop.f32.mrf.mxu0
    %v2646 = vadd.f32 %v2605, %v2645
    %2647 = vmatmul.f32.gmra.mxu0 %v1724
    %v2648 = vpop.f32.mrf.mxu0
    %v2649 = vadd.f32 %v2608, %v2648
    %2650 = vmatmul.f32.gmra.mxu0 %v1726
    %v2651 = vpop.f32.mrf.mxu0
    %v2652 = vadd.f32 %v2611, %v2651
    %2653 = vmatmul.f32.gmra.mxu0 %v1728
    %v2654 = vpop.f32.mrf.mxu0
    %v2655 = vadd.f32 %v2614, %v2654
    %2656 = vmatmul.f32.gmra.mxu0 %v1730
    %v2657 = vpop.f32.mrf.mxu0
    %v2658 = vadd.f32 %v2617, %v2657
    %2659 = vmatmul.f32.gmra.mxu0 %v1732
    %v2660 = vpop.f32.mrf.mxu0
    %v2661 = vadd.f32 %v2620, %v2660
    %2662 = vmatmul.f32.gmra.mxu0 %v1734
    %v2663 = vpop.f32.mrf.mxu0
    %v2664 = vadd.f32 %v2623, %v2663
    %2665 = vmatmul.f32.gmra.mxu0 %v1736
    %v2666 = vpop.f32.mrf.mxu0
    %v2667 = vadd.f32 %v2626, %v2666
    %2668 = vdwg.mxu0
    %2669 = vmatpush.msra.mxu0 %v1800
    %2670 = vmatpush.msra.mxu0 %v1796
    %2671 = vmatpush.msra.mxu0 %v1792
    %2672 = vmatpush.msra.mxu0 %v1788
    %2673 = vmatpush.msra.mxu0 %v1784
    %2674 = vmatpush.msra.mxu0 %v1780
    %2675 = vmatpush.msra.mxu0 %v1776
    %2676 = vmatpush.msra.mxu0 %v1772
    %2677 = vmatpush.msra.mxu0 %v1768
    %2678 = vmatpush.msra.mxu0 %v1764
    %2679 = vmatpush.msra.mxu0 %v1760
    %2680 = vmatpush.msra.mxu0 %v1756
    %2681 = vmatpush.msra.mxu0 %v1752
    %2682 = vmatpush.msra.mxu0 %v1748
    %2683 = vmatpush.msra.mxu0 %v1744
    %2684 = vmatpush.msra.mxu0 %v1740
    %2685 = vmatmul.f32.gmra.mxu0 %v1721
    %v2686 = vpop.f32.mrf.mxu0
    %v2687 = vadd.f32 %v2400, %v2686
    %2688 = vmatmul.f32.gmra.mxu0 %v1723
    %v2689 = vpop.f32.mrf.mxu0
    %v2690 = vadd.f32 %v2403, %v2689
    %2691 = vmatmul.f32.gmra.mxu0 %v1725
    %v2692 = vpop.f32.mrf.mxu0
    %v2693 = vadd.f32 %v2406, %v2692
    %2694 = vmatmul.f32.gmra.mxu0 %v1727
    %v2695 = vpop.f32.mrf.mxu0
    %v2696 = vadd.f32 %v2409, %v2695
    %2697 = vmatmul.f32.gmra.mxu0 %v1729
    %v2698 = vpop.f32.mrf.mxu0
    %v2699 = vadd.f32 %v2412, %v2698
    %2700 = vmatmul.f32.gmra.mxu0 %v1731
    %v2701 = vpop.f32.mrf.mxu0
    %v2702 = vadd.f32 %v2415, %v2701
    %2703 = vmatmul.f32.gmra.mxu0 %v1733
    %v2704 = vpop.f32.mrf.mxu0
    %v2705 = vadd.f32 %v2418, %v2704
    %2706 = vmatmul.f32.gmra.mxu0 %v1735
    %v2707 = vpop.f32.mrf.mxu0
    %v2708 = vadd.f32 %v2421, %v2707
    %2709 = vdwg.mxu0
    %2710 = vmatpush.msra.mxu0 %v1864
    %2711 = vmatpush.msra.mxu0 %v1860
    %2712 = vmatpush.msra.mxu0 %v1856
    %2713 = vmatpush.msra.mxu0 %v1852
    %2714 = vmatpush.msra.mxu0 %v1848
    %2715 = vmatpush.msra.mxu0 %v1844
    %2716 = vmatpush.msra.mxu0 %v1840
    %2717 = vmatpush.msra.mxu0 %v1836
    %2718 = vmatpush.msra.mxu0 %v1832
    %2719 = vmatpush.msra.mxu0 %v1828
    %2720 = vmatpush.msra.mxu0 %v1824
    %2721 = vmatpush.msra.mxu0 %v1820
    %2722 = vmatpush.msra.mxu0 %v1816
    %2723 = vmatpush.msra.mxu0 %v1812
    %2724 = vmatpush.msra.mxu0 %v1808
    %2725 = vmatpush.msra.mxu0 %v1804
    %2726 = vmatmul.f32.gmra.mxu0 %v1722
    %v2727 = vpop.f32.mrf.mxu0
    %v2728 = vadd.f32 %v2687, %v2727
    %2729 = vmatmul.f32.gmra.mxu0 %v1724
    %v2730 = vpop.f32.mrf.mxu0
    %v2731 = vadd.f32 %v2690, %v2730
    %2732 = vmatmul.f32.gmra.mxu0 %v1726
    %v2733 = vpop.f32.mrf.mxu0
    %v2734 = vadd.f32 %v2693, %v2733
    %2735 = vmatmul.f32.gmra.mxu0 %v1728
    %v2736 = vpop.f32.mrf.mxu0
    %v2737 = vadd.f32 %v2696, %v2736
    %2738 = vmatmul.f32.gmra.mxu0 %v1730
    %v2739 = vpop.f32.mrf.mxu0
    %v2740 = vadd.f32 %v2699, %v2739
    %2741 = vmatmul.f32.gmra.mxu0 %v1732
    %v2742 = vpop.f32.mrf.mxu0
    %v2743 = vadd.f32 %v2702, %v2742
    %2744 = vmatmul.f32.gmra.mxu0 %v1734
    %v2745 = vpop.f32.mrf.mxu0
    %v2746 = vadd.f32 %v2705, %v2745
    %2747 = vmatmul.f32.gmra.mxu0 %v1736
    %v2748 = vpop.f32.mrf.mxu0
    %v2749 = vadd.f32 %v2708, %v2748
    %2750 = vdwg.mxu0
    %v2751 = vld [vmem:[#allocation2] sm:$0xf0]
    %v2752 = vld [vmem:[#allocation2 + $0x8] sm:$0xf0]
    %v2753 = vld [vmem:[#allocation2 + $0x80] sm:$0xf]
    %v2754 = vld [vmem:[#allocation2 + $0x88] sm:$0xf]
    %v2755 = vld [vmem:[#allocation2] sm:$0xe0]
    %v2756 = vld [vmem:[#allocation2 + $0x8] sm:$0xe0]
    %v2757 = vld [vmem:[#allocation2 + $0x80] sm:$0x1f]
    %v2758 = vld [vmem:[#allocation2 + $0x88] sm:$0x1f]
    %v2763 = vrot.slane %v2755, 1
    %v2764 = vsel %vm1670, %v2763, %v1672
    %v2765 = vrot.slane %v2756, 1
    %v2766 = vsel %vm1670, %v2765, %v1675
    %v2767 = vrot.slane %v2757, 1
    %v2768 = vsel %vm1670, %v1697, %v2767
    %v2769 = vrot.slane %v2758, 1
    %v2770 = vsel %vm1670, %v1699, %v2769
    %v2777 = vmax.f32 %v2751, %v2764
    %v2778 = vmax.f32 %v2752, %v2766
    %v2779 = vmax.f32 %v1646, %v2768
    %v2780 = vmax.f32 %v1647, %v2770
    %v2781 = vmax.f32 %v2753, %v2767
    %v2782 = vmax.f32 %v2754, %v2769
    %s2783 = scalar_lea.vmem [#allocation9], 2048
    %v2784 = vld [vmem:[%s2783] sm:$0xff]
    %v2785 = vld [vmem:[%s2783 + $0x8] sm:$0xff]
    %v2786 = vld [vmem:[%s2783 + $0x10] sm:$0xff]
    %v2787 = vld [vmem:[%s2783 + $0x18] sm:$0xff]
    %v2788 = vld [vmem:[%s2783 + $0x20] sm:$0xff]
    %v2789 = vld [vmem:[%s2783 + $0x28] sm:$0xff]
    %v2790 = vld [vmem:[%s2783 + $0x30] sm:$0xff]
    %v2791 = vld [vmem:[%s2783 + $0x38] sm:$0xff]
    %v2792 = vld [vmem:[%s2783 + $0x40] sm:$0xff]
    %v2793 = vld [vmem:[%s2783 + $0x48] sm:$0xff]
    %v2794 = vld [vmem:[%s2783 + $0x50] sm:$0xff]
    %v2795 = vld [vmem:[%s2783 + $0x58] sm:$0xff]
    %v2796 = vld [vmem:[%s2783 + $0x60] sm:$0xff]
    %v2797 = vld [vmem:[%s2783 + $0x68] sm:$0xff]
    %v2798 = vld [vmem:[%s2783 + $0x70] sm:$0xff]
    %v2799 = vld [vmem:[%s2783 + $0x78] sm:$0xff]
    %v2800 = vld [vmem:[%s2783 + $0x80] sm:$0xff]
    %v2801 = vld [vmem:[%s2783 + $0x88] sm:$0xff]
    %v2802 = vld [vmem:[%s2783 + $0x90] sm:$0xff]
    %v2803 = vld [vmem:[%s2783 + $0x98] sm:$0xff]
    %v2804 = vld [vmem:[%s2783 + $0xa0] sm:$0xff]
    %v2805 = vld [vmem:[%s2783 + $0xa8] sm:$0xff]
    %v2806 = vld [vmem:[%s2783 + $0xb0] sm:$0xff]
    %v2807 = vld [vmem:[%s2783 + $0xb8] sm:$0xff]
    %v2808 = vld [vmem:[%s2783 + $0xc0] sm:$0xff]
    %v2809 = vld [vmem:[%s2783 + $0xc8] sm:$0xff]
    %v2810 = vld [vmem:[%s2783 + $0xd0] sm:$0xff]
    %v2811 = vld [vmem:[%s2783 + $0xd8] sm:$0xff]
    %v2812 = vld [vmem:[%s2783 + $0xe0] sm:$0xff]
    %v2813 = vld [vmem:[%s2783 + $0xe8] sm:$0xff]
    %v2814 = vld [vmem:[%s2783 + $0xf0] sm:$0xff]
    %v2815 = vld [vmem:[%s2783 + $0xf8] sm:$0xff]
    %v2816 = vld [vmem:[%s2783 + $0x100] sm:$0xff]
    %v2817 = vld [vmem:[%s2783 + $0x108] sm:$0xff]
    %v2818 = vld [vmem:[%s2783 + $0x110] sm:$0xff]
    %v2819 = vld [vmem:[%s2783 + $0x118] sm:$0xff]
    %v2820 = vld [vmem:[%s2783 + $0x120] sm:$0xff]
    %v2821 = vld [vmem:[%s2783 + $0x128] sm:$0xff]
    %v2822 = vld [vmem:[%s2783 + $0x130] sm:$0xff]
    %v2823 = vld [vmem:[%s2783 + $0x138] sm:$0xff]
    %v2824 = vld [vmem:[%s2783 + $0x140] sm:$0xff]
    %v2825 = vld [vmem:[%s2783 + $0x148] sm:$0xff]
    %v2826 = vld [vmem:[%s2783 + $0x150] sm:$0xff]
    %v2827 = vld [vmem:[%s2783 + $0x158] sm:$0xff]
    %v2828 = vld [vmem:[%s2783 + $0x160] sm:$0xff]
    %v2829 = vld [vmem:[%s2783 + $0x168] sm:$0xff]
    %v2830 = vld [vmem:[%s2783 + $0x170] sm:$0xff]
    %v2831 = vld [vmem:[%s2783 + $0x178] sm:$0xff]
    %v2832 = vld [vmem:[%s2783 + $0x180] sm:$0xff]
    %v2833 = vld [vmem:[%s2783 + $0x188] sm:$0xff]
    %v2834 = vld [vmem:[%s2783 + $0x190] sm:$0xff]
    %v2835 = vld [vmem:[%s2783 + $0x198] sm:$0xff]
    %v2836 = vld [vmem:[%s2783 + $0x1a0] sm:$0xff]
    %v2837 = vld [vmem:[%s2783 + $0x1a8] sm:$0xff]
    %v2838 = vld [vmem:[%s2783 + $0x1b0] sm:$0xff]
    %v2839 = vld [vmem:[%s2783 + $0x1b8] sm:$0xff]
    %v2840 = vld [vmem:[%s2783 + $0x1c0] sm:$0xff]
    %v2841 = vld [vmem:[%s2783 + $0x1c8] sm:$0xff]
    %v2842 = vld [vmem:[%s2783 + $0x1d0] sm:$0xff]
    %v2843 = vld [vmem:[%s2783 + $0x1d8] sm:$0xff]
    %v2844 = vld [vmem:[%s2783 + $0x1e0] sm:$0xff]
    %v2845 = vld [vmem:[%s2783 + $0x1e8] sm:$0xff]
    %v2846 = vld [vmem:[%s2783 + $0x1f0] sm:$0xff]
    %v2847 = vld [vmem:[%s2783 + $0x1f8] sm:$0xff]
    %v2848 = vld [vmem:[%s2783 + $0x200] sm:$0xff]
    %v2849 = vld [vmem:[%s2783 + $0x208] sm:$0xff]
    %v2850 = vld [vmem:[%s2783 + $0x210] sm:$0xff]
    %v2851 = vld [vmem:[%s2783 + $0x218] sm:$0xff]
    %v2852 = vld [vmem:[%s2783 + $0x220] sm:$0xff]
    %v2853 = vld [vmem:[%s2783 + $0x228] sm:$0xff]
    %v2854 = vld [vmem:[%s2783 + $0x230] sm:$0xff]
    %v2855 = vld [vmem:[%s2783 + $0x238] sm:$0xff]
    %v2856 = vld [vmem:[%s2783 + $0x240] sm:$0xff]
    %v2857 = vld [vmem:[%s2783 + $0x248] sm:$0xff]
    %v2858 = vld [vmem:[%s2783 + $0x250] sm:$0xff]
    %v2859 = vld [vmem:[%s2783 + $0x258] sm:$0xff]
    %v2860 = vld [vmem:[%s2783 + $0x260] sm:$0xff]
    %v2861 = vld [vmem:[%s2783 + $0x268] sm:$0xff]
    %v2862 = vld [vmem:[%s2783 + $0x270] sm:$0xff]
    %v2863 = vld [vmem:[%s2783 + $0x278] sm:$0xff]
    %v2864 = vld [vmem:[%s2783 + $0x280] sm:$0xff]
    %v2865 = vld [vmem:[%s2783 + $0x288] sm:$0xff]
    %v2866 = vld [vmem:[%s2783 + $0x290] sm:$0xff]
    %v2867 = vld [vmem:[%s2783 + $0x298] sm:$0xff]
    %v2868 = vld [vmem:[%s2783 + $0x2a0] sm:$0xff]
    %v2869 = vld [vmem:[%s2783 + $0x2a8] sm:$0xff]
    %v2870 = vld [vmem:[%s2783 + $0x2b0] sm:$0xff]
    %v2871 = vld [vmem:[%s2783 + $0x2b8] sm:$0xff]
    %v2872 = vld [vmem:[%s2783 + $0x2c0] sm:$0xff]
    %v2873 = vld [vmem:[%s2783 + $0x2c8] sm:$0xff]
    %v2874 = vld [vmem:[%s2783 + $0x2d0] sm:$0xff]
    %v2875 = vld [vmem:[%s2783 + $0x2d8] sm:$0xff]
    %v2876 = vld [vmem:[%s2783 + $0x2e0] sm:$0xff]
    %v2877 = vld [vmem:[%s2783 + $0x2e8] sm:$0xff]
    %v2878 = vld [vmem:[%s2783 + $0x2f0] sm:$0xff]
    %v2879 = vld [vmem:[%s2783 + $0x2f8] sm:$0xff]
    %v2880 = vld [vmem:[%s2783 + $0x300] sm:$0xff]
    %v2881 = vld [vmem:[%s2783 + $0x308] sm:$0xff]
    %v2882 = vld [vmem:[%s2783 + $0x310] sm:$0xff]
    %v2883 = vld [vmem:[%s2783 + $0x318] sm:$0xff]
    %v2884 = vld [vmem:[%s2783 + $0x320] sm:$0xff]
    %v2885 = vld [vmem:[%s2783 + $0x328] sm:$0xff]
    %v2886 = vld [vmem:[%s2783 + $0x330] sm:$0xff]
    %v2887 = vld [vmem:[%s2783 + $0x338] sm:$0xff]
    %v2888 = vld [vmem:[%s2783 + $0x340] sm:$0xff]
    %v2889 = vld [vmem:[%s2783 + $0x348] sm:$0xff]
    %v2890 = vld [vmem:[%s2783 + $0x350] sm:$0xff]
    %v2891 = vld [vmem:[%s2783 + $0x358] sm:$0xff]
    %v2892 = vld [vmem:[%s2783 + $0x360] sm:$0xff]
    %v2893 = vld [vmem:[%s2783 + $0x368] sm:$0xff]
    %v2894 = vld [vmem:[%s2783 + $0x370] sm:$0xff]
    %v2895 = vld [vmem:[%s2783 + $0x378] sm:$0xff]
    %v2896 = vld [vmem:[%s2783 + $0x380] sm:$0xff]
    %v2897 = vld [vmem:[%s2783 + $0x388] sm:$0xff]
    %v2898 = vld [vmem:[%s2783 + $0x390] sm:$0xff]
    %v2899 = vld [vmem:[%s2783 + $0x398] sm:$0xff]
    %v2900 = vld [vmem:[%s2783 + $0x3a0] sm:$0xff]
    %v2901 = vld [vmem:[%s2783 + $0x3a8] sm:$0xff]
    %v2902 = vld [vmem:[%s2783 + $0x3b0] sm:$0xff]
    %v2903 = vld [vmem:[%s2783 + $0x3b8] sm:$0xff]
    %v2904 = vld [vmem:[%s2783 + $0x3c0] sm:$0xff]
    %v2905 = vld [vmem:[%s2783 + $0x3c8] sm:$0xff]
    %v2906 = vld [vmem:[%s2783 + $0x3d0] sm:$0xff]
    %v2907 = vld [vmem:[%s2783 + $0x3d8] sm:$0xff]
    %v2908 = vld [vmem:[%s2783 + $0x3e0] sm:$0xff]
    %v2909 = vld [vmem:[%s2783 + $0x3e8] sm:$0xff]
    %v2910 = vld [vmem:[%s2783 + $0x3f0] sm:$0xff]
    %v2911 = vld [vmem:[%s2783 + $0x3f8] sm:$0xff]
    %vm2918 = vcmask 1043456
    %v2919 = vrot.slane %v2777, 4
    %v2920 = vrot.slane %v1723, 4
    %v2921 = vsel %vm2918, %v2919, %v2920
    %v2922 = vrot.slane %v2778, 4
    %v2923 = vrot.slane %v1724, 4
    %v2924 = vsel %vm2918, %v2922, %v2923
    %v2925 = vrot.slane %v1725, 4
    %v2926 = vsel %vm2918, %v2920, %v2925
    %v2927 = vrot.slane %v1726, 4
    %v2928 = vsel %vm2918, %v2923, %v2927
    %v2929 = vrot.slane %v1727, 4
    %v2930 = vsel %vm2918, %v2925, %v2929
    %v2931 = vrot.slane %v1728, 4
    %v2932 = vsel %vm2918, %v2927, %v2931
    %v2933 = vrot.slane %v1729, 4
    %v2934 = vsel %vm2918, %v2929, %v2933
    %v2935 = vrot.slane %v1730, 4
    %v2936 = vsel %vm2918, %v2931, %v2935
    %v2937 = vrot.slane %v1731, 4
    %v2938 = vsel %vm2918, %v2933, %v2937
    %v2939 = vrot.slane %v1732, 4
    %v2940 = vsel %vm2918, %v2935, %v2939
    %v2941 = vrot.slane %v1733, 4
    %v2942 = vsel %vm2918, %v2937, %v2941
    %v2943 = vrot.slane %v1734, 4
    %v2944 = vsel %vm2918, %v2939, %v2943
    %v2945 = vrot.slane %v2779, 4
    %v2946 = vsel %vm2918, %v2941, %v2945
    %v2947 = vrot.slane %v2780, 4
    %v2948 = vsel %vm2918, %v2943, %v2947
    %v2949 = vrot.slane %v2781, 4
    %v2950 = vsel %vm2918, %v2945, %v2949
    %v2951 = vrot.slane %v2782, 4
    %v2952 = vsel %vm2918, %v2947, %v2951
    %2969 = vmatpush.msra.mxu0 %v2844
    %2970 = vmatpush.msra.mxu0 %v2840
    %2971 = vmatpush.msra.mxu0 %v2836
    %2972 = vmatpush.msra.mxu0 %v2832
    %2973 = vmatpush.msra.mxu0 %v2828
    %2974 = vmatpush.msra.mxu0 %v2824
    %2975 = vmatpush.msra.mxu0 %v2820
    %2976 = vmatpush.msra.mxu0 %v2816
    %2977 = vmatpush.msra.mxu0 %v2812
    %2978 = vmatpush.msra.mxu0 %v2808
    %2979 = vmatpush.msra.mxu0 %v2804
    %2980 = vmatpush.msra.mxu0 %v2800
    %2981 = vmatpush.msra.mxu0 %v2796
    %2982 = vmatpush.msra.mxu0 %v2792
    %2983 = vmatpush.msra.mxu0 %v2788
    %2984 = vmatpush.msra.mxu0 %v2784
    %2985 = vmatmul.f32.gmra.mxu0 %v2921
    %v2986 = vpop.f32.mrf.mxu0
    %v2987 = vadd.f32 0.0, %v2986
    %2988 = vmatmul.f32.gmra.mxu0 %v2926
    %v2989 = vpop.f32.mrf.mxu0
    %v2990 = vadd.f32 0.0, %v2989
    %2991 = vmatmul.f32.gmra.mxu0 %v2930
    %v2992 = vpop.f32.mrf.mxu0
    %v2993 = vadd.f32 0.0, %v2992
    %2994 = vmatmul.f32.gmra.mxu0 %v2934
    %v2995 = vpop.f32.mrf.mxu0
    %v2996 = vadd.f32 0.0, %v2995
    %2997 = vmatmul.f32.gmra.mxu0 %v2938
    %v2998 = vpop.f32.mrf.mxu0
    %v2999 = vadd.f32 0.0, %v2998
    %3000 = vmatmul.f32.gmra.mxu0 %v2942
    %v3001 = vpop.f32.mrf.mxu0
    %v3002 = vadd.f32 0.0, %v3001
    %3003 = vmatmul.f32.gmra.mxu0 %v2946
    %v3004 = vpop.f32.mrf.mxu0
    %v3005 = vadd.f32 0.0, %v3004
    %3006 = vmatmul.f32.gmra.mxu0 %v2950
    %v3007 = vpop.f32.mrf.mxu0
    %v3008 = vadd.f32 0.0, %v3007
    %3009 = vdwg.mxu0
    %3010 = vmatpush.msra.mxu0 %v2908
    %3011 = vmatpush.msra.mxu0 %v2904
    %3012 = vmatpush.msra.mxu0 %v2900
    %3013 = vmatpush.msra.mxu0 %v2896
    %3014 = vmatpush.msra.mxu0 %v2892
    %3015 = vmatpush.msra.mxu0 %v2888
    %3016 = vmatpush.msra.mxu0 %v2884
    %3017 = vmatpush.msra.mxu0 %v2880
    %3018 = vmatpush.msra.mxu0 %v2876
    %3019 = vmatpush.msra.mxu0 %v2872
    %3020 = vmatpush.msra.mxu0 %v2868
    %3021 = vmatpush.msra.mxu0 %v2864
    %3022 = vmatpush.msra.mxu0 %v2860
    %3023 = vmatpush.msra.mxu0 %v2856
    %3024 = vmatpush.msra.mxu0 %v2852
    %3025 = vmatpush.msra.mxu0 %v2848
    %3026 = vmatmul.f32.gmra.mxu0 %v2924
    %v3027 = vpop.f32.mrf.mxu0
    %v3028 = vadd.f32 %v2987, %v3027
    %3029 = vmatmul.f32.gmra.mxu0 %v2928
    %v3030 = vpop.f32.mrf.mxu0
    %v3031 = vadd.f32 %v2990, %v3030
    %3032 = vmatmul.f32.gmra.mxu0 %v2932
    %v3033 = vpop.f32.mrf.mxu0
    %v3034 = vadd.f32 %v2993, %v3033
    %3035 = vmatmul.f32.gmra.mxu0 %v2936
    %v3036 = vpop.f32.mrf.mxu0
    %v3037 = vadd.f32 %v2996, %v3036
    %3038 = vmatmul.f32.gmra.mxu0 %v2940
    %v3039 = vpop.f32.mrf.mxu0
    %v3040 = vadd.f32 %v2999, %v3039
    %3041 = vmatmul.f32.gmra.mxu0 %v2944
    %v3042 = vpop.f32.mrf.mxu0
    %v3043 = vadd.f32 %v3002, %v3042
    %3044 = vmatmul.f32.gmra.mxu0 %v2948
    %v3045 = vpop.f32.mrf.mxu0
    %v3046 = vadd.f32 %v3005, %v3045
    %3047 = vmatmul.f32.gmra.mxu0 %v2952
    %v3048 = vpop.f32.mrf.mxu0
    %v3049 = vadd.f32 %v3008, %v3048
    %3050 = vdwg.mxu0
    %3051 = vmatpush.msra.mxu0 %v2845
    %3052 = vmatpush.msra.mxu0 %v2841
    %3053 = vmatpush.msra.mxu0 %v2837
    %3054 = vmatpush.msra.mxu0 %v2833
    %3055 = vmatpush.msra.mxu0 %v2829
    %3056 = vmatpush.msra.mxu0 %v2825
    %3057 = vmatpush.msra.mxu0 %v2821
    %3058 = vmatpush.msra.mxu0 %v2817
    %3059 = vmatpush.msra.mxu0 %v2813
    %3060 = vmatpush.msra.mxu0 %v2809
    %3061 = vmatpush.msra.mxu0 %v2805
    %3062 = vmatpush.msra.mxu0 %v2801
    %3063 = vmatpush.msra.mxu0 %v2797
    %3064 = vmatpush.msra.mxu0 %v2793
    %3065 = vmatpush.msra.mxu0 %v2789
    %3066 = vmatpush.msra.mxu0 %v2785
    %3067 = vmatmul.f32.gmra.mxu0 %v2921
    %v3068 = vpop.f32.mrf.mxu0
    %v3069 = vadd.f32 0.0, %v3068
    %3070 = vmatmul.f32.gmra.mxu0 %v2926
    %v3071 = vpop.f32.mrf.mxu0
    %v3072 = vadd.f32 0.0, %v3071
    %3073 = vmatmul.f32.gmra.mxu0 %v2930
    %v3074 = vpop.f32.mrf.mxu0
    %v3075 = vadd.f32 0.0, %v3074
    %3076 = vmatmul.f32.gmra.mxu0 %v2934
    %v3077 = vpop.f32.mrf.mxu0
    %v3078 = vadd.f32 0.0, %v3077
    %3079 = vmatmul.f32.gmra.mxu0 %v2938
    %v3080 = vpop.f32.mrf.mxu0
    %v3081 = vadd.f32 0.0, %v3080
    %3082 = vmatmul.f32.gmra.mxu0 %v2942
    %v3083 = vpop.f32.mrf.mxu0
    %v3084 = vadd.f32 0.0, %v3083
    %3085 = vmatmul.f32.gmra.mxu0 %v2946
    %v3086 = vpop.f32.mrf.mxu0
    %v3087 = vadd.f32 0.0, %v3086
    %3088 = vmatmul.f32.gmra.mxu0 %v2950
    %v3089 = vpop.f32.mrf.mxu0
    %v3090 = vadd.f32 0.0, %v3089
    %3091 = vdwg.mxu0
    %3092 = vmatpush.msra.mxu0 %v2909
    %3093 = vmatpush.msra.mxu0 %v2905
    %3094 = vmatpush.msra.mxu0 %v2901
    %3095 = vmatpush.msra.mxu0 %v2897
    %3096 = vmatpush.msra.mxu0 %v2893
    %3097 = vmatpush.msra.mxu0 %v2889
    %3098 = vmatpush.msra.mxu0 %v2885
    %3099 = vmatpush.msra.mxu0 %v2881
    %3100 = vmatpush.msra.mxu0 %v2877
    %3101 = vmatpush.msra.mxu0 %v2873
    %3102 = vmatpush.msra.mxu0 %v2869
    %3103 = vmatpush.msra.mxu0 %v2865
    %3104 = vmatpush.msra.mxu0 %v2861
    %3105 = vmatpush.msra.mxu0 %v2857
    %3106 = vmatpush.msra.mxu0 %v2853
    %3107 = vmatpush.msra.mxu0 %v2849
    %3108 = vmatmul.f32.gmra.mxu0 %v2924
    %v3109 = vpop.f32.mrf.mxu0
    %v3110 = vadd.f32 %v3069, %v3109
    %3111 = vmatmul.f32.gmra.mxu0 %v2928
    %v3112 = vpop.f32.mrf.mxu0
    %v3113 = vadd.f32 %v3072, %v3112
    %3114 = vmatmul.f32.gmra.mxu0 %v2932
    %v3115 = vpop.f32.mrf.mxu0
    %v3116 = vadd.f32 %v3075, %v3115
    %3117 = vmatmul.f32.gmra.mxu0 %v2936
    %v3118 = vpop.f32.mrf.mxu0
    %v3119 = vadd.f32 %v3078, %v3118
    %3120 = vmatmul.f32.gmra.mxu0 %v2940
    %v3121 = vpop.f32.mrf.mxu0
    %v3122 = vadd.f32 %v3081, %v3121
    %3123 = vmatmul.f32.gmra.mxu0 %v2944
    %v3124 = vpop.f32.mrf.mxu0
    %v3125 = vadd.f32 %v3084, %v3124
    %3126 = vmatmul.f32.gmra.mxu0 %v2948
    %v3127 = vpop.f32.mrf.mxu0
    %v3128 = vadd.f32 %v3087, %v3127
    %3129 = vmatmul.f32.gmra.mxu0 %v2952
    %v3130 = vpop.f32.mrf.mxu0
    %v3131 = vadd.f32 %v3090, %v3130
    %3132 = vdwg.mxu0
    %3133 = vmatpush.msra.mxu0 %v2846
    %3134 = vmatpush.msra.mxu0 %v2842
    %3135 = vmatpush.msra.mxu0 %v2838
    %3136 = vmatpush.msra.mxu0 %v2834
    %3137 = vmatpush.msra.mxu0 %v2830
    %3138 = vmatpush.msra.mxu0 %v2826
    %3139 = vmatpush.msra.mxu0 %v2822
    %3140 = vmatpush.msra.mxu0 %v2818
    %3141 = vmatpush.msra.mxu0 %v2814
    %3142 = vmatpush.msra.mxu0 %v2810
    %3143 = vmatpush.msra.mxu0 %v2806
    %3144 = vmatpush.msra.mxu0 %v2802
    %3145 = vmatpush.msra.mxu0 %v2798
    %3146 = vmatpush.msra.mxu0 %v2794
    %3147 = vmatpush.msra.mxu0 %v2790
    %3148 = vmatpush.msra.mxu0 %v2786
    %3149 = vmatmul.f32.gmra.mxu0 %v2921
    %v3150 = vpop.f32.mrf.mxu0
    %v3151 = vadd.f32 0.0, %v3150
    %3152 = vmatmul.f32.gmra.mxu0 %v2926
    %v3153 = vpop.f32.mrf.mxu0
    %v3154 = vadd.f32 0.0, %v3153
    %3155 = vmatmul.f32.gmra.mxu0 %v2930
    %v3156 = vpop.f32.mrf.mxu0
    %v3157 = vadd.f32 0.0, %v3156
    %3158 = vmatmul.f32.gmra.mxu0 %v2934
    %v3159 = vpop.f32.mrf.mxu0
    %v3160 = vadd.f32 0.0, %v3159
    %3161 = vmatmul.f32.gmra.mxu0 %v2938
    %v3162 = vpop.f32.mrf.mxu0
    %v3163 = vadd.f32 0.0, %v3162
    %3164 = vmatmul.f32.gmra.mxu0 %v2942
    %v3165 = vpop.f32.mrf.mxu0
    %v3166 = vadd.f32 0.0, %v3165
    %3167 = vmatmul.f32.gmra.mxu0 %v2946
    %v3168 = vpop.f32.mrf.mxu0
    %v3169 = vadd.f32 0.0, %v3168
    %3170 = vmatmul.f32.gmra.mxu0 %v2950
    %v3171 = vpop.f32.mrf.mxu0
    %v3172 = vadd.f32 0.0, %v3171
    %3173 = vdwg.mxu0
    %3174 = vmatpush.msra.mxu0 %v2910
    %3175 = vmatpush.msra.mxu0 %v2906
    %3176 = vmatpush.msra.mxu0 %v2902
    %3177 = vmatpush.msra.mxu0 %v2898
    %3178 = vmatpush.msra.mxu0 %v2894
    %3179 = vmatpush.msra.mxu0 %v2890
    %3180 = vmatpush.msra.mxu0 %v2886
    %3181 = vmatpush.msra.mxu0 %v2882
    %3182 = vmatpush.msra.mxu0 %v2878
    %3183 = vmatpush.msra.mxu0 %v2874
    %3184 = vmatpush.msra.mxu0 %v2870
    %3185 = vmatpush.msra.mxu0 %v2866
    %3186 = vmatpush.msra.mxu0 %v2862
    %3187 = vmatpush.msra.mxu0 %v2858
    %3188 = vmatpush.msra.mxu0 %v2854
    %3189 = vmatpush.msra.mxu0 %v2850
    %3190 = vmatmul.f32.gmra.mxu0 %v2924
    %v3191 = vpop.f32.mrf.mxu0
    %v3192 = vadd.f32 %v3151, %v3191
    %3193 = vmatmul.f32.gmra.mxu0 %v2928
    %v3194 = vpop.f32.mrf.mxu0
    %v3195 = vadd.f32 %v3154, %v3194
    %3196 = vmatmul.f32.gmra.mxu0 %v2932
    %v3197 = vpop.f32.mrf.mxu0
    %v3198 = vadd.f32 %v3157, %v3197
    %3199 = vmatmul.f32.gmra.mxu0 %v2936
    %v3200 = vpop.f32.mrf.mxu0
    %v3201 = vadd.f32 %v3160, %v3200
    %3202 = vmatmul.f32.gmra.mxu0 %v2940
    %v3203 = vpop.f32.mrf.mxu0
    %v3204 = vadd.f32 %v3163, %v3203
    %3205 = vmatmul.f32.gmra.mxu0 %v2944
    %v3206 = vpop.f32.mrf.mxu0
    %v3207 = vadd.f32 %v3166, %v3206
    %3208 = vmatmul.f32.gmra.mxu0 %v2948
    %v3209 = vpop.f32.mrf.mxu0
    %v3210 = vadd.f32 %v3169, %v3209
    %3211 = vmatmul.f32.gmra.mxu0 %v2952
    %v3212 = vpop.f32.mrf.mxu0
    %v3213 = vadd.f32 %v3172, %v3212
    %3214 = vdwg.mxu0
    %3215 = vmatpush.msra.mxu0 %v2847
    %3216 = vmatpush.msra.mxu0 %v2843
    %3217 = vmatpush.msra.mxu0 %v2839
    %3218 = vmatpush.msra.mxu0 %v2835
    %3219 = vmatpush.msra.mxu0 %v2831
    %3220 = vmatpush.msra.mxu0 %v2827
    %3221 = vmatpush.msra.mxu0 %v2823
    %3222 = vmatpush.msra.mxu0 %v2819
    %3223 = vmatpush.msra.mxu0 %v2815
    %3224 = vmatpush.msra.mxu0 %v2811
    %3225 = vmatpush.msra.mxu0 %v2807
    %3226 = vmatpush.msra.mxu0 %v2803
    %3227 = vmatpush.msra.mxu0 %v2799
    %3228 = vmatpush.msra.mxu0 %v2795
    %3229 = vmatpush.msra.mxu0 %v2791
    %3230 = vmatpush.msra.mxu0 %v2787
    %3231 = vmatmul.f32.gmra.mxu0 %v2921
    %v3232 = vpop.f32.mrf.mxu0
    %v3233 = vadd.f32 0.0, %v3232
    %3234 = vmatmul.f32.gmra.mxu0 %v2926
    %v3235 = vpop.f32.mrf.mxu0
    %v3236 = vadd.f32 0.0, %v3235
    %3237 = vmatmul.f32.gmra.mxu0 %v2930
    %v3238 = vpop.f32.mrf.mxu0
    %v3239 = vadd.f32 0.0, %v3238
    %3240 = vmatmul.f32.gmra.mxu0 %v2934
    %v3241 = vpop.f32.mrf.mxu0
    %v3242 = vadd.f32 0.0, %v3241
    %3243 = vmatmul.f32.gmra.mxu0 %v2938
    %v3244 = vpop.f32.mrf.mxu0
    %v3245 = vadd.f32 0.0, %v3244
    %3246 = vmatmul.f32.gmra.mxu0 %v2942
    %v3247 = vpop.f32.mrf.mxu0
    %v3248 = vadd.f32 0.0, %v3247
    %3249 = vmatmul.f32.gmra.mxu0 %v2946
    %v3250 = vpop.f32.mrf.mxu0
    %v3251 = vadd.f32 0.0, %v3250
    %3252 = vmatmul.f32.gmra.mxu0 %v2950
    %v3253 = vpop.f32.mrf.mxu0
    %v3254 = vadd.f32 0.0, %v3253
    %3255 = vdwg.mxu0
    %3256 = vmatpush.msra.mxu0 %v2911
    %3257 = vmatpush.msra.mxu0 %v2907
    %3258 = vmatpush.msra.mxu0 %v2903
    %3259 = vmatpush.msra.mxu0 %v2899
    %3260 = vmatpush.msra.mxu0 %v2895
    %3261 = vmatpush.msra.mxu0 %v2891
    %3262 = vmatpush.msra.mxu0 %v2887
    %3263 = vmatpush.msra.mxu0 %v2883
    %3264 = vmatpush.msra.mxu0 %v2879
    %3265 = vmatpush.msra.mxu0 %v2875
    %3266 = vmatpush.msra.mxu0 %v2871
    %3267 = vmatpush.msra.mxu0 %v2867
    %3268 = vmatpush.msra.mxu0 %v2863
    %3269 = vmatpush.msra.mxu0 %v2859
    %3270 = vmatpush.msra.mxu0 %v2855
    %3271 = vmatpush.msra.mxu0 %v2851
    %3272 = vmatmul.f32.gmra.mxu0 %v2924
    %v3273 = vpop.f32.mrf.mxu0
    %v3274 = vadd.f32 %v3233, %v3273
    %3275 = vmatmul.f32.gmra.mxu0 %v2928
    %v3276 = vpop.f32.mrf.mxu0
    %v3277 = vadd.f32 %v3236, %v3276
    %3278 = vmatmul.f32.gmra.mxu0 %v2932
    %v3279 = vpop.f32.mrf.mxu0
    %v3280 = vadd.f32 %v3239, %v3279
    %3281 = vmatmul.f32.gmra.mxu0 %v2936
    %v3282 = vpop.f32.mrf.mxu0
    %v3283 = vadd.f32 %v3242, %v3282
    %3284 = vmatmul.f32.gmra.mxu0 %v2940
    %v3285 = vpop.f32.mrf.mxu0
    %v3286 = vadd.f32 %v3245, %v3285
    %3287 = vmatmul.f32.gmra.mxu0 %v2944
    %v3288 = vpop.f32.mrf.mxu0
    %v3289 = vadd.f32 %v3248, %v3288
    %3290 = vmatmul.f32.gmra.mxu0 %v2948
    %v3291 = vpop.f32.mrf.mxu0
    %v3292 = vadd.f32 %v3251, %v3291
    %3293 = vmatmul.f32.gmra.mxu0 %v2952
    %v3294 = vpop.f32.mrf.mxu0
    %v3295 = vadd.f32 %v3254, %v3294
    %3296 = vdwg.mxu0
    %v3297 = vadd.f32 %v2482, %v3028
    %v3298 = vadd.f32 %v2564, %v3110
    %v3299 = vadd.f32 %v2646, %v3192
    %v3300 = vadd.f32 %v2728, %v3274
    %v3301 = vadd.f32 %v2485, %v3031
    %v3302 = vadd.f32 %v2567, %v3113
    %v3303 = vadd.f32 %v2649, %v3195
    %v3304 = vadd.f32 %v2731, %v3277
    %v3305 = vadd.f32 %v2488, %v3034
    %v3306 = vadd.f32 %v2570, %v3116
    %v3307 = vadd.f32 %v2652, %v3198
    %v3308 = vadd.f32 %v2734, %v3280
    %v3309 = vadd.f32 %v2491, %v3037
    %v3310 = vadd.f32 %v2573, %v3119
    %v3311 = vadd.f32 %v2655, %v3201
    %v3312 = vadd.f32 %v2737, %v3283
    %v3313 = vadd.f32 %v2494, %v3040
    %v3314 = vadd.f32 %v2576, %v3122
    %v3315 = vadd.f32 %v2658, %v3204
    %v3316 = vadd.f32 %v2740, %v3286
    %v3317 = vadd.f32 %v2497, %v3043
    %v3318 = vadd.f32 %v2579, %v3125
    %v3319 = vadd.f32 %v2661, %v3207
    %v3320 = vadd.f32 %v2743, %v3289
    %v3321 = vadd.f32 %v2500, %v3046
    %v3322 = vadd.f32 %v2582, %v3128
    %v3323 = vadd.f32 %v2664, %v3210
    %v3324 = vadd.f32 %v2746, %v3292
    %v3325 = vadd.f32 %v2503, %v3049
    %v3326 = vadd.f32 %v2585, %v3131
    %v3327 = vadd.f32 %v2667, %v3213
    %v3328 = vadd.f32 %v2749, %v3295
    %v3329 = vld [vmem:[#allocation2] sm:$0xc0]
    %v3330 = vld [vmem:[#allocation2 + $0x8] sm:$0xc0]
    %v3331 = vld [vmem:[#allocation2 + $0x80] sm:$0x3f]
    %v3332 = vld [vmem:[#allocation2 + $0x88] sm:$0x3f]
    %v3333 = vld [vmem:[#allocation2] sm:$0x80]
    %v3334 = vld [vmem:[#allocation2 + $0x8] sm:$0x80]
    %v3335 = vld [vmem:[#allocation2 + $0x80] sm:$0x7f]
    %v3336 = vld [vmem:[#allocation2 + $0x88] sm:$0x7f]
    %v3341 = vrot.slane %v3333, 1
    %v3342 = vsel %vm1670, %v3341, %v1672
    %v3343 = vrot.slane %v3334, 1
    %v3344 = vsel %vm1670, %v3343, %v1675
    %v3345 = vrot.slane %v3335, 1
    %v3346 = vsel %vm1670, %v1697, %v3345
    %v3347 = vrot.slane %v3336, 1
    %v3348 = vsel %vm1670, %v1699, %v3347
    %v3355 = vmax.f32 %v3329, %v3342
    %v3356 = vmax.f32 %v3330, %v3344
    %v3357 = vmax.f32 %v1646, %v3346
    %v3358 = vmax.f32 %v1647, %v3348
    %v3359 = vmax.f32 %v3331, %v3345
    %v3360 = vmax.f32 %v3332, %v3347
    %s3361 = scalar_lea.vmem [#allocation9], 3072
    %v3362 = vld [vmem:[%s3361] sm:$0xff]
    %v3363 = vld [vmem:[%s3361 + $0x8] sm:$0xff]
    %v3364 = vld [vmem:[%s3361 + $0x10] sm:$0xff]
    %v3365 = vld [vmem:[%s3361 + $0x18] sm:$0xff]
    %v3366 = vld [vmem:[%s3361 + $0x20] sm:$0xff]
    %v3367 = vld [vmem:[%s3361 + $0x28] sm:$0xff]
    %v3368 = vld [vmem:[%s3361 + $0x30] sm:$0xff]
    %v3369 = vld [vmem:[%s3361 + $0x38] sm:$0xff]
    %v3370 = vld [vmem:[%s3361 + $0x40] sm:$0xff]
    %v3371 = vld [vmem:[%s3361 + $0x48] sm:$0xff]
    %v3372 = vld [vmem:[%s3361 + $0x50] sm:$0xff]
    %v3373 = vld [vmem:[%s3361 + $0x58] sm:$0xff]
    %v3374 = vld [vmem:[%s3361 + $0x60] sm:$0xff]
    %v3375 = vld [vmem:[%s3361 + $0x68] sm:$0xff]
    %v3376 = vld [vmem:[%s3361 + $0x70] sm:$0xff]
    %v3377 = vld [vmem:[%s3361 + $0x78] sm:$0xff]
    %v3378 = vld [vmem:[%s3361 + $0x80] sm:$0xff]
    %v3379 = vld [vmem:[%s3361 + $0x88] sm:$0xff]
    %v3380 = vld [vmem:[%s3361 + $0x90] sm:$0xff]
    %v3381 = vld [vmem:[%s3361 + $0x98] sm:$0xff]
    %v3382 = vld [vmem:[%s3361 + $0xa0] sm:$0xff]
    %v3383 = vld [vmem:[%s3361 + $0xa8] sm:$0xff]
    %v3384 = vld [vmem:[%s3361 + $0xb0] sm:$0xff]
    %v3385 = vld [vmem:[%s3361 + $0xb8] sm:$0xff]
    %v3386 = vld [vmem:[%s3361 + $0xc0] sm:$0xff]
    %v3387 = vld [vmem:[%s3361 + $0xc8] sm:$0xff]
    %v3388 = vld [vmem:[%s3361 + $0xd0] sm:$0xff]
    %v3389 = vld [vmem:[%s3361 + $0xd8] sm:$0xff]
    %v3390 = vld [vmem:[%s3361 + $0xe0] sm:$0xff]
    %v3391 = vld [vmem:[%s3361 + $0xe8] sm:$0xff]
    %v3392 = vld [vmem:[%s3361 + $0xf0] sm:$0xff]
    %v3393 = vld [vmem:[%s3361 + $0xf8] sm:$0xff]
    %v3394 = vld [vmem:[%s3361 + $0x100] sm:$0xff]
    %v3395 = vld [vmem:[%s3361 + $0x108] sm:$0xff]
    %v3396 = vld [vmem:[%s3361 + $0x110] sm:$0xff]
    %v3397 = vld [vmem:[%s3361 + $0x118] sm:$0xff]
    %v3398 = vld [vmem:[%s3361 + $0x120] sm:$0xff]
    %v3399 = vld [vmem:[%s3361 + $0x128] sm:$0xff]
    %v3400 = vld [vmem:[%s3361 + $0x130] sm:$0xff]
    %v3401 = vld [vmem:[%s3361 + $0x138] sm:$0xff]
    %v3402 = vld [vmem:[%s3361 + $0x140] sm:$0xff]
    %v3403 = vld [vmem:[%s3361 + $0x148] sm:$0xff]
    %v3404 = vld [vmem:[%s3361 + $0x150] sm:$0xff]
    %v3405 = vld [vmem:[%s3361 + $0x158] sm:$0xff]
    %v3406 = vld [vmem:[%s3361 + $0x160] sm:$0xff]
    %v3407 = vld [vmem:[%s3361 + $0x168] sm:$0xff]
    %v3408 = vld [vmem:[%s3361 + $0x170] sm:$0xff]
    %v3409 = vld [vmem:[%s3361 + $0x178] sm:$0xff]
    %v3410 = vld [vmem:[%s3361 + $0x180] sm:$0xff]
    %v3411 = vld [vmem:[%s3361 + $0x188] sm:$0xff]
    %v3412 = vld [vmem:[%s3361 + $0x190] sm:$0xff]
    %v3413 = vld [vmem:[%s3361 + $0x198] sm:$0xff]
    %v3414 = vld [vmem:[%s3361 + $0x1a0] sm:$0xff]
    %v3415 = vld [vmem:[%s3361 + $0x1a8] sm:$0xff]
    %v3416 = vld [vmem:[%s3361 + $0x1b0] sm:$0xff]
    %v3417 = vld [vmem:[%s3361 + $0x1b8] sm:$0xff]
    %v3418 = vld [vmem:[%s3361 + $0x1c0] sm:$0xff]
    %v3419 = vld [vmem:[%s3361 + $0x1c8] sm:$0xff]
    %v3420 = vld [vmem:[%s3361 + $0x1d0] sm:$0xff]
    %v3421 = vld [vmem:[%s3361 + $0x1d8] sm:$0xff]
    %v3422 = vld [vmem:[%s3361 + $0x1e0] sm:$0xff]
    %v3423 = vld [vmem:[%s3361 + $0x1e8] sm:$0xff]
    %v3424 = vld [vmem:[%s3361 + $0x1f0] sm:$0xff]
    %v3425 = vld [vmem:[%s3361 + $0x1f8] sm:$0xff]
    %v3426 = vld [vmem:[%s3361 + $0x200] sm:$0xff]
    %v3427 = vld [vmem:[%s3361 + $0x208] sm:$0xff]
    %v3428 = vld [vmem:[%s3361 + $0x210] sm:$0xff]
    %v3429 = vld [vmem:[%s3361 + $0x218] sm:$0xff]
    %v3430 = vld [vmem:[%s3361 + $0x220] sm:$0xff]
    %v3431 = vld [vmem:[%s3361 + $0x228] sm:$0xff]
    %v3432 = vld [vmem:[%s3361 + $0x230] sm:$0xff]
    %v3433 = vld [vmem:[%s3361 + $0x238] sm:$0xff]
    %v3434 = vld [vmem:[%s3361 + $0x240] sm:$0xff]
    %v3435 = vld [vmem:[%s3361 + $0x248] sm:$0xff]
    %v3436 = vld [vmem:[%s3361 + $0x250] sm:$0xff]
    %v3437 = vld [vmem:[%s3361 + $0x258] sm:$0xff]
    %v3438 = vld [vmem:[%s3361 + $0x260] sm:$0xff]
    %v3439 = vld [vmem:[%s3361 + $0x268] sm:$0xff]
    %v3440 = vld [vmem:[%s3361 + $0x270] sm:$0xff]
    %v3441 = vld [vmem:[%s3361 + $0x278] sm:$0xff]
    %v3442 = vld [vmem:[%s3361 + $0x280] sm:$0xff]
    %v3443 = vld [vmem:[%s3361 + $0x288] sm:$0xff]
    %v3444 = vld [vmem:[%s3361 + $0x290] sm:$0xff]
    %v3445 = vld [vmem:[%s3361 + $0x298] sm:$0xff]
    %v3446 = vld [vmem:[%s3361 + $0x2a0] sm:$0xff]
    %v3447 = vld [vmem:[%s3361 + $0x2a8] sm:$0xff]
    %v3448 = vld [vmem:[%s3361 + $0x2b0] sm:$0xff]
    %v3449 = vld [vmem:[%s3361 + $0x2b8] sm:$0xff]
    %v3450 = vld [vmem:[%s3361 + $0x2c0] sm:$0xff]
    %v3451 = vld [vmem:[%s3361 + $0x2c8] sm:$0xff]
    %v3452 = vld [vmem:[%s3361 + $0x2d0] sm:$0xff]
    %v3453 = vld [vmem:[%s3361 + $0x2d8] sm:$0xff]
    %v3454 = vld [vmem:[%s3361 + $0x2e0] sm:$0xff]
    %v3455 = vld [vmem:[%s3361 + $0x2e8] sm:$0xff]
    %v3456 = vld [vmem:[%s3361 + $0x2f0] sm:$0xff]
    %v3457 = vld [vmem:[%s3361 + $0x2f8] sm:$0xff]
    %v3458 = vld [vmem:[%s3361 + $0x300] sm:$0xff]
    %v3459 = vld [vmem:[%s3361 + $0x308] sm:$0xff]
    %v3460 = vld [vmem:[%s3361 + $0x310] sm:$0xff]
    %v3461 = vld [vmem:[%s3361 + $0x318] sm:$0xff]
    %v3462 = vld [vmem:[%s3361 + $0x320] sm:$0xff]
    %v3463 = vld [vmem:[%s3361 + $0x328] sm:$0xff]
    %v3464 = vld [vmem:[%s3361 + $0x330] sm:$0xff]
    %v3465 = vld [vmem:[%s3361 + $0x338] sm:$0xff]
    %v3466 = vld [vmem:[%s3361 + $0x340] sm:$0xff]
    %v3467 = vld [vmem:[%s3361 + $0x348] sm:$0xff]
    %v3468 = vld [vmem:[%s3361 + $0x350] sm:$0xff]
    %v3469 = vld [vmem:[%s3361 + $0x358] sm:$0xff]
    %v3470 = vld [vmem:[%s3361 + $0x360] sm:$0xff]
    %v3471 = vld [vmem:[%s3361 + $0x368] sm:$0xff]
    %v3472 = vld [vmem:[%s3361 + $0x370] sm:$0xff]
    %v3473 = vld [vmem:[%s3361 + $0x378] sm:$0xff]
    %v3474 = vld [vmem:[%s3361 + $0x380] sm:$0xff]
    %v3475 = vld [vmem:[%s3361 + $0x388] sm:$0xff]
    %v3476 = vld [vmem:[%s3361 + $0x390] sm:$0xff]
    %v3477 = vld [vmem:[%s3361 + $0x398] sm:$0xff]
    %v3478 = vld [vmem:[%s3361 + $0x3a0] sm:$0xff]
    %v3479 = vld [vmem:[%s3361 + $0x3a8] sm:$0xff]
    %v3480 = vld [vmem:[%s3361 + $0x3b0] sm:$0xff]
    %v3481 = vld [vmem:[%s3361 + $0x3b8] sm:$0xff]
    %v3482 = vld [vmem:[%s3361 + $0x3c0] sm:$0xff]
    %v3483 = vld [vmem:[%s3361 + $0x3c8] sm:$0xff]
    %v3484 = vld [vmem:[%s3361 + $0x3d0] sm:$0xff]
    %v3485 = vld [vmem:[%s3361 + $0x3d8] sm:$0xff]
    %v3486 = vld [vmem:[%s3361 + $0x3e0] sm:$0xff]
    %v3487 = vld [vmem:[%s3361 + $0x3e8] sm:$0xff]
    %v3488 = vld [vmem:[%s3361 + $0x3f0] sm:$0xff]
    %v3489 = vld [vmem:[%s3361 + $0x3f8] sm:$0xff]
    %vm3496 = vcmask 1041408
    %v3497 = vrot.slane %v3355, 6
    %v3498 = vrot.slane %v1723, 6
    %v3499 = vsel %vm3496, %v3497, %v3498
    %v3500 = vrot.slane %v3356, 6
    %v3501 = vrot.slane %v1724, 6
    %v3502 = vsel %vm3496, %v3500, %v3501
    %v3503 = vrot.slane %v1725, 6
    %v3504 = vsel %vm3496, %v3498, %v3503
    %v3505 = vrot.slane %v1726, 6
    %v3506 = vsel %vm3496, %v3501, %v3505
    %v3507 = vrot.slane %v1727, 6
    %v3508 = vsel %vm3496, %v3503, %v3507
    %v3509 = vrot.slane %v1728, 6
    %v3510 = vsel %vm3496, %v3505, %v3509
    %v3511 = vrot.slane %v1729, 6
    %v3512 = vsel %vm3496, %v3507, %v3511
    %v3513 = vrot.slane %v1730, 6
    %v3514 = vsel %vm3496, %v3509, %v3513
    %v3515 = vrot.slane %v1731, 6
    %v3516 = vsel %vm3496, %v3511, %v3515
    %v3517 = vrot.slane %v1732, 6
    %v3518 = vsel %vm3496, %v3513, %v3517
    %v3519 = vrot.slane %v1733, 6
    %v3520 = vsel %vm3496, %v3515, %v3519
    %v3521 = vrot.slane %v1734, 6
    %v3522 = vsel %vm3496, %v3517, %v3521
    %v3523 = vrot.slane %v3357, 6
    %v3524 = vsel %vm3496, %v3519, %v3523
    %v3525 = vrot.slane %v3358, 6
    %v3526 = vsel %vm3496, %v3521, %v3525
    %v3527 = vrot.slane %v3359, 6
    %v3528 = vsel %vm3496, %v3523, %v3527
    %v3529 = vrot.slane %v3360, 6
    %v3530 = vsel %vm3496, %v3525, %v3529
    %3547 = vmatpush.msra.mxu0 %v3422
    %3548 = vmatpush.msra.mxu0 %v3418
    %3549 = vmatpush.msra.mxu0 %v3414
    %3550 = vmatpush.msra.mxu0 %v3410
    %3551 = vmatpush.msra.mxu0 %v3406
    %3552 = vmatpush.msra.mxu0 %v3402
    %3553 = vmatpush.msra.mxu0 %v3398
    %3554 = vmatpush.msra.mxu0 %v3394
    %3555 = vmatpush.msra.mxu0 %v3390
    %3556 = vmatpush.msra.mxu0 %v3386
    %3557 = vmatpush.msra.mxu0 %v3382
    %3558 = vmatpush.msra.mxu0 %v3378
    %3559 = vmatpush.msra.mxu0 %v3374
    %3560 = vmatpush.msra.mxu0 %v3370
    %3561 = vmatpush.msra.mxu0 %v3366
    %3562 = vmatpush.msra.mxu0 %v3362
    %3563 = vmatmul.f32.gmra.mxu0 %v3499
    %v3564 = vpop.f32.mrf.mxu0
    %v3565 = vadd.f32 0.0, %v3564
    %3566 = vmatmul.f32.gmra.mxu0 %v3504
    %v3567 = vpop.f32.mrf.mxu0
    %v3568 = vadd.f32 0.0, %v3567
    %3569 = vmatmul.f32.gmra.mxu0 %v3508
    %v3570 = vpop.f32.mrf.mxu0
    %v3571 = vadd.f32 0.0, %v3570
    %3572 = vmatmul.f32.gmra.mxu0 %v3512
    %v3573 = vpop.f32.mrf.mxu0
    %v3574 = vadd.f32 0.0, %v3573
    %3575 = vmatmul.f32.gmra.mxu0 %v3516
    %v3576 = vpop.f32.mrf.mxu0
    %v3577 = vadd.f32 0.0, %v3576
    %3578 = vmatmul.f32.gmra.mxu0 %v3520
    %v3579 = vpop.f32.mrf.mxu0
    %v3580 = vadd.f32 0.0, %v3579
    %3581 = vmatmul.f32.gmra.mxu0 %v3524
    %v3582 = vpop.f32.mrf.mxu0
    %v3583 = vadd.f32 0.0, %v3582
    %3584 = vmatmul.f32.gmra.mxu0 %v3528
    %v3585 = vpop.f32.mrf.mxu0
    %v3586 = vadd.f32 0.0, %v3585
    %3587 = vdwg.mxu0
    %3588 = vmatpush.msra.mxu0 %v3486
    %3589 = vmatpush.msra.mxu0 %v3482
    %3590 = vmatpush.msra.mxu0 %v3478
    %3591 = vmatpush.msra.mxu0 %v3474
    %3592 = vmatpush.msra.mxu0 %v3470
    %3593 = vmatpush.msra.mxu0 %v3466
    %3594 = vmatpush.msra.mxu0 %v3462
    %3595 = vmatpush.msra.mxu0 %v3458
    %3596 = vmatpush.msra.mxu0 %v3454
    %3597 = vmatpush.msra.mxu0 %v3450
    %3598 = vmatpush.msra.mxu0 %v3446
    %3599 = vmatpush.msra.mxu0 %v3442
    %3600 = vmatpush.msra.mxu0 %v3438
    %3601 = vmatpush.msra.mxu0 %v3434
    %3602 = vmatpush.msra.mxu0 %v3430
    %3603 = vmatpush.msra.mxu0 %v3426
    %3604 = vmatmul.f32.gmra.mxu0 %v3502
    %v3605 = vpop.f32.mrf.mxu0
    %v3606 = vadd.f32 %v3565, %v3605
    %3607 = vmatmul.f32.gmra.mxu0 %v3506
    %v3608 = vpop.f32.mrf.mxu0
    %v3609 = vadd.f32 %v3568, %v3608
    %3610 = vmatmul.f32.gmra.mxu0 %v3510
    %v3611 = vpop.f32.mrf.mxu0
    %v3612 = vadd.f32 %v3571, %v3611
    %3613 = vmatmul.f32.gmra.mxu0 %v3514
    %v3614 = vpop.f32.mrf.mxu0
    %v3615 = vadd.f32 %v3574, %v3614
    %3616 = vmatmul.f32.gmra.mxu0 %v3518
    %v3617 = vpop.f32.mrf.mxu0
    %v3618 = vadd.f32 %v3577, %v3617
    %3619 = vmatmul.f32.gmra.mxu0 %v3522
    %v3620 = vpop.f32.mrf.mxu0
    %v3621 = vadd.f32 %v3580, %v3620
    %3622 = vmatmul.f32.gmra.mxu0 %v3526
    %v3623 = vpop.f32.mrf.mxu0
    %v3624 = vadd.f32 %v3583, %v3623
    %3625 = vmatmul.f32.gmra.mxu0 %v3530
    %v3626 = vpop.f32.mrf.mxu0
    %v3627 = vadd.f32 %v3586, %v3626
    %3628 = vdwg.mxu0
    %3629 = vmatpush.msra.mxu0 %v3423
    %3630 = vmatpush.msra.mxu0 %v3419
    %3631 = vmatpush.msra.mxu0 %v3415
    %3632 = vmatpush.msra.mxu0 %v3411
    %3633 = vmatpush.msra.mxu0 %v3407
    %3634 = vmatpush.msra.mxu0 %v3403
    %3635 = vmatpush.msra.mxu0 %v3399
    %3636 = vmatpush.msra.mxu0 %v3395
    %3637 = vmatpush.msra.mxu0 %v3391
    %3638 = vmatpush.msra.mxu0 %v3387
    %3639 = vmatpush.msra.mxu0 %v3383
    %3640 = vmatpush.msra.mxu0 %v3379
    %3641 = vmatpush.msra.mxu0 %v3375
    %3642 = vmatpush.msra.mxu0 %v3371
    %3643 = vmatpush.msra.mxu0 %v3367
    %3644 = vmatpush.msra.mxu0 %v3363
    %3645 = vmatmul.f32.gmra.mxu0 %v3499
    %v3646 = vpop.f32.mrf.mxu0
    %v3647 = vadd.f32 0.0, %v3646
    %3648 = vmatmul.f32.gmra.mxu0 %v3504
    %v3649 = vpop.f32.mrf.mxu0
    %v3650 = vadd.f32 0.0, %v3649
    %3651 = vmatmul.f32.gmra.mxu0 %v3508
    %v3652 = vpop.f32.mrf.mxu0
    %v3653 = vadd.f32 0.0, %v3652
    %3654 = vmatmul.f32.gmra.mxu0 %v3512
    %v3655 = vpop.f32.mrf.mxu0
    %v3656 = vadd.f32 0.0, %v3655
    %3657 = vmatmul.f32.gmra.mxu0 %v3516
    %v3658 = vpop.f32.mrf.mxu0
    %v3659 = vadd.f32 0.0, %v3658
    %3660 = vmatmul.f32.gmra.mxu0 %v3520
    %v3661 = vpop.f32.mrf.mxu0
    %v3662 = vadd.f32 0.0, %v3661
    %3663 = vmatmul.f32.gmra.mxu0 %v3524
    %v3664 = vpop.f32.mrf.mxu0
    %v3665 = vadd.f32 0.0, %v3664
    %3666 = vmatmul.f32.gmra.mxu0 %v3528
    %v3667 = vpop.f32.mrf.mxu0
    %v3668 = vadd.f32 0.0, %v3667
    %3669 = vdwg.mxu0
    %3670 = vmatpush.msra.mxu0 %v3487
    %3671 = vmatpush.msra.mxu0 %v3483
    %3672 = vmatpush.msra.mxu0 %v3479
    %3673 = vmatpush.msra.mxu0 %v3475
    %3674 = vmatpush.msra.mxu0 %v3471
    %3675 = vmatpush.msra.mxu0 %v3467
    %3676 = vmatpush.msra.mxu0 %v3463
    %3677 = vmatpush.msra.mxu0 %v3459
    %3678 = vmatpush.msra.mxu0 %v3455
    %3679 = vmatpush.msra.mxu0 %v3451
    %3680 = vmatpush.msra.mxu0 %v3447
    %3681 = vmatpush.msra.mxu0 %v3443
    %3682 = vmatpush.msra.mxu0 %v3439
    %3683 = vmatpush.msra.mxu0 %v3435
    %3684 = vmatpush.msra.mxu0 %v3431
    %3685 = vmatpush.msra.mxu0 %v3427
    %3686 = vmatmul.f32.gmra.mxu0 %v3502
    %v3687 = vpop.f32.mrf.mxu0
    %v3688 = vadd.f32 %v3647, %v3687
    %3689 = vmatmul.f32.gmra.mxu0 %v3506
    %v3690 = vpop.f32.mrf.mxu0
    %v3691 = vadd.f32 %v3650, %v3690
    %3692 = vmatmul.f32.gmra.mxu0 %v3510
    %v3693 = vpop.f32.mrf.mxu0
    %v3694 = vadd.f32 %v3653, %v3693
    %3695 = vmatmul.f32.gmra.mxu0 %v3514
    %v3696 = vpop.f32.mrf.mxu0
    %v3697 = vadd.f32 %v3656, %v3696
    %3698 = vmatmul.f32.gmra.mxu0 %v3518
    %v3699 = vpop.f32.mrf.mxu0
    %v3700 = vadd.f32 %v3659, %v3699
    %3701 = vmatmul.f32.gmra.mxu0 %v3522
    %v3702 = vpop.f32.mrf.mxu0
    %v3703 = vadd.f32 %v3662, %v3702
    %3704 = vmatmul.f32.gmra.mxu0 %v3526
    %v3705 = vpop.f32.mrf.mxu0
    %v3706 = vadd.f32 %v3665, %v3705
    %3707 = vmatmul.f32.gmra.mxu0 %v3530
    %v3708 = vpop.f32.mrf.mxu0
    %v3709 = vadd.f32 %v3668, %v3708
    %3710 = vdwg.mxu0
    %3711 = vmatpush.msra.mxu0 %v3424
    %3712 = vmatpush.msra.mxu0 %v3420
    %3713 = vmatpush.msra.mxu0 %v3416
    %3714 = vmatpush.msra.mxu0 %v3412
    %3715 = vmatpush.msra.mxu0 %v3408
    %3716 = vmatpush.msra.mxu0 %v3404
    %3717 = vmatpush.msra.mxu0 %v3400
    %3718 = vmatpush.msra.mxu0 %v3396
    %3719 = vmatpush.msra.mxu0 %v3392
    %3720 = vmatpush.msra.mxu0 %v3388
    %3721 = vmatpush.msra.mxu0 %v3384
    %3722 = vmatpush.msra.mxu0 %v3380
    %3723 = vmatpush.msra.mxu0 %v3376
    %3724 = vmatpush.msra.mxu0 %v3372
    %3725 = vmatpush.msra.mxu0 %v3368
    %3726 = vmatpush.msra.mxu0 %v3364
    %3727 = vmatmul.f32.gmra.mxu0 %v3499
    %v3728 = vpop.f32.mrf.mxu0
    %v3729 = vadd.f32 0.0, %v3728
    %3730 = vmatmul.f32.gmra.mxu0 %v3504
    %v3731 = vpop.f32.mrf.mxu0
    %v3732 = vadd.f32 0.0, %v3731
    %3733 = vmatmul.f32.gmra.mxu0 %v3508
    %v3734 = vpop.f32.mrf.mxu0
    %v3735 = vadd.f32 0.0, %v3734
    %3736 = vmatmul.f32.gmra.mxu0 %v3512
    %v3737 = vpop.f32.mrf.mxu0
    %v3738 = vadd.f32 0.0, %v3737
    %3739 = vmatmul.f32.gmra.mxu0 %v3516
    %v3740 = vpop.f32.mrf.mxu0
    %v3741 = vadd.f32 0.0, %v3740
    %3742 = vmatmul.f32.gmra.mxu0 %v3520
    %v3743 = vpop.f32.mrf.mxu0
    %v3744 = vadd.f32 0.0, %v3743
    %3745 = vmatmul.f32.gmra.mxu0 %v3524
    %v3746 = vpop.f32.mrf.mxu0
    %v3747 = vadd.f32 0.0, %v3746
    %3748 = vmatmul.f32.gmra.mxu0 %v3528
    %v3749 = vpop.f32.mrf.mxu0
    %v3750 = vadd.f32 0.0, %v3749
    %3751 = vdwg.mxu0
    %3752 = vmatpush.msra.mxu0 %v3488
    %3753 = vmatpush.msra.mxu0 %v3484
    %3754 = vmatpush.msra.mxu0 %v3480
    %3755 = vmatpush.msra.mxu0 %v3476
    %3756 = vmatpush.msra.mxu0 %v3472
    %3757 = vmatpush.msra.mxu0 %v3468
    %3758 = vmatpush.msra.mxu0 %v3464
    %3759 = vmatpush.msra.mxu0 %v3460
    %3760 = vmatpush.msra.mxu0 %v3456
    %3761 = vmatpush.msra.mxu0 %v3452
    %3762 = vmatpush.msra.mxu0 %v3448
    %3763 = vmatpush.msra.mxu0 %v3444
    %3764 = vmatpush.msra.mxu0 %v3440
    %3765 = vmatpush.msra.mxu0 %v3436
    %3766 = vmatpush.msra.mxu0 %v3432
    %3767 = vmatpush.msra.mxu0 %v3428
    %3768 = vmatmul.f32.gmra.mxu0 %v3502
    %v3769 = vpop.f32.mrf.mxu0
    %v3770 = vadd.f32 %v3729, %v3769
    %3771 = vmatmul.f32.gmra.mxu0 %v3506
    %v3772 = vpop.f32.mrf.mxu0
    %v3773 = vadd.f32 %v3732, %v3772
    %3774 = vmatmul.f32.gmra.mxu0 %v3510
    %v3775 = vpop.f32.mrf.mxu0
    %v3776 = vadd.f32 %v3735, %v3775
    %3777 = vmatmul.f32.gmra.mxu0 %v3514
    %v3778 = vpop.f32.mrf.mxu0
    %v3779 = vadd.f32 %v3738, %v3778
    %3780 = vmatmul.f32.gmra.mxu0 %v3518
    %v3781 = vpop.f32.mrf.mxu0
    %v3782 = vadd.f32 %v3741, %v3781
    %3783 = vmatmul.f32.gmra.mxu0 %v3522
    %v3784 = vpop.f32.mrf.mxu0
    %v3785 = vadd.f32 %v3744, %v3784
    %3786 = vmatmul.f32.gmra.mxu0 %v3526
    %v3787 = vpop.f32.mrf.mxu0
    %v3788 = vadd.f32 %v3747, %v3787
    %3789 = vmatmul.f32.gmra.mxu0 %v3530
    %v3790 = vpop.f32.mrf.mxu0
    %v3791 = vadd.f32 %v3750, %v3790
    %3792 = vdwg.mxu0
    %3793 = vmatpush.msra.mxu0 %v3425
    %3794 = vmatpush.msra.mxu0 %v3421
    %3795 = vmatpush.msra.mxu0 %v3417
    %3796 = vmatpush.msra.mxu0 %v3413
    %3797 = vmatpush.msra.mxu0 %v3409
    %3798 = vmatpush.msra.mxu0 %v3405
    %3799 = vmatpush.msra.mxu0 %v3401
    %3800 = vmatpush.msra.mxu0 %v3397
    %3801 = vmatpush.msra.mxu0 %v3393
    %3802 = vmatpush.msra.mxu0 %v3389
    %3803 = vmatpush.msra.mxu0 %v3385
    %3804 = vmatpush.msra.mxu0 %v3381
    %3805 = vmatpush.msra.mxu0 %v3377
    %3806 = vmatpush.msra.mxu0 %v3373
    %3807 = vmatpush.msra.mxu0 %v3369
    %3808 = vmatpush.msra.mxu0 %v3365
    %3809 = vmatmul.f32.gmra.mxu0 %v3499
    %v3810 = vpop.f32.mrf.mxu0
    %v3811 = vadd.f32 0.0, %v3810
    %3812 = vmatmul.f32.gmra.mxu0 %v3504
    %v3813 = vpop.f32.mrf.mxu0
    %v3814 = vadd.f32 0.0, %v3813
    %3815 = vmatmul.f32.gmra.mxu0 %v3508
    %v3816 = vpop.f32.mrf.mxu0
    %v3817 = vadd.f32 0.0, %v3816
    %3818 = vmatmul.f32.gmra.mxu0 %v3512
    %v3819 = vpop.f32.mrf.mxu0
    %v3820 = vadd.f32 0.0, %v3819
    %3821 = vmatmul.f32.gmra.mxu0 %v3516
    %v3822 = vpop.f32.mrf.mxu0
    %v3823 = vadd.f32 0.0, %v3822
    %3824 = vmatmul.f32.gmra.mxu0 %v3520
    %v3825 = vpop.f32.mrf.mxu0
    %v3826 = vadd.f32 0.0, %v3825
    %3827 = vmatmul.f32.gmra.mxu0 %v3524
    %v3828 = vpop.f32.mrf.mxu0
    %v3829 = vadd.f32 0.0, %v3828
    %3830 = vmatmul.f32.gmra.mxu0 %v3528
    %v3831 = vpop.f32.mrf.mxu0
    %v3832 = vadd.f32 0.0, %v3831
    %3833 = vdwg.mxu0
    %3834 = vmatpush.msra.mxu0 %v3489
    %3835 = vmatpush.msra.mxu0 %v3485
    %3836 = vmatpush.msra.mxu0 %v3481
    %3837 = vmatpush.msra.mxu0 %v3477
    %3838 = vmatpush.msra.mxu0 %v3473
    %3839 = vmatpush.msra.mxu0 %v3469
    %3840 = vmatpush.msra.mxu0 %v3465
    %3841 = vmatpush.msra.mxu0 %v3461
    %3842 = vmatpush.msra.mxu0 %v3457
    %3843 = vmatpush.msra.mxu0 %v3453
    %3844 = vmatpush.msra.mxu0 %v3449
    %3845 = vmatpush.msra.mxu0 %v3445
    %3846 = vmatpush.msra.mxu0 %v3441
    %3847 = vmatpush.msra.mxu0 %v3437
    %3848 = vmatpush.msra.mxu0 %v3433
    %3849 = vmatpush.msra.mxu0 %v3429
    %3850 = vmatmul.f32.gmra.mxu0 %v3502
    %v3851 = vpop.f32.mrf.mxu0
    %v3852 = vadd.f32 %v3811, %v3851
    %3853 = vmatmul.f32.gmra.mxu0 %v3506
    %v3854 = vpop.f32.mrf.mxu0
    %v3855 = vadd.f32 %v3814, %v3854
    %3856 = vmatmul.f32.gmra.mxu0 %v3510
    %v3857 = vpop.f32.mrf.mxu0
    %v3858 = vadd.f32 %v3817, %v3857
    %3859 = vmatmul.f32.gmra.mxu0 %v3514
    %v3860 = vpop.f32.mrf.mxu0
    %v3861 = vadd.f32 %v3820, %v3860
    %3862 = vmatmul.f32.gmra.mxu0 %v3518
    %v3863 = vpop.f32.mrf.mxu0
    %v3864 = vadd.f32 %v3823, %v3863
    %3865 = vmatmul.f32.gmra.mxu0 %v3522
    %v3866 = vpop.f32.mrf.mxu0
    %v3867 = vadd.f32 %v3826, %v3866
    %3868 = vmatmul.f32.gmra.mxu0 %v3526
    %v3869 = vpop.f32.mrf.mxu0
    %v3870 = vadd.f32 %v3829, %v3869
    %3871 = vmatmul.f32.gmra.mxu0 %v3530
    %v3872 = vpop.f32.mrf.mxu0
    %v3873 = vadd.f32 %v3832, %v3872
    %3874 = vdwg.mxu0
    %v3875 = vadd.f32 %v3297, %v3606
    %v3876 = vadd.f32 %v3298, %v3688
    %v3877 = vadd.f32 %v3299, %v3770
    %v3878 = vadd.f32 %v3300, %v3852
    %v3879 = vadd.f32 %v3301, %v3609
    %v3880 = vadd.f32 %v3302, %v3691
    %v3881 = vadd.f32 %v3303, %v3773
    %v3882 = vadd.f32 %v3304, %v3855
    %v3883 = vadd.f32 %v3305, %v3612
    %v3884 = vadd.f32 %v3306, %v3694
    %v3885 = vadd.f32 %v3307, %v3776
    %v3886 = vadd.f32 %v3308, %v3858
    %v3887 = vadd.f32 %v3309, %v3615
    %v3888 = vadd.f32 %v3310, %v3697
    %v3889 = vadd.f32 %v3311, %v3779
    %v3890 = vadd.f32 %v3312, %v3861
    %v3891 = vadd.f32 %v3313, %v3618
    %v3892 = vadd.f32 %v3314, %v3700
    %v3893 = vadd.f32 %v3315, %v3782
    %v3894 = vadd.f32 %v3316, %v3864
    %v3895 = vadd.f32 %v3317, %v3621
    %v3896 = vadd.f32 %v3318, %v3703
    %v3897 = vadd.f32 %v3319, %v3785
    %v3898 = vadd.f32 %v3320, %v3867
    %v3899 = vadd.f32 %v3321, %v3624
    %v3900 = vadd.f32 %v3322, %v3706
    %v3901 = vadd.f32 %v3323, %v3788
    %v3902 = vadd.f32 %v3324, %v3870
    %v3903 = vadd.f32 %v3325, %v3627
    %v3904 = vadd.f32 %v3326, %v3709
    %v3905 = vadd.f32 %v3327, %v3791
    %v3906 = vadd.f32 %v3328, %v3873
    %v3907 = vld [vmem:[#allocation2 + $0x80] sm:$0xff]
    %v3908 = vld [vmem:[#allocation2 + $0x88] sm:$0xff]
    %v3909 = vld [vmem:[#allocation2 + $0x10] sm:$0xfe]
    %v3910 = vld [vmem:[#allocation2 + $0x18] sm:$0xfe]
    %v3911 = vld [vmem:[#allocation2 + $0x20] sm:$0xff]
    %v3912 = vld [vmem:[#allocation2 + $0x28] sm:$0xff]
    %v3913 = vld [vmem:[#allocation2 + $0x30] sm:$0xff]
    %v3914 = vld [vmem:[#allocation2 + $0x38] sm:$0xff]
    %v3915 = vld [vmem:[#allocation2 + $0x40] sm:$0xff]
    %v3916 = vld [vmem:[#allocation2 + $0x48] sm:$0xff]
    %v3917 = vld [vmem:[#allocation2 + $0x50] sm:$0xff]
    %v3918 = vld [vmem:[#allocation2 + $0x58] sm:$0xff]
    %v3919 = vld [vmem:[#allocation2 + $0x60] sm:$0xff]
    %v3920 = vld [vmem:[#allocation2 + $0x68] sm:$0xff]
    %v3921 = vld [vmem:[#allocation2 + $0x70] sm:$0xff]
    %v3922 = vld [vmem:[#allocation2 + $0x78] sm:$0xff]
    %v3923 = vld [vmem:[#allocation2 + $0x80] sm:$0xff]
    %v3924 = vld [vmem:[#allocation2 + $0x88] sm:$0xff]
    %v3925 = vld [vmem:[#allocation2 + $0x90] sm:$0x1]
    %v3926 = vld [vmem:[#allocation2 + $0x98] sm:$0x1]
    %v3945 = vrot.slane %v3909, 1
    %v3946 = vrot.slane %v3911, 1
    %v3947 = vsel %vm1670, %v3945, %v3946
    %v3948 = vrot.slane %v3910, 1
    %v3949 = vrot.slane %v3912, 1
    %v3950 = vsel %vm1670, %v3948, %v3949
    %v3951 = vrot.slane %v3913, 1
    %v3952 = vsel %vm1670, %v3946, %v3951
    %v3953 = vrot.slane %v3914, 1
    %v3954 = vsel %vm1670, %v3949, %v3953
    %v3955 = vrot.slane %v3915, 1
    %v3956 = vsel %vm1670, %v3951, %v3955
    %v3957 = vrot.slane %v3916, 1
    %v3958 = vsel %vm1670, %v3953, %v3957
    %v3959 = vrot.slane %v3917, 1
    %v3960 = vsel %vm1670, %v3955, %v3959
    %v3961 = vrot.slane %v3918, 1
    %v3962 = vsel %vm1670, %v3957, %v3961
    %v3963 = vrot.slane %v3919, 1
    %v3964 = vsel %vm1670, %v3959, %v3963
    %v3965 = vrot.slane %v3920, 1
    %v3966 = vsel %vm1670, %v3961, %v3965
    %v3967 = vrot.slane %v3921, 1
    %v3968 = vsel %vm1670, %v3963, %v3967
    %v3969 = vrot.slane %v3922, 1
    %v3970 = vsel %vm1670, %v3965, %v3969
    %v3971 = vrot.slane %v3923, 1
    %v3972 = vsel %vm1670, %v3967, %v3971
    %v3973 = vrot.slane %v3924, 1
    %v3974 = vsel %vm1670, %v3969, %v3973
    %v3975 = vrot.slane %v3925, 1
    %v3976 = vsel %vm1670, %v3971, %v3975
    %v3977 = vrot.slane %v3926, 1
    %v3978 = vsel %vm1670, %v3973, %v3977
    %v3995 = vmax.f32 %v1634, %v3947
    %v3996 = vmax.f32 %v1635, %v3950
    %v3997 = vmax.f32 %v1636, %v3952
    %v3998 = vmax.f32 %v1637, %v3954
    %v3999 = vmax.f32 %v1638, %v3956
    %v4000 = vmax.f32 %v1639, %v3958
    %v4001 = vmax.f32 %v1640, %v3960
    %v4002 = vmax.f32 %v1641, %v3962
    %v4003 = vmax.f32 %v1642, %v3964
    %v4004 = vmax.f32 %v1643, %v3966
    %v4005 = vmax.f32 %v1644, %v3968
    %v4006 = vmax.f32 %v1645, %v3970
    %v4007 = vmax.f32 %v1646, %v3972
    %v4008 = vmax.f32 %v1647, %v3974
    %v4009 = vmax.f32 %v3907, %v3976
    %v4010 = vmax.f32 %v3908, %v3978
    %s4011 = scalar_lea.vmem [#allocation9], 4096
    %v4012 = vld [vmem:[%s4011] sm:$0xff]
    %v4013 = vld [vmem:[%s4011 + $0x8] sm:$0xff]
    %v4014 = vld [vmem:[%s4011 + $0x10] sm:$0xff]
    %v4015 = vld [vmem:[%s4011 + $0x18] sm:$0xff]
    %v4016 = vld [vmem:[%s4011 + $0x20] sm:$0xff]
    %v4017 = vld [vmem:[%s4011 + $0x28] sm:$0xff]
    %v4018 = vld [vmem:[%s4011 + $0x30] sm:$0xff]
    %v4019 = vld [vmem:[%s4011 + $0x38] sm:$0xff]
    %v4020 = vld [vmem:[%s4011 + $0x40] sm:$0xff]
    %v4021 = vld [vmem:[%s4011 + $0x48] sm:$0xff]
    %v4022 = vld [vmem:[%s4011 + $0x50] sm:$0xff]
    %v4023 = vld [vmem:[%s4011 + $0x58] sm:$0xff]
    %v4024 = vld [vmem:[%s4011 + $0x60] sm:$0xff]
    %v4025 = vld [vmem:[%s4011 + $0x68] sm:$0xff]
    %v4026 = vld [vmem:[%s4011 + $0x70] sm:$0xff]
    %v4027 = vld [vmem:[%s4011 + $0x78] sm:$0xff]
    %v4028 = vld [vmem:[%s4011 + $0x80] sm:$0xff]
    %v4029 = vld [vmem:[%s4011 + $0x88] sm:$0xff]
    %v4030 = vld [vmem:[%s4011 + $0x90] sm:$0xff]
    %v4031 = vld [vmem:[%s4011 + $0x98] sm:$0xff]
    %v4032 = vld [vmem:[%s4011 + $0xa0] sm:$0xff]
    %v4033 = vld [vmem:[%s4011 + $0xa8] sm:$0xff]
    %v4034 = vld [vmem:[%s4011 + $0xb0] sm:$0xff]
    %v4035 = vld [vmem:[%s4011 + $0xb8] sm:$0xff]
    %v4036 = vld [vmem:[%s4011 + $0xc0] sm:$0xff]
    %v4037 = vld [vmem:[%s4011 + $0xc8] sm:$0xff]
    %v4038 = vld [vmem:[%s4011 + $0xd0] sm:$0xff]
    %v4039 = vld [vmem:[%s4011 + $0xd8] sm:$0xff]
    %v4040 = vld [vmem:[%s4011 + $0xe0] sm:$0xff]
    %v4041 = vld [vmem:[%s4011 + $0xe8] sm:$0xff]
    %v4042 = vld [vmem:[%s4011 + $0xf0] sm:$0xff]
    %v4043 = vld [vmem:[%s4011 + $0xf8] sm:$0xff]
    %v4044 = vld [vmem:[%s4011 + $0x100] sm:$0xff]
    %v4045 = vld [vmem:[%s4011 + $0x108] sm:$0xff]
    %v4046 = vld [vmem:[%s4011 + $0x110] sm:$0xff]
    %v4047 = vld [vmem:[%s4011 + $0x118] sm:$0xff]
    %v4048 = vld [vmem:[%s4011 + $0x120] sm:$0xff]
    %v4049 = vld [vmem:[%s4011 + $0x128] sm:$0xff]
    %v4050 = vld [vmem:[%s4011 + $0x130] sm:$0xff]
    %v4051 = vld [vmem:[%s4011 + $0x138] sm:$0xff]
    %v4052 = vld [vmem:[%s4011 + $0x140] sm:$0xff]
    %v4053 = vld [vmem:[%s4011 + $0x148] sm:$0xff]
    %v4054 = vld [vmem:[%s4011 + $0x150] sm:$0xff]
    %v4055 = vld [vmem:[%s4011 + $0x158] sm:$0xff]
    %v4056 = vld [vmem:[%s4011 + $0x160] sm:$0xff]
    %v4057 = vld [vmem:[%s4011 + $0x168] sm:$0xff]
    %v4058 = vld [vmem:[%s4011 + $0x170] sm:$0xff]
    %v4059 = vld [vmem:[%s4011 + $0x178] sm:$0xff]
    %v4060 = vld [vmem:[%s4011 + $0x180] sm:$0xff]
    %v4061 = vld [vmem:[%s4011 + $0x188] sm:$0xff]
    %v4062 = vld [vmem:[%s4011 + $0x190] sm:$0xff]
    %v4063 = vld [vmem:[%s4011 + $0x198] sm:$0xff]
    %v4064 = vld [vmem:[%s4011 + $0x1a0] sm:$0xff]
    %v4065 = vld [vmem:[%s4011 + $0x1a8] sm:$0xff]
    %v4066 = vld [vmem:[%s4011 + $0x1b0] sm:$0xff]
    %v4067 = vld [vmem:[%s4011 + $0x1b8] sm:$0xff]
    %v4068 = vld [vmem:[%s4011 + $0x1c0] sm:$0xff]
    %v4069 = vld [vmem:[%s4011 + $0x1c8] sm:$0xff]
    %v4070 = vld [vmem:[%s4011 + $0x1d0] sm:$0xff]
    %v4071 = vld [vmem:[%s4011 + $0x1d8] sm:$0xff]
    %v4072 = vld [vmem:[%s4011 + $0x1e0] sm:$0xff]
    %v4073 = vld [vmem:[%s4011 + $0x1e8] sm:$0xff]
    %v4074 = vld [vmem:[%s4011 + $0x1f0] sm:$0xff]
    %v4075 = vld [vmem:[%s4011 + $0x1f8] sm:$0xff]
    %v4076 = vld [vmem:[%s4011 + $0x200] sm:$0xff]
    %v4077 = vld [vmem:[%s4011 + $0x208] sm:$0xff]
    %v4078 = vld [vmem:[%s4011 + $0x210] sm:$0xff]
    %v4079 = vld [vmem:[%s4011 + $0x218] sm:$0xff]
    %v4080 = vld [vmem:[%s4011 + $0x220] sm:$0xff]
    %v4081 = vld [vmem:[%s4011 + $0x228] sm:$0xff]
    %v4082 = vld [vmem:[%s4011 + $0x230] sm:$0xff]
    %v4083 = vld [vmem:[%s4011 + $0x238] sm:$0xff]
    %v4084 = vld [vmem:[%s4011 + $0x240] sm:$0xff]
    %v4085 = vld [vmem:[%s4011 + $0x248] sm:$0xff]
    %v4086 = vld [vmem:[%s4011 + $0x250] sm:$0xff]
    %v4087 = vld [vmem:[%s4011 + $0x258] sm:$0xff]
    %v4088 = vld [vmem:[%s4011 + $0x260] sm:$0xff]
    %v4089 = vld [vmem:[%s4011 + $0x268] sm:$0xff]
    %v4090 = vld [vmem:[%s4011 + $0x270] sm:$0xff]
    %v4091 = vld [vmem:[%s4011 + $0x278] sm:$0xff]
    %v4092 = vld [vmem:[%s4011 + $0x280] sm:$0xff]
    %v4093 = vld [vmem:[%s4011 + $0x288] sm:$0xff]
    %v4094 = vld [vmem:[%s4011 + $0x290] sm:$0xff]
    %v4095 = vld [vmem:[%s4011 + $0x298] sm:$0xff]
    %v4096 = vld [vmem:[%s4011 + $0x2a0] sm:$0xff]
    %v4097 = vld [vmem:[%s4011 + $0x2a8] sm:$0xff]
    %v4098 = vld [vmem:[%s4011 + $0x2b0] sm:$0xff]
    %v4099 = vld [vmem:[%s4011 + $0x2b8] sm:$0xff]
    %v4100 = vld [vmem:[%s4011 + $0x2c0] sm:$0xff]
    %v4101 = vld [vmem:[%s4011 + $0x2c8] sm:$0xff]
    %v4102 = vld [vmem:[%s4011 + $0x2d0] sm:$0xff]
    %v4103 = vld [vmem:[%s4011 + $0x2d8] sm:$0xff]
    %v4104 = vld [vmem:[%s4011 + $0x2e0] sm:$0xff]
    %v4105 = vld [vmem:[%s4011 + $0x2e8] sm:$0xff]
    %v4106 = vld [vmem:[%s4011 + $0x2f0] sm:$0xff]
    %v4107 = vld [vmem:[%s4011 + $0x2f8] sm:$0xff]
    %v4108 = vld [vmem:[%s4011 + $0x300] sm:$0xff]
    %v4109 = vld [vmem:[%s4011 + $0x308] sm:$0xff]
    %v4110 = vld [vmem:[%s4011 + $0x310] sm:$0xff]
    %v4111 = vld [vmem:[%s4011 + $0x318] sm:$0xff]
    %v4112 = vld [vmem:[%s4011 + $0x320] sm:$0xff]
    %v4113 = vld [vmem:[%s4011 + $0x328] sm:$0xff]
    %v4114 = vld [vmem:[%s4011 + $0x330] sm:$0xff]
    %v4115 = vld [vmem:[%s4011 + $0x338] sm:$0xff]
    %v4116 = vld [vmem:[%s4011 + $0x340] sm:$0xff]
    %v4117 = vld [vmem:[%s4011 + $0x348] sm:$0xff]
    %v4118 = vld [vmem:[%s4011 + $0x350] sm:$0xff]
    %v4119 = vld [vmem:[%s4011 + $0x358] sm:$0xff]
    %v4120 = vld [vmem:[%s4011 + $0x360] sm:$0xff]
    %v4121 = vld [vmem:[%s4011 + $0x368] sm:$0xff]
    %v4122 = vld [vmem:[%s4011 + $0x370] sm:$0xff]
    %v4123 = vld [vmem:[%s4011 + $0x378] sm:$0xff]
    %v4124 = vld [vmem:[%s4011 + $0x380] sm:$0xff]
    %v4125 = vld [vmem:[%s4011 + $0x388] sm:$0xff]
    %v4126 = vld [vmem:[%s4011 + $0x390] sm:$0xff]
    %v4127 = vld [vmem:[%s4011 + $0x398] sm:$0xff]
    %v4128 = vld [vmem:[%s4011 + $0x3a0] sm:$0xff]
    %v4129 = vld [vmem:[%s4011 + $0x3a8] sm:$0xff]
    %v4130 = vld [vmem:[%s4011 + $0x3b0] sm:$0xff]
    %v4131 = vld [vmem:[%s4011 + $0x3b8] sm:$0xff]
    %v4132 = vld [vmem:[%s4011 + $0x3c0] sm:$0xff]
    %v4133 = vld [vmem:[%s4011 + $0x3c8] sm:$0xff]
    %v4134 = vld [vmem:[%s4011 + $0x3d0] sm:$0xff]
    %v4135 = vld [vmem:[%s4011 + $0x3d8] sm:$0xff]
    %v4136 = vld [vmem:[%s4011 + $0x3e0] sm:$0xff]
    %v4137 = vld [vmem:[%s4011 + $0x3e8] sm:$0xff]
    %v4138 = vld [vmem:[%s4011 + $0x3f0] sm:$0xff]
    %v4139 = vld [vmem:[%s4011 + $0x3f8] sm:$0xff]
    %4140 = vmatpush.msra.mxu0 %v4072
    %4141 = vmatpush.msra.mxu0 %v4068
    %4142 = vmatpush.msra.mxu0 %v4064
    %4143 = vmatpush.msra.mxu0 %v4060
    %4144 = vmatpush.msra.mxu0 %v4056
    %4145 = vmatpush.msra.mxu0 %v4052
    %4146 = vmatpush.msra.mxu0 %v4048
    %4147 = vmatpush.msra.mxu0 %v4044
    %4148 = vmatpush.msra.mxu0 %v4040
    %4149 = vmatpush.msra.mxu0 %v4036
    %4150 = vmatpush.msra.mxu0 %v4032
    %4151 = vmatpush.msra.mxu0 %v4028
    %4152 = vmatpush.msra.mxu0 %v4024
    %4153 = vmatpush.msra.mxu0 %v4020
    %4154 = vmatpush.msra.mxu0 %v4016
    %4155 = vmatpush.msra.mxu0 %v4012
    %4156 = vmatmul.f32.gmra.mxu0 %v3995
    %v4157 = vpop.f32.mrf.mxu0
    %v4158 = vadd.f32 0.0, %v4157
    %4159 = vmatmul.f32.gmra.mxu0 %v3997
    %v4160 = vpop.f32.mrf.mxu0
    %v4161 = vadd.f32 0.0, %v4160
    %4162 = vmatmul.f32.gmra.mxu0 %v3999
    %v4163 = vpop.f32.mrf.mxu0
    %v4164 = vadd.f32 0.0, %v4163
    %4165 = vmatmul.f32.gmra.mxu0 %v4001
    %v4166 = vpop.f32.mrf.mxu0
    %v4167 = vadd.f32 0.0, %v4166
    %4168 = vmatmul.f32.gmra.mxu0 %v4003
    %v4169 = vpop.f32.mrf.mxu0
    %v4170 = vadd.f32 0.0, %v4169
    %4171 = vmatmul.f32.gmra.mxu0 %v4005
    %v4172 = vpop.f32.mrf.mxu0
    %v4173 = vadd.f32 0.0, %v4172
    %4174 = vmatmul.f32.gmra.mxu0 %v4007
    %v4175 = vpop.f32.mrf.mxu0
    %v4176 = vadd.f32 0.0, %v4175
    %4177 = vmatmul.f32.gmra.mxu0 %v4009
    %v4178 = vpop.f32.mrf.mxu0
    %v4179 = vadd.f32 0.0, %v4178
    %4180 = vdwg.mxu0
    %4181 = vmatpush.msra.mxu0 %v4136
    %4182 = vmatpush.msra.mxu0 %v4132
    %4183 = vmatpush.msra.mxu0 %v4128
    %4184 = vmatpush.msra.mxu0 %v4124
    %4185 = vmatpush.msra.mxu0 %v4120
    %4186 = vmatpush.msra.mxu0 %v4116
    %4187 = vmatpush.msra.mxu0 %v4112
    %4188 = vmatpush.msra.mxu0 %v4108
    %4189 = vmatpush.msra.mxu0 %v4104
    %4190 = vmatpush.msra.mxu0 %v4100
    %4191 = vmatpush.msra.mxu0 %v4096
    %4192 = vmatpush.msra.mxu0 %v4092
    %4193 = vmatpush.msra.mxu0 %v4088
    %4194 = vmatpush.msra.mxu0 %v4084
    %4195 = vmatpush.msra.mxu0 %v4080
    %4196 = vmatpush.msra.mxu0 %v4076
    %4197 = vmatmul.f32.gmra.mxu0 %v3996
    %v4198 = vpop.f32.mrf.mxu0
    %v4199 = vadd.f32 %v4158, %v4198
    %4200 = vmatmul.f32.gmra.mxu0 %v3998
    %v4201 = vpop.f32.mrf.mxu0
    %v4202 = vadd.f32 %v4161, %v4201
    %4203 = vmatmul.f32.gmra.mxu0 %v4000
    %v4204 = vpop.f32.mrf.mxu0
    %v4205 = vadd.f32 %v4164, %v4204
    %4206 = vmatmul.f32.gmra.mxu0 %v4002
    %v4207 = vpop.f32.mrf.mxu0
    %v4208 = vadd.f32 %v4167, %v4207
    %4209 = vmatmul.f32.gmra.mxu0 %v4004
    %v4210 = vpop.f32.mrf.mxu0
    %v4211 = vadd.f32 %v4170, %v4210
    %4212 = vmatmul.f32.gmra.mxu0 %v4006
    %v4213 = vpop.f32.mrf.mxu0
    %v4214 = vadd.f32 %v4173, %v4213
    %4215 = vmatmul.f32.gmra.mxu0 %v4008
    %v4216 = vpop.f32.mrf.mxu0
    %v4217 = vadd.f32 %v4176, %v4216
    %4218 = vmatmul.f32.gmra.mxu0 %v4010
    %v4219 = vpop.f32.mrf.mxu0
    %v4220 = vadd.f32 %v4179, %v4219
    %4221 = vdwg.mxu0
    %4222 = vmatpush.msra.mxu0 %v4073
    %4223 = vmatpush.msra.mxu0 %v4069
    %4224 = vmatpush.msra.mxu0 %v4065
    %4225 = vmatpush.msra.mxu0 %v4061
    %4226 = vmatpush.msra.mxu0 %v4057
    %4227 = vmatpush.msra.mxu0 %v4053
    %4228 = vmatpush.msra.mxu0 %v4049
    %4229 = vmatpush.msra.mxu0 %v4045
    %4230 = vmatpush.msra.mxu0 %v4041
    %4231 = vmatpush.msra.mxu0 %v4037
    %4232 = vmatpush.msra.mxu0 %v4033
    %4233 = vmatpush.msra.mxu0 %v4029
    %4234 = vmatpush.msra.mxu0 %v4025
    %4235 = vmatpush.msra.mxu0 %v4021
    %4236 = vmatpush.msra.mxu0 %v4017
    %4237 = vmatpush.msra.mxu0 %v4013
    %4238 = vmatmul.f32.gmra.mxu0 %v3995
    %v4239 = vpop.f32.mrf.mxu0
    %v4240 = vadd.f32 0.0, %v4239
    %4241 = vmatmul.f32.gmra.mxu0 %v3997
    %v4242 = vpop.f32.mrf.mxu0
    %v4243 = vadd.f32 0.0, %v4242
    %4244 = vmatmul.f32.gmra.mxu0 %v3999
    %v4245 = vpop.f32.mrf.mxu0
    %v4246 = vadd.f32 0.0, %v4245
    %4247 = vmatmul.f32.gmra.mxu0 %v4001
    %v4248 = vpop.f32.mrf.mxu0
    %v4249 = vadd.f32 0.0, %v4248
    %4250 = vmatmul.f32.gmra.mxu0 %v4003
    %v4251 = vpop.f32.mrf.mxu0
    %v4252 = vadd.f32 0.0, %v4251
    %4253 = vmatmul.f32.gmra.mxu0 %v4005
    %v4254 = vpop.f32.mrf.mxu0
    %v4255 = vadd.f32 0.0, %v4254
    %4256 = vmatmul.f32.gmra.mxu0 %v4007
    %v4257 = vpop.f32.mrf.mxu0
    %v4258 = vadd.f32 0.0, %v4257
    %4259 = vmatmul.f32.gmra.mxu0 %v4009
    %v4260 = vpop.f32.mrf.mxu0
    %v4261 = vadd.f32 0.0, %v4260
    %4262 = vdwg.mxu0
    %4263 = vmatpush.msra.mxu0 %v4137
    %4264 = vmatpush.msra.mxu0 %v4133
    %4265 = vmatpush.msra.mxu0 %v4129
    %4266 = vmatpush.msra.mxu0 %v4125
    %4267 = vmatpush.msra.mxu0 %v4121
    %4268 = vmatpush.msra.mxu0 %v4117
    %4269 = vmatpush.msra.mxu0 %v4113
    %4270 = vmatpush.msra.mxu0 %v4109
    %4271 = vmatpush.msra.mxu0 %v4105
    %4272 = vmatpush.msra.mxu0 %v4101
    %4273 = vmatpush.msra.mxu0 %v4097
    %4274 = vmatpush.msra.mxu0 %v4093
    %4275 = vmatpush.msra.mxu0 %v4089
    %4276 = vmatpush.msra.mxu0 %v4085
    %4277 = vmatpush.msra.mxu0 %v4081
    %4278 = vmatpush.msra.mxu0 %v4077
    %4279 = vmatmul.f32.gmra.mxu0 %v3996
    %v4280 = vpop.f32.mrf.mxu0
    %v4281 = vadd.f32 %v4240, %v4280
    %4282 = vmatmul.f32.gmra.mxu0 %v3998
    %v4283 = vpop.f32.mrf.mxu0
    %v4284 = vadd.f32 %v4243, %v4283
    %4285 = vmatmul.f32.gmra.mxu0 %v4000
    %v4286 = vpop.f32.mrf.mxu0
    %v4287 = vadd.f32 %v4246, %v4286
    %4288 = vmatmul.f32.gmra.mxu0 %v4002
    %v4289 = vpop.f32.mrf.mxu0
    %v4290 = vadd.f32 %v4249, %v4289
    %4291 = vmatmul.f32.gmra.mxu0 %v4004
    %v4292 = vpop.f32.mrf.mxu0
    %v4293 = vadd.f32 %v4252, %v4292
    %4294 = vmatmul.f32.gmra.mxu0 %v4006
    %v4295 = vpop.f32.mrf.mxu0
    %v4296 = vadd.f32 %v4255, %v4295
    %4297 = vmatmul.f32.gmra.mxu0 %v4008
    %v4298 = vpop.f32.mrf.mxu0
    %v4299 = vadd.f32 %v4258, %v4298
    %4300 = vmatmul.f32.gmra.mxu0 %v4010
    %v4301 = vpop.f32.mrf.mxu0
    %v4302 = vadd.f32 %v4261, %v4301
    %4303 = vdwg.mxu0
    %4304 = vmatpush.msra.mxu0 %v4074
    %4305 = vmatpush.msra.mxu0 %v4070
    %4306 = vmatpush.msra.mxu0 %v4066
    %4307 = vmatpush.msra.mxu0 %v4062
    %4308 = vmatpush.msra.mxu0 %v4058
    %4309 = vmatpush.msra.mxu0 %v4054
    %4310 = vmatpush.msra.mxu0 %v4050
    %4311 = vmatpush.msra.mxu0 %v4046
    %4312 = vmatpush.msra.mxu0 %v4042
    %4313 = vmatpush.msra.mxu0 %v4038
    %4314 = vmatpush.msra.mxu0 %v4034
    %4315 = vmatpush.msra.mxu0 %v4030
    %4316 = vmatpush.msra.mxu0 %v4026
    %4317 = vmatpush.msra.mxu0 %v4022
    %4318 = vmatpush.msra.mxu0 %v4018
    %4319 = vmatpush.msra.mxu0 %v4014
    %4320 = vmatmul.f32.gmra.mxu0 %v3995
    %v4321 = vpop.f32.mrf.mxu0
    %v4322 = vadd.f32 0.0, %v4321
    %4323 = vmatmul.f32.gmra.mxu0 %v3997
    %v4324 = vpop.f32.mrf.mxu0
    %v4325 = vadd.f32 0.0, %v4324
    %4326 = vmatmul.f32.gmra.mxu0 %v3999
    %v4327 = vpop.f32.mrf.mxu0
    %v4328 = vadd.f32 0.0, %v4327
    %4329 = vmatmul.f32.gmra.mxu0 %v4001
    %v4330 = vpop.f32.mrf.mxu0
    %v4331 = vadd.f32 0.0, %v4330
    %4332 = vmatmul.f32.gmra.mxu0 %v4003
    %v4333 = vpop.f32.mrf.mxu0
    %v4334 = vadd.f32 0.0, %v4333
    %4335 = vmatmul.f32.gmra.mxu0 %v4005
    %v4336 = vpop.f32.mrf.mxu0
    %v4337 = vadd.f32 0.0, %v4336
    %4338 = vmatmul.f32.gmra.mxu0 %v4007
    %v4339 = vpop.f32.mrf.mxu0
    %v4340 = vadd.f32 0.0, %v4339
    %4341 = vmatmul.f32.gmra.mxu0 %v4009
    %v4342 = vpop.f32.mrf.mxu0
    %v4343 = vadd.f32 0.0, %v4342
    %4344 = vdwg.mxu0
    %4345 = vmatpush.msra.mxu0 %v4138
    %4346 = vmatpush.msra.mxu0 %v4134
    %4347 = vmatpush.msra.mxu0 %v4130
    %4348 = vmatpush.msra.mxu0 %v4126
    %4349 = vmatpush.msra.mxu0 %v4122
    %4350 = vmatpush.msra.mxu0 %v4118
    %4351 = vmatpush.msra.mxu0 %v4114
    %4352 = vmatpush.msra.mxu0 %v4110
    %4353 = vmatpush.msra.mxu0 %v4106
    %4354 = vmatpush.msra.mxu0 %v4102
    %4355 = vmatpush.msra.mxu0 %v4098
    %4356 = vmatpush.msra.mxu0 %v4094
    %4357 = vmatpush.msra.mxu0 %v4090
    %4358 = vmatpush.msra.mxu0 %v4086
    %4359 = vmatpush.msra.mxu0 %v4082
    %4360 = vmatpush.msra.mxu0 %v4078
    %4361 = vmatmul.f32.gmra.mxu0 %v3996
    %v4362 = vpop.f32.mrf.mxu0
    %v4363 = vadd.f32 %v4322, %v4362
    %4364 = vmatmul.f32.gmra.mxu0 %v3998
    %v4365 = vpop.f32.mrf.mxu0
    %v4366 = vadd.f32 %v4325, %v4365
    %4367 = vmatmul.f32.gmra.mxu0 %v4000
    %v4368 = vpop.f32.mrf.mxu0
    %v4369 = vadd.f32 %v4328, %v4368
    %4370 = vmatmul.f32.gmra.mxu0 %v4002
    %v4371 = vpop.f32.mrf.mxu0
    %v4372 = vadd.f32 %v4331, %v4371
    %4373 = vmatmul.f32.gmra.mxu0 %v4004
    %v4374 = vpop.f32.mrf.mxu0
    %v4375 = vadd.f32 %v4334, %v4374
    %4376 = vmatmul.f32.gmra.mxu0 %v4006
    %v4377 = vpop.f32.mrf.mxu0
    %v4378 = vadd.f32 %v4337, %v4377
    %4379 = vmatmul.f32.gmra.mxu0 %v4008
    %v4380 = vpop.f32.mrf.mxu0
    %v4381 = vadd.f32 %v4340, %v4380
    %4382 = vmatmul.f32.gmra.mxu0 %v4010
    %v4383 = vpop.f32.mrf.mxu0
    %v4384 = vadd.f32 %v4343, %v4383
    %4385 = vdwg.mxu0
    %4386 = vmatpush.msra.mxu0 %v4075
    %4387 = vmatpush.msra.mxu0 %v4071
    %4388 = vmatpush.msra.mxu0 %v4067
    %4389 = vmatpush.msra.mxu0 %v4063
    %4390 = vmatpush.msra.mxu0 %v4059
    %4391 = vmatpush.msra.mxu0 %v4055
    %4392 = vmatpush.msra.mxu0 %v4051
    %4393 = vmatpush.msra.mxu0 %v4047
    %4394 = vmatpush.msra.mxu0 %v4043
    %4395 = vmatpush.msra.mxu0 %v4039
    %4396 = vmatpush.msra.mxu0 %v4035
    %4397 = vmatpush.msra.mxu0 %v4031
    %4398 = vmatpush.msra.mxu0 %v4027
    %4399 = vmatpush.msra.mxu0 %v4023
    %4400 = vmatpush.msra.mxu0 %v4019
    %4401 = vmatpush.msra.mxu0 %v4015
    %4402 = vmatmul.f32.gmra.mxu0 %v3995
    %v4403 = vpop.f32.mrf.mxu0
    %v4404 = vadd.f32 0.0, %v4403
    %4405 = vmatmul.f32.gmra.mxu0 %v3997
    %v4406 = vpop.f32.mrf.mxu0
    %v4407 = vadd.f32 0.0, %v4406
    %4408 = vmatmul.f32.gmra.mxu0 %v3999
    %v4409 = vpop.f32.mrf.mxu0
    %v4410 = vadd.f32 0.0, %v4409
    %4411 = vmatmul.f32.gmra.mxu0 %v4001
    %v4412 = vpop.f32.mrf.mxu0
    %v4413 = vadd.f32 0.0, %v4412
    %4414 = vmatmul.f32.gmra.mxu0 %v4003
    %v4415 = vpop.f32.mrf.mxu0
    %v4416 = vadd.f32 0.0, %v4415
    %4417 = vmatmul.f32.gmra.mxu0 %v4005
    %v4418 = vpop.f32.mrf.mxu0
    %v4419 = vadd.f32 0.0, %v4418
    %4420 = vmatmul.f32.gmra.mxu0 %v4007
    %v4421 = vpop.f32.mrf.mxu0
    %v4422 = vadd.f32 0.0, %v4421
    %4423 = vmatmul.f32.gmra.mxu0 %v4009
    %v4424 = vpop.f32.mrf.mxu0
    %v4425 = vadd.f32 0.0, %v4424
    %4426 = vdwg.mxu0
    %4427 = vmatpush.msra.mxu0 %v4139
    %4428 = vmatpush.msra.mxu0 %v4135
    %4429 = vmatpush.msra.mxu0 %v4131
    %4430 = vmatpush.msra.mxu0 %v4127
    %4431 = vmatpush.msra.mxu0 %v4123
    %4432 = vmatpush.msra.mxu0 %v4119
    %4433 = vmatpush.msra.mxu0 %v4115
    %4434 = vmatpush.msra.mxu0 %v4111
    %4435 = vmatpush.msra.mxu0 %v4107
    %4436 = vmatpush.msra.mxu0 %v4103
    %4437 = vmatpush.msra.mxu0 %v4099
    %4438 = vmatpush.msra.mxu0 %v4095
    %4439 = vmatpush.msra.mxu0 %v4091
    %4440 = vmatpush.msra.mxu0 %v4087
    %4441 = vmatpush.msra.mxu0 %v4083
    %4442 = vmatpush.msra.mxu0 %v4079
    %4443 = vmatmul.f32.gmra.mxu0 %v3996
    %v4444 = vpop.f32.mrf.mxu0
    %v4445 = vadd.f32 %v4404, %v4444
    %4446 = vmatmul.f32.gmra.mxu0 %v3998
    %v4447 = vpop.f32.mrf.mxu0
    %v4448 = vadd.f32 %v4407, %v4447
    %4449 = vmatmul.f32.gmra.mxu0 %v4000
    %v4450 = vpop.f32.mrf.mxu0
    %v4451 = vadd.f32 %v4410, %v4450
    %4452 = vmatmul.f32.gmra.mxu0 %v4002
    %v4453 = vpop.f32.mrf.mxu0
    %v4454 = vadd.f32 %v4413, %v4453
    %4455 = vmatmul.f32.gmra.mxu0 %v4004
    %v4456 = vpop.f32.mrf.mxu0
    %v4457 = vadd.f32 %v4416, %v4456
    %4458 = vmatmul.f32.gmra.mxu0 %v4006
    %v4459 = vpop.f32.mrf.mxu0
    %v4460 = vadd.f32 %v4419, %v4459
    %4461 = vmatmul.f32.gmra.mxu0 %v4008
    %v4462 = vpop.f32.mrf.mxu0
    %v4463 = vadd.f32 %v4422, %v4462
    %4464 = vmatmul.f32.gmra.mxu0 %v4010
    %v4465 = vpop.f32.mrf.mxu0
    %v4466 = vadd.f32 %v4425, %v4465
    %4467 = vdwg.mxu0
    %v4468 = vadd.f32 %v3875, %v4199
    %v4469 = vadd.f32 %v3876, %v4281
    %v4470 = vadd.f32 %v3877, %v4363
    %v4471 = vadd.f32 %v3878, %v4445
    %v4472 = vadd.f32 %v3879, %v4202
    %v4473 = vadd.f32 %v3880, %v4284
    %v4474 = vadd.f32 %v3881, %v4366
    %v4475 = vadd.f32 %v3882, %v4448
    %v4476 = vadd.f32 %v3883, %v4205
    %v4477 = vadd.f32 %v3884, %v4287
    %v4478 = vadd.f32 %v3885, %v4369
    %v4479 = vadd.f32 %v3886, %v4451
    %v4480 = vadd.f32 %v3887, %v4208
    %v4481 = vadd.f32 %v3888, %v4290
    %v4482 = vadd.f32 %v3889, %v4372
    %v4483 = vadd.f32 %v3890, %v4454
    %v4484 = vadd.f32 %v3891, %v4211
    %v4485 = vadd.f32 %v3892, %v4293
    %v4486 = vadd.f32 %v3893, %v4375
    %v4487 = vadd.f32 %v3894, %v4457
    %v4488 = vadd.f32 %v3895, %v4214
    %v4489 = vadd.f32 %v3896, %v4296
    %v4490 = vadd.f32 %v3897, %v4378
    %v4491 = vadd.f32 %v3898, %v4460
    %v4492 = vadd.f32 %v3899, %v4217
    %v4493 = vadd.f32 %v3900, %v4299
    %v4494 = vadd.f32 %v3901, %v4381
    %v4495 = vadd.f32 %v3902, %v4463
    %v4496 = vadd.f32 %v3903, %v4220
    %v4497 = vadd.f32 %v3904, %v4302
    %v4498 = vadd.f32 %v3905, %v4384
    %v4499 = vadd.f32 %v3906, %v4466
    %v4500 = vld [vmem:[#allocation10] sm:$0xf]
    %v4502 = vperm.slane %v4500, 0
    %v4503 = vperm.slane %v4500, 1
    %v4504 = vperm.slane %v4500, 2
    %v4505 = vperm.slane %v4500, 3
    %v4510 = vadd.f32 %v4468, %v4502
    %v4511 = vadd.f32 %v4469, %v4503
    %v4512 = vadd.f32 %v4470, %v4504
    %v4513 = vadd.f32 %v4471, %v4505
    %v4514 = vadd.f32 %v4472, %v4502
    %v4515 = vadd.f32 %v4473, %v4503
    %v4516 = vadd.f32 %v4474, %v4504
    %v4517 = vadd.f32 %v4475, %v4505
    %v4518 = vadd.f32 %v4476, %v4502
    %v4519 = vadd.f32 %v4477, %v4503
    %v4520 = vadd.f32 %v4478, %v4504
    %v4521 = vadd.f32 %v4479, %v4505
    %v4522 = vadd.f32 %v4480, %v4502
    %v4523 = vadd.f32 %v4481, %v4503
    %v4524 = vadd.f32 %v4482, %v4504
    %v4525 = vadd.f32 %v4483, %v4505
    %v4526 = vadd.f32 %v4484, %v4502
    %v4527 = vadd.f32 %v4485, %v4503
    %v4528 = vadd.f32 %v4486, %v4504
    %v4529 = vadd.f32 %v4487, %v4505
    %v4530 = vadd.f32 %v4488, %v4502
    %v4531 = vadd.f32 %v4489, %v4503
    %v4532 = vadd.f32 %v4490, %v4504
    %v4533 = vadd.f32 %v4491, %v4505
    %v4534 = vadd.f32 %v4492, %v4502
    %v4535 = vadd.f32 %v4493, %v4503
    %v4536 = vadd.f32 %v4494, %v4504
    %v4537 = vadd.f32 %v4495, %v4505
    %v4538 = vadd.f32 %v4496, %v4502
    %v4539 = vadd.f32 %v4497, %v4503
    %v4540 = vadd.f32 %v4498, %v4504
    %v4541 = vadd.f32 %v4499, %v4505
    %v4542 = vmax.f32 %v4510, 0.0
    %v4543 = vmax.f32 %v4511, 0.0
    %v4544 = vmax.f32 %v4512, 0.0
    %v4545 = vmax.f32 %v4513, 0.0
    %v4546 = vmax.f32 %v4514, 0.0
    %v4547 = vmax.f32 %v4515, 0.0
    %v4548 = vmax.f32 %v4516, 0.0
    %v4549 = vmax.f32 %v4517, 0.0
    %v4550 = vmax.f32 %v4518, 0.0
    %v4551 = vmax.f32 %v4519, 0.0
    %v4552 = vmax.f32 %v4520, 0.0
    %v4553 = vmax.f32 %v4521, 0.0
    %v4554 = vmax.f32 %v4522, 0.0
    %v4555 = vmax.f32 %v4523, 0.0
    %v4556 = vmax.f32 %v4524, 0.0
    %v4557 = vmax.f32 %v4525, 0.0
    %v4558 = vmax.f32 %v4526, 0.0
    %v4559 = vmax.f32 %v4527, 0.0
    %v4560 = vmax.f32 %v4528, 0.0
    %v4561 = vmax.f32 %v4529, 0.0
    %v4562 = vmax.f32 %v4530, 0.0
    %v4563 = vmax.f32 %v4531, 0.0
    %v4564 = vmax.f32 %v4532, 0.0
    %v4565 = vmax.f32 %v4533, 0.0
    %v4566 = vmax.f32 %v4534, 0.0
    %v4567 = vmax.f32 %v4535, 0.0
    %v4568 = vmax.f32 %v4536, 0.0
    %v4569 = vmax.f32 %v4537, 0.0
    %v4570 = vmax.f32 %v4538, 0.0
    %v4571 = vmax.f32 %v4539, 0.0
    %v4572 = vmax.f32 %v4540, 0.0
    %v4573 = vmax.f32 %v4541, 0.0
    %v4574 = vmax.f32 %v4542, %v4544
    %v4575 = vmax.f32 %v4543, %v4545
    %v4576 = vmax.f32 %v4546, %v4548
    %v4577 = vmax.f32 %v4547, %v4549
    %v4578 = vmax.f32 %v4550, %v4552
    %v4579 = vmax.f32 %v4551, %v4553
    %v4580 = vmax.f32 %v4554, %v4556
    %v4581 = vmax.f32 %v4555, %v4557
    %v4582 = vmax.f32 %v4558, %v4560
    %v4583 = vmax.f32 %v4559, %v4561
    %v4584 = vmax.f32 %v4562, %v4564
    %v4585 = vmax.f32 %v4563, %v4565
    %v4586 = vmax.f32 %v4566, %v4568
    %v4587 = vmax.f32 %v4567, %v4569
    %v4588 = vmax.f32 %v4570, %v4572
    %v4589 = vmax.f32 %v4571, %v4573
    %4590 = vst [vmem:[#allocation3] sm:$0xff] 0.0
    %4591 = vst [vmem:[#allocation3 + $0x8] sm:$0xff] 0.0
    %4592 = vst [vmem:[#allocation3 + $0x10] sm:$0xff] 0.0
    %4593 = vst [vmem:[#allocation3 + $0x18] sm:$0xff] 0.0
    %4594 = vst [vmem:[#allocation3 + $0x20] sm:$0xff] 0.0
    %4595 = vst [vmem:[#allocation3 + $0x28] sm:$0xff] 0.0
    %4596 = vst [vmem:[#allocation3 + $0x30] sm:$0xff] 0.0
    %4597 = vst [vmem:[#allocation3 + $0x38] sm:$0xff] 0.0
    %4598 = vst [vmem:[#allocation3 + $0x40] sm:$0xff] 0.0
    %4599 = vst [vmem:[#allocation3 + $0x48] sm:$0xff] 0.0
    %4600 = vst [vmem:[#allocation3 + $0x50] sm:$0xff] 0.0
    %4601 = vst [vmem:[#allocation3 + $0x58] sm:$0xff] 0.0
    %4602 = vst [vmem:[#allocation3 + $0x60] sm:$0xff] 0.0
    %4603 = vst [vmem:[#allocation3 + $0x68] sm:$0xff] 0.0
    %4604 = vst [vmem:[#allocation3 + $0x70] sm:$0xff] 0.0
    %4605 = vst [vmem:[#allocation3 + $0x78] sm:$0xff] 0.0
    %4606 = vst [vmem:[#allocation3 + $0x80] sm:$0xff] 0.0
    %4607 = vst [vmem:[#allocation3 + $0x88] sm:$0xff] 0.0
    %4608 = vst [vmem:[#allocation3 + $0x90] sm:$0xff] 0.0
    %4609 = vst [vmem:[#allocation3 + $0x98] sm:$0xff] 0.0
    %4610 = vst [vmem:[#allocation3 + $0xa0] sm:$0xff] 0.0
    %4611 = vst [vmem:[#allocation3 + $0xa8] sm:$0xff] 0.0
    %4612 = vst [vmem:[#allocation3] sm:$0xff] %v4574
    %4613 = vst [vmem:[#allocation3 + $0x8] sm:$0xff] %v4575
    %4614 = vst [vmem:[#allocation3 + $0x10] sm:$0xff] %v4576
    %4615 = vst [vmem:[#allocation3 + $0x18] sm:$0xff] %v4577
    %4616 = vst [vmem:[#allocation3 + $0x20] sm:$0xff] %v4578
    %4617 = vst [vmem:[#allocation3 + $0x28] sm:$0xff] %v4579
    %4618 = vst [vmem:[#allocation3 + $0x30] sm:$0xff] %v4580
    %4619 = vst [vmem:[#allocation3 + $0x38] sm:$0xff] %v4581
    %4620 = vst [vmem:[#allocation3 + $0x40] sm:$0xff] %v4582
    %4621 = vst [vmem:[#allocation3 + $0x48] sm:$0xff] %v4583
    %4622 = vst [vmem:[#allocation3 + $0x50] sm:$0xff] %v4584
    %4623 = vst [vmem:[#allocation3 + $0x58] sm:$0xff] %v4585
    %4624 = vst [vmem:[#allocation3 + $0x60] sm:$0xff] %v4586
    %4625 = vst [vmem:[#allocation3 + $0x68] sm:$0xff] %v4587
    %4626 = vst [vmem:[#allocation3 + $0x70] sm:$0xff] %v4588
    %4627 = vst [vmem:[#allocation3 + $0x78] sm:$0xff] %v4589
    %v4628 = vld [vmem:[#allocation3] sm:$0xff]
    %v4629 = vld [vmem:[#allocation3 + $0x8] sm:$0xff]
    %v4630 = vld [vmem:[#allocation3 + $0x10] sm:$0xff]
    %v4631 = vld [vmem:[#allocation3 + $0x18] sm:$0xff]
    %v4632 = vld [vmem:[#allocation3 + $0x20] sm:$0xff]
    %v4633 = vld [vmem:[#allocation3 + $0x28] sm:$0xff]
    %v4634 = vld [vmem:[#allocation3 + $0x30] sm:$0xff]
    %v4635 = vld [vmem:[#allocation3 + $0x38] sm:$0xff]
    %v4636 = vld [vmem:[#allocation3 + $0x40] sm:$0xff]
    %v4637 = vld [vmem:[#allocation3 + $0x48] sm:$0xff]
    %v4638 = vld [vmem:[#allocation3 + $0x50] sm:$0xff]
    %v4639 = vld [vmem:[#allocation3 + $0x58] sm:$0xff]
    %v4640 = vld [vmem:[#allocation3 + $0x60] sm:$0xff]
    %v4641 = vld [vmem:[#allocation3 + $0x68] sm:$0xff]
    %v4642 = vld [vmem:[#allocation3 + $0x70] sm:$0xff]
    %v4643 = vld [vmem:[#allocation3 + $0x78] sm:$0xff]
    %v4644 = vld [vmem:[#allocation3] sm:$0xfc]
    %v4645 = vld [vmem:[#allocation3 + $0x8] sm:$0xfc]
    %v4646 = vld [vmem:[#allocation3 + $0x80] sm:$0x3]
    %v4647 = vld [vmem:[#allocation3 + $0x88] sm:$0x3]
    %v4666 = vrot.slane %v4644, 2
    %v4667 = vrot.slane %v4630, 2
    %v4668 = vsel %vm2044, %v4666, %v4667
    %v4669 = vrot.slane %v4645, 2
    %v4670 = vrot.slane %v4631, 2
    %v4671 = vsel %vm2044, %v4669, %v4670
    %v4672 = vrot.slane %v4632, 2
    %v4673 = vsel %vm2044, %v4667, %v4672
    %v4674 = vrot.slane %v4633, 2
    %v4675 = vsel %vm2044, %v4670, %v4674
    %v4676 = vrot.slane %v4634, 2
    %v4677 = vsel %vm2044, %v4672, %v4676
    %v4678 = vrot.slane %v4635, 2
    %v4679 = vsel %vm2044, %v4674, %v4678
    %v4680 = vrot.slane %v4636, 2
    %v4681 = vsel %vm2044, %v4676, %v4680
    %v4682 = vrot.slane %v4637, 2
    %v4683 = vsel %vm2044, %v4678, %v4682
    %v4684 = vrot.slane %v4638, 2
    %v4685 = vsel %vm2044, %v4680, %v4684
    %v4686 = vrot.slane %v4639, 2
    %v4687 = vsel %vm2044, %v4682, %v4686
    %v4688 = vrot.slane %v4640, 2
    %v4689 = vsel %vm2044, %v4684, %v4688
    %v4690 = vrot.slane %v4641, 2
    %v4691 = vsel %vm2044, %v4686, %v4690
    %v4692 = vrot.slane %v4642, 2
    %v4693 = vsel %vm2044, %v4688, %v4692
    %v4694 = vrot.slane %v4643, 2
    %v4695 = vsel %vm2044, %v4690, %v4694
    %v4696 = vrot.slane %v4646, 2
    %v4697 = vsel %vm2044, %v4692, %v4696
    %v4698 = vrot.slane %v4647, 2
    %v4699 = vsel %vm2044, %v4694, %v4698
    %v4716 = vmax.f32 %v4628, %v4668
    %v4717 = vmax.f32 %v4629, %v4671
    %v4718 = vmax.f32 %v4630, %v4673
    %v4719 = vmax.f32 %v4631, %v4675
    %v4720 = vmax.f32 %v4632, %v4677
    %v4721 = vmax.f32 %v4633, %v4679
    %v4722 = vmax.f32 %v4634, %v4681
    %v4723 = vmax.f32 %v4635, %v4683
    %v4724 = vmax.f32 %v4636, %v4685
    %v4725 = vmax.f32 %v4637, %v4687
    %v4726 = vmax.f32 %v4638, %v4689
    %v4727 = vmax.f32 %v4639, %v4691
    %v4728 = vmax.f32 %v4640, %v4693
    %v4729 = vmax.f32 %v4641, %v4695
    %v4730 = vmax.f32 %v4642, %v4697
    %v4731 = vmax.f32 %v4643, %v4699
    %v4732 = vld [vmem:[#allocation12] sm:$0xff]
    %v4733 = vld [vmem:[#allocation12 + $0x8] sm:$0xff]
    %v4734 = vld [vmem:[#allocation12 + $0x10] sm:$0xff]
    %v4735 = vld [vmem:[#allocation12 + $0x18] sm:$0xff]
    %v4736 = vld [vmem:[#allocation12 + $0x20] sm:$0xff]
    %v4737 = vld [vmem:[#allocation12 + $0x28] sm:$0xff]
    %v4738 = vld [vmem:[#allocation12 + $0x30] sm:$0xff]
    %v4739 = vld [vmem:[#allocation12 + $0x38] sm:$0xff]
    %v4740 = vld [vmem:[#allocation12 + $0x40] sm:$0xff]
    %v4741 = vld [vmem:[#allocation12 + $0x48] sm:$0xff]
    %v4742 = vld [vmem:[#allocation12 + $0x50] sm:$0xff]
    %v4743 = vld [vmem:[#allocation12 + $0x58] sm:$0xff]
    %v4744 = vld [vmem:[#allocation12 + $0x60] sm:$0xff]
    %v4745 = vld [vmem:[#allocation12 + $0x68] sm:$0xff]
    %v4746 = vld [vmem:[#allocation12 + $0x70] sm:$0xff]
    %v4747 = vld [vmem:[#allocation12 + $0x78] sm:$0xff]
    %v4748 = vld [vmem:[#allocation12 + $0x80] sm:$0xff]
    %v4749 = vld [vmem:[#allocation12 + $0x88] sm:$0xff]
    %v4750 = vld [vmem:[#allocation12 + $0x90] sm:$0xff]
    %v4751 = vld [vmem:[#allocation12 + $0x98] sm:$0xff]
    %v4752 = vld [vmem:[#allocation12 + $0xa0] sm:$0xff]
    %v4753 = vld [vmem:[#allocation12 + $0xa8] sm:$0xff]
    %v4754 = vld [vmem:[#allocation12 + $0xb0] sm:$0xff]
    %v4755 = vld [vmem:[#allocation12 + $0xb8] sm:$0xff]
    %v4756 = vld [vmem:[#allocation12 + $0xc0] sm:$0xff]
    %v4757 = vld [vmem:[#allocation12 + $0xc8] sm:$0xff]
    %v4758 = vld [vmem:[#allocation12 + $0xd0] sm:$0xff]
    %v4759 = vld [vmem:[#allocation12 + $0xd8] sm:$0xff]
    %v4760 = vld [vmem:[#allocation12 + $0xe0] sm:$0xff]
    %v4761 = vld [vmem:[#allocation12 + $0xe8] sm:$0xff]
    %v4762 = vld [vmem:[#allocation12 + $0xf0] sm:$0xff]
    %v4763 = vld [vmem:[#allocation12 + $0xf8] sm:$0xff]
    %v4764 = vld [vmem:[#allocation3] sm:$0xf0]
    %v4765 = vld [vmem:[#allocation3 + $0x8] sm:$0xf0]
    %v4766 = vld [vmem:[#allocation3 + $0x80] sm:$0xf]
    %v4767 = vld [vmem:[#allocation3 + $0x88] sm:$0xf]
    %v4768 = vld [vmem:[#allocation3] sm:$0xc0]
    %v4769 = vld [vmem:[#allocation3 + $0x8] sm:$0xc0]
    %v4770 = vld [vmem:[#allocation3 + $0x80] sm:$0x3f]
    %v4771 = vld [vmem:[#allocation3 + $0x88] sm:$0x3f]
    %v4776 = vrot.slane %v4768, 2
    %v4777 = vsel %vm2044, %v4776, %v4667
    %v4778 = vrot.slane %v4769, 2
    %v4779 = vsel %vm2044, %v4778, %v4670
    %v4780 = vrot.slane %v4770, 2
    %v4781 = vsel %vm2044, %v4692, %v4780
    %v4782 = vrot.slane %v4771, 2
    %v4783 = vsel %vm2044, %v4694, %v4782
    %v4790 = vmax.f32 %v4764, %v4777
    %v4791 = vmax.f32 %v4765, %v4779
    %v4792 = vmax.f32 %v4642, %v4781
    %v4793 = vmax.f32 %v4643, %v4783
    %v4794 = vmax.f32 %v4766, %v4780
    %v4795 = vmax.f32 %v4767, %v4782
    %s4796 = scalar_lea.vmem [#allocation12], 256
    %v4797 = vld [vmem:[%s4796] sm:$0xff]
    %v4798 = vld [vmem:[%s4796 + $0x8] sm:$0xff]
    %v4799 = vld [vmem:[%s4796 + $0x10] sm:$0xff]
    %v4800 = vld [vmem:[%s4796 + $0x18] sm:$0xff]
    %v4801 = vld [vmem:[%s4796 + $0x20] sm:$0xff]
    %v4802 = vld [vmem:[%s4796 + $0x28] sm:$0xff]
    %v4803 = vld [vmem:[%s4796 + $0x30] sm:$0xff]
    %v4804 = vld [vmem:[%s4796 + $0x38] sm:$0xff]
    %v4805 = vld [vmem:[%s4796 + $0x40] sm:$0xff]
    %v4806 = vld [vmem:[%s4796 + $0x48] sm:$0xff]
    %v4807 = vld [vmem:[%s4796 + $0x50] sm:$0xff]
    %v4808 = vld [vmem:[%s4796 + $0x58] sm:$0xff]
    %v4809 = vld [vmem:[%s4796 + $0x60] sm:$0xff]
    %v4810 = vld [vmem:[%s4796 + $0x68] sm:$0xff]
    %v4811 = vld [vmem:[%s4796 + $0x70] sm:$0xff]
    %v4812 = vld [vmem:[%s4796 + $0x78] sm:$0xff]
    %v4813 = vld [vmem:[%s4796 + $0x80] sm:$0xff]
    %v4814 = vld [vmem:[%s4796 + $0x88] sm:$0xff]
    %v4815 = vld [vmem:[%s4796 + $0x90] sm:$0xff]
    %v4816 = vld [vmem:[%s4796 + $0x98] sm:$0xff]
    %v4817 = vld [vmem:[%s4796 + $0xa0] sm:$0xff]
    %v4818 = vld [vmem:[%s4796 + $0xa8] sm:$0xff]
    %v4819 = vld [vmem:[%s4796 + $0xb0] sm:$0xff]
    %v4820 = vld [vmem:[%s4796 + $0xb8] sm:$0xff]
    %v4821 = vld [vmem:[%s4796 + $0xc0] sm:$0xff]
    %v4822 = vld [vmem:[%s4796 + $0xc8] sm:$0xff]
    %v4823 = vld [vmem:[%s4796 + $0xd0] sm:$0xff]
    %v4824 = vld [vmem:[%s4796 + $0xd8] sm:$0xff]
    %v4825 = vld [vmem:[%s4796 + $0xe0] sm:$0xff]
    %v4826 = vld [vmem:[%s4796 + $0xe8] sm:$0xff]
    %v4827 = vld [vmem:[%s4796 + $0xf0] sm:$0xff]
    %v4828 = vld [vmem:[%s4796 + $0xf8] sm:$0xff]
    %v4847 = vrot.slane %v4790, 4
    %v4848 = vrot.slane %v4718, 4
    %v4849 = vsel %vm2918, %v4847, %v4848
    %v4850 = vrot.slane %v4791, 4
    %v4851 = vrot.slane %v4719, 4
    %v4852 = vsel %vm2918, %v4850, %v4851
    %v4853 = vrot.slane %v4720, 4
    %v4854 = vsel %vm2918, %v4848, %v4853
    %v4855 = vrot.slane %v4721, 4
    %v4856 = vsel %vm2918, %v4851, %v4855
    %v4857 = vrot.slane %v4722, 4
    %v4858 = vsel %vm2918, %v4853, %v4857
    %v4859 = vrot.slane %v4723, 4
    %v4860 = vsel %vm2918, %v4855, %v4859
    %v4861 = vrot.slane %v4724, 4
    %v4862 = vsel %vm2918, %v4857, %v4861
    %v4863 = vrot.slane %v4725, 4
    %v4864 = vsel %vm2918, %v4859, %v4863
    %v4865 = vrot.slane %v4726, 4
    %v4866 = vsel %vm2918, %v4861, %v4865
    %v4867 = vrot.slane %v4727, 4
    %v4868 = vsel %vm2918, %v4863, %v4867
    %v4869 = vrot.slane %v4728, 4
    %v4870 = vsel %vm2918, %v4865, %v4869
    %v4871 = vrot.slane %v4729, 4
    %v4872 = vsel %vm2918, %v4867, %v4871
    %v4873 = vrot.slane %v4792, 4
    %v4874 = vsel %vm2918, %v4869, %v4873
    %v4875 = vrot.slane %v4793, 4
    %v4876 = vsel %vm2918, %v4871, %v4875
    %v4877 = vrot.slane %v4794, 4
    %v4878 = vsel %vm2918, %v4873, %v4877
    %v4879 = vrot.slane %v4795, 4
    %v4880 = vsel %vm2918, %v4875, %v4879
    %4897 = vmatpush.msra.mxu0 %v4812
    %4898 = vmatpush.msra.mxu0 %v4811
    %4899 = vmatpush.msra.mxu0 %v4810
    %4900 = vmatpush.msra.mxu0 %v4809
    %4901 = vmatpush.msra.mxu0 %v4808
    %4902 = vmatpush.msra.mxu0 %v4807
    %4903 = vmatpush.msra.mxu0 %v4806
    %4904 = vmatpush.msra.mxu0 %v4805
    %4905 = vmatpush.msra.mxu0 %v4804
    %4906 = vmatpush.msra.mxu0 %v4803
    %4907 = vmatpush.msra.mxu0 %v4802
    %4908 = vmatpush.msra.mxu0 %v4801
    %4909 = vmatpush.msra.mxu0 %v4800
    %4910 = vmatpush.msra.mxu0 %v4799
    %4911 = vmatpush.msra.mxu0 %v4798
    %4912 = vmatpush.msra.mxu0 %v4797
    %4913 = vmatmul.f32.gmra.mxu0 %v4849
    %v4914 = vpop.f32.mrf.mxu0
    %v4915 = vadd.f32 0.0, %v4914
    %4916 = vmatmul.f32.gmra.mxu0 %v4854
    %v4917 = vpop.f32.mrf.mxu0
    %v4918 = vadd.f32 0.0, %v4917
    %4919 = vmatmul.f32.gmra.mxu0 %v4858
    %v4920 = vpop.f32.mrf.mxu0
    %v4921 = vadd.f32 0.0, %v4920
    %4922 = vmatmul.f32.gmra.mxu0 %v4862
    %v4923 = vpop.f32.mrf.mxu0
    %v4924 = vadd.f32 0.0, %v4923
    %4925 = vmatmul.f32.gmra.mxu0 %v4866
    %v4926 = vpop.f32.mrf.mxu0
    %v4927 = vadd.f32 0.0, %v4926
    %4928 = vmatmul.f32.gmra.mxu0 %v4870
    %v4929 = vpop.f32.mrf.mxu0
    %v4930 = vadd.f32 0.0, %v4929
    %4931 = vmatmul.f32.gmra.mxu0 %v4874
    %v4932 = vpop.f32.mrf.mxu0
    %v4933 = vadd.f32 0.0, %v4932
    %4934 = vmatmul.f32.gmra.mxu0 %v4878
    %v4935 = vpop.f32.mrf.mxu0
    %v4936 = vadd.f32 0.0, %v4935
    %4937 = vdwg.mxu0
    %4938 = vmatpush.msra.mxu0 %v4828
    %4939 = vmatpush.msra.mxu0 %v4827
    %4940 = vmatpush.msra.mxu0 %v4826
    %4941 = vmatpush.msra.mxu0 %v4825
    %4942 = vmatpush.msra.mxu0 %v4824
    %4943 = vmatpush.msra.mxu0 %v4823
    %4944 = vmatpush.msra.mxu0 %v4822
    %4945 = vmatpush.msra.mxu0 %v4821
    %4946 = vmatpush.msra.mxu0 %v4820
    %4947 = vmatpush.msra.mxu0 %v4819
    %4948 = vmatpush.msra.mxu0 %v4818
    %4949 = vmatpush.msra.mxu0 %v4817
    %4950 = vmatpush.msra.mxu0 %v4816
    %4951 = vmatpush.msra.mxu0 %v4815
    %4952 = vmatpush.msra.mxu0 %v4814
    %4953 = vmatpush.msra.mxu0 %v4813
    %4954 = vmatmul.f32.gmra.mxu0 %v4852
    %v4955 = vpop.f32.mrf.mxu0
    %v4956 = vadd.f32 %v4915, %v4955
    %4957 = vmatmul.f32.gmra.mxu0 %v4856
    %v4958 = vpop.f32.mrf.mxu0
    %v4959 = vadd.f32 %v4918, %v4958
    %4960 = vmatmul.f32.gmra.mxu0 %v4860
    %v4961 = vpop.f32.mrf.mxu0
    %v4962 = vadd.f32 %v4921, %v4961
    %4963 = vmatmul.f32.gmra.mxu0 %v4864
    %v4964 = vpop.f32.mrf.mxu0
    %v4965 = vadd.f32 %v4924, %v4964
    %4966 = vmatmul.f32.gmra.mxu0 %v4868
    %v4967 = vpop.f32.mrf.mxu0
    %v4968 = vadd.f32 %v4927, %v4967
    %4969 = vmatmul.f32.gmra.mxu0 %v4872
    %v4970 = vpop.f32.mrf.mxu0
    %v4971 = vadd.f32 %v4930, %v4970
    %4972 = vmatmul.f32.gmra.mxu0 %v4876
    %v4973 = vpop.f32.mrf.mxu0
    %v4974 = vadd.f32 %v4933, %v4973
    %4975 = vmatmul.f32.gmra.mxu0 %v4880
    %v4976 = vpop.f32.mrf.mxu0
    %v4977 = vadd.f32 %v4936, %v4976
    %4978 = vdwg.mxu0
    %4979 = vmatpush.msra.mxu0 %v4747
    %4980 = vmatpush.msra.mxu0 %v4746
    %4981 = vmatpush.msra.mxu0 %v4745
    %4982 = vmatpush.msra.mxu0 %v4744
    %4983 = vmatpush.msra.mxu0 %v4743
    %4984 = vmatpush.msra.mxu0 %v4742
    %4985 = vmatpush.msra.mxu0 %v4741
    %4986 = vmatpush.msra.mxu0 %v4740
    %4987 = vmatpush.msra.mxu0 %v4739
    %4988 = vmatpush.msra.mxu0 %v4738
    %4989 = vmatpush.msra.mxu0 %v4737
    %4990 = vmatpush.msra.mxu0 %v4736
    %4991 = vmatpush.msra.mxu0 %v4735
    %4992 = vmatpush.msra.mxu0 %v4734
    %4993 = vmatpush.msra.mxu0 %v4733
    %4994 = vmatpush.msra.mxu0 %v4732
    %4995 = vmatmul.f32.gmra.mxu0 %v4716
    %v4996 = vpop.f32.mrf.mxu0
    %v4997 = vadd.f32 %v4956, %v4996
    %4998 = vmatmul.f32.gmra.mxu0 %v4718
    %v4999 = vpop.f32.mrf.mxu0
    %v5000 = vadd.f32 %v4959, %v4999
    %5001 = vmatmul.f32.gmra.mxu0 %v4720
    %v5002 = vpop.f32.mrf.mxu0
    %v5003 = vadd.f32 %v4962, %v5002
    %5004 = vmatmul.f32.gmra.mxu0 %v4722
    %v5005 = vpop.f32.mrf.mxu0
    %v5006 = vadd.f32 %v4965, %v5005
    %5007 = vmatmul.f32.gmra.mxu0 %v4724
    %v5008 = vpop.f32.mrf.mxu0
    %v5009 = vadd.f32 %v4968, %v5008
    %5010 = vmatmul.f32.gmra.mxu0 %v4726
    %v5011 = vpop.f32.mrf.mxu0
    %v5012 = vadd.f32 %v4971, %v5011
    %5013 = vmatmul.f32.gmra.mxu0 %v4728
    %v5014 = vpop.f32.mrf.mxu0
    %v5015 = vadd.f32 %v4974, %v5014
    %5016 = vmatmul.f32.gmra.mxu0 %v4730
    %v5017 = vpop.f32.mrf.mxu0
    %v5018 = vadd.f32 %v4977, %v5017
    %5019 = vdwg.mxu0
    %5020 = vmatpush.msra.mxu0 %v4763
    %5021 = vmatpush.msra.mxu0 %v4762
    %5022 = vmatpush.msra.mxu0 %v4761
    %5023 = vmatpush.msra.mxu0 %v4760
    %5024 = vmatpush.msra.mxu0 %v4759
    %5025 = vmatpush.msra.mxu0 %v4758
    %5026 = vmatpush.msra.mxu0 %v4757
    %5027 = vmatpush.msra.mxu0 %v4756
    %5028 = vmatpush.msra.mxu0 %v4755
    %5029 = vmatpush.msra.mxu0 %v4754
    %5030 = vmatpush.msra.mxu0 %v4753
    %5031 = vmatpush.msra.mxu0 %v4752
    %5032 = vmatpush.msra.mxu0 %v4751
    %5033 = vmatpush.msra.mxu0 %v4750
    %5034 = vmatpush.msra.mxu0 %v4749
    %5035 = vmatpush.msra.mxu0 %v4748
    %5036 = vmatmul.f32.gmra.mxu0 %v4717
    %v5037 = vpop.f32.mrf.mxu0
    %v5038 = vadd.f32 %v4997, %v5037
    %5039 = vmatmul.f32.gmra.mxu0 %v4719
    %v5040 = vpop.f32.mrf.mxu0
    %v5041 = vadd.f32 %v5000, %v5040
    %5042 = vmatmul.f32.gmra.mxu0 %v4721
    %v5043 = vpop.f32.mrf.mxu0
    %v5044 = vadd.f32 %v5003, %v5043
    %5045 = vmatmul.f32.gmra.mxu0 %v4723
    %v5046 = vpop.f32.mrf.mxu0
    %v5047 = vadd.f32 %v5006, %v5046
    %5048 = vmatmul.f32.gmra.mxu0 %v4725
    %v5049 = vpop.f32.mrf.mxu0
    %v5050 = vadd.f32 %v5009, %v5049
    %5051 = vmatmul.f32.gmra.mxu0 %v4727
    %v5052 = vpop.f32.mrf.mxu0
    %v5053 = vadd.f32 %v5012, %v5052
    %5054 = vmatmul.f32.gmra.mxu0 %v4729
    %v5055 = vpop.f32.mrf.mxu0
    %v5056 = vadd.f32 %v5015, %v5055
    %5057 = vmatmul.f32.gmra.mxu0 %v4731
    %v5058 = vpop.f32.mrf.mxu0
    %v5059 = vadd.f32 %v5018, %v5058
    %5060 = vdwg.mxu0
    %v5061 = vld [vmem:[#allocation3 + $0x80] sm:$0xff]
    %v5062 = vld [vmem:[#allocation3 + $0x88] sm:$0xff]
    %v5063 = vld [vmem:[#allocation3 + $0x10] sm:$0xfc]
    %v5064 = vld [vmem:[#allocation3 + $0x18] sm:$0xfc]
    %v5065 = vld [vmem:[#allocation3 + $0x20] sm:$0xff]
    %v5066 = vld [vmem:[#allocation3 + $0x28] sm:$0xff]
    %v5067 = vld [vmem:[#allocation3 + $0x30] sm:$0xff]
    %v5068 = vld [vmem:[#allocation3 + $0x38] sm:$0xff]
    %v5069 = vld [vmem:[#allocation3 + $0x40] sm:$0xff]
    %v5070 = vld [vmem:[#allocation3 + $0x48] sm:$0xff]
    %v5071 = vld [vmem:[#allocation3 + $0x50] sm:$0xff]
    %v5072 = vld [vmem:[#allocation3 + $0x58] sm:$0xff]
    %v5073 = vld [vmem:[#allocation3 + $0x60] sm:$0xff]
    %v5074 = vld [vmem:[#allocation3 + $0x68] sm:$0xff]
    %v5075 = vld [vmem:[#allocation3 + $0x70] sm:$0xff]
    %v5076 = vld [vmem:[#allocation3 + $0x78] sm:$0xff]
    %v5077 = vld [vmem:[#allocation3 + $0x90] sm:$0x3]
    %v5078 = vld [vmem:[#allocation3 + $0x98] sm:$0x3]
    %v5097 = vrot.slane %v5063, 2
    %v5098 = vrot.slane %v5065, 2
    %v5099 = vsel %vm2044, %v5097, %v5098
    %v5100 = vrot.slane %v5064, 2
    %v5101 = vrot.slane %v5066, 2
    %v5102 = vsel %vm2044, %v5100, %v5101
    %v5103 = vrot.slane %v5067, 2
    %v5104 = vsel %vm2044, %v5098, %v5103
    %v5105 = vrot.slane %v5068, 2
    %v5106 = vsel %vm2044, %v5101, %v5105
    %v5107 = vrot.slane %v5069, 2
    %v5108 = vsel %vm2044, %v5103, %v5107
    %v5109 = vrot.slane %v5070, 2
    %v5110 = vsel %vm2044, %v5105, %v5109
    %v5111 = vrot.slane %v5071, 2
    %v5112 = vsel %vm2044, %v5107, %v5111
    %v5113 = vrot.slane %v5072, 2
    %v5114 = vsel %vm2044, %v5109, %v5113
    %v5115 = vrot.slane %v5073, 2
    %v5116 = vsel %vm2044, %v5111, %v5115
    %v5117 = vrot.slane %v5074, 2
    %v5118 = vsel %vm2044, %v5113, %v5117
    %v5119 = vrot.slane %v5075, 2
    %v5120 = vsel %vm2044, %v5115, %v5119
    %v5121 = vrot.slane %v5076, 2
    %v5122 = vsel %vm2044, %v5117, %v5121
    %v5123 = vrot.slane %v5061, 2
    %v5124 = vsel %vm2044, %v5119, %v5123
    %v5125 = vrot.slane %v5062, 2
    %v5126 = vsel %vm2044, %v5121, %v5125
    %v5127 = vrot.slane %v5077, 2
    %v5128 = vsel %vm2044, %v5123, %v5127
    %v5129 = vrot.slane %v5078, 2
    %v5130 = vsel %vm2044, %v5125, %v5129
    %v5147 = vmax.f32 %v4630, %v5099
    %v5148 = vmax.f32 %v4631, %v5102
    %v5149 = vmax.f32 %v4632, %v5104
    %v5150 = vmax.f32 %v4633, %v5106
    %v5151 = vmax.f32 %v4634, %v5108
    %v5152 = vmax.f32 %v4635, %v5110
    %v5153 = vmax.f32 %v4636, %v5112
    %v5154 = vmax.f32 %v4637, %v5114
    %v5155 = vmax.f32 %v4638, %v5116
    %v5156 = vmax.f32 %v4639, %v5118
    %v5157 = vmax.f32 %v4640, %v5120
    %v5158 = vmax.f32 %v4641, %v5122
    %v5159 = vmax.f32 %v4642, %v5124
    %v5160 = vmax.f32 %v4643, %v5126
    %v5161 = vmax.f32 %v5061, %v5128
    %v5162 = vmax.f32 %v5062, %v5130
    %s5163 = scalar_lea.vmem [#allocation12], 512
    %v5164 = vld [vmem:[%s5163] sm:$0xff]
    %v5165 = vld [vmem:[%s5163 + $0x8] sm:$0xff]
    %v5166 = vld [vmem:[%s5163 + $0x10] sm:$0xff]
    %v5167 = vld [vmem:[%s5163 + $0x18] sm:$0xff]
    %v5168 = vld [vmem:[%s5163 + $0x20] sm:$0xff]
    %v5169 = vld [vmem:[%s5163 + $0x28] sm:$0xff]
    %v5170 = vld [vmem:[%s5163 + $0x30] sm:$0xff]
    %v5171 = vld [vmem:[%s5163 + $0x38] sm:$0xff]
    %v5172 = vld [vmem:[%s5163 + $0x40] sm:$0xff]
    %v5173 = vld [vmem:[%s5163 + $0x48] sm:$0xff]
    %v5174 = vld [vmem:[%s5163 + $0x50] sm:$0xff]
    %v5175 = vld [vmem:[%s5163 + $0x58] sm:$0xff]
    %v5176 = vld [vmem:[%s5163 + $0x60] sm:$0xff]
    %v5177 = vld [vmem:[%s5163 + $0x68] sm:$0xff]
    %v5178 = vld [vmem:[%s5163 + $0x70] sm:$0xff]
    %v5179 = vld [vmem:[%s5163 + $0x78] sm:$0xff]
    %v5180 = vld [vmem:[%s5163 + $0x80] sm:$0xff]
    %v5181 = vld [vmem:[%s5163 + $0x88] sm:$0xff]
    %v5182 = vld [vmem:[%s5163 + $0x90] sm:$0xff]
    %v5183 = vld [vmem:[%s5163 + $0x98] sm:$0xff]
    %v5184 = vld [vmem:[%s5163 + $0xa0] sm:$0xff]
    %v5185 = vld [vmem:[%s5163 + $0xa8] sm:$0xff]
    %v5186 = vld [vmem:[%s5163 + $0xb0] sm:$0xff]
    %v5187 = vld [vmem:[%s5163 + $0xb8] sm:$0xff]
    %v5188 = vld [vmem:[%s5163 + $0xc0] sm:$0xff]
    %v5189 = vld [vmem:[%s5163 + $0xc8] sm:$0xff]
    %v5190 = vld [vmem:[%s5163 + $0xd0] sm:$0xff]
    %v5191 = vld [vmem:[%s5163 + $0xd8] sm:$0xff]
    %v5192 = vld [vmem:[%s5163 + $0xe0] sm:$0xff]
    %v5193 = vld [vmem:[%s5163 + $0xe8] sm:$0xff]
    %v5194 = vld [vmem:[%s5163 + $0xf0] sm:$0xff]
    %v5195 = vld [vmem:[%s5163 + $0xf8] sm:$0xff]
    %5196 = vmatpush.msra.mxu0 %v5179
    %5197 = vmatpush.msra.mxu0 %v5178
    %5198 = vmatpush.msra.mxu0 %v5177
    %5199 = vmatpush.msra.mxu0 %v5176
    %5200 = vmatpush.msra.mxu0 %v5175
    %5201 = vmatpush.msra.mxu0 %v5174
    %5202 = vmatpush.msra.mxu0 %v5173
    %5203 = vmatpush.msra.mxu0 %v5172
    %5204 = vmatpush.msra.mxu0 %v5171
    %5205 = vmatpush.msra.mxu0 %v5170
    %5206 = vmatpush.msra.mxu0 %v5169
    %5207 = vmatpush.msra.mxu0 %v5168
    %5208 = vmatpush.msra.mxu0 %v5167
    %5209 = vmatpush.msra.mxu0 %v5166
    %5210 = vmatpush.msra.mxu0 %v5165
    %5211 = vmatpush.msra.mxu0 %v5164
    %5212 = vmatmul.f32.gmra.mxu0 %v5147
    %v5213 = vpop.f32.mrf.mxu0
    %v5214 = vadd.f32 0.0, %v5213
    %5215 = vmatmul.f32.gmra.mxu0 %v5149
    %v5216 = vpop.f32.mrf.mxu0
    %v5217 = vadd.f32 0.0, %v5216
    %5218 = vmatmul.f32.gmra.mxu0 %v5151
    %v5219 = vpop.f32.mrf.mxu0
    %v5220 = vadd.f32 0.0, %v5219
    %5221 = vmatmul.f32.gmra.mxu0 %v5153
    %v5222 = vpop.f32.mrf.mxu0
    %v5223 = vadd.f32 0.0, %v5222
    %5224 = vmatmul.f32.gmra.mxu0 %v5155
    %v5225 = vpop.f32.mrf.mxu0
    %v5226 = vadd.f32 0.0, %v5225
    %5227 = vmatmul.f32.gmra.mxu0 %v5157
    %v5228 = vpop.f32.mrf.mxu0
    %v5229 = vadd.f32 0.0, %v5228
    %5230 = vmatmul.f32.gmra.mxu0 %v5159
    %v5231 = vpop.f32.mrf.mxu0
    %v5232 = vadd.f32 0.0, %v5231
    %5233 = vmatmul.f32.gmra.mxu0 %v5161
    %v5234 = vpop.f32.mrf.mxu0
    %v5235 = vadd.f32 0.0, %v5234
    %5236 = vdwg.mxu0
    %5237 = vmatpush.msra.mxu0 %v5195
    %5238 = vmatpush.msra.mxu0 %v5194
    %5239 = vmatpush.msra.mxu0 %v5193
    %5240 = vmatpush.msra.mxu0 %v5192
    %5241 = vmatpush.msra.mxu0 %v5191
    %5242 = vmatpush.msra.mxu0 %v5190
    %5243 = vmatpush.msra.mxu0 %v5189
    %5244 = vmatpush.msra.mxu0 %v5188
    %5245 = vmatpush.msra.mxu0 %v5187
    %5246 = vmatpush.msra.mxu0 %v5186
    %5247 = vmatpush.msra.mxu0 %v5185
    %5248 = vmatpush.msra.mxu0 %v5184
    %5249 = vmatpush.msra.mxu0 %v5183
    %5250 = vmatpush.msra.mxu0 %v5182
    %5251 = vmatpush.msra.mxu0 %v5181
    %5252 = vmatpush.msra.mxu0 %v5180
    %5253 = vmatmul.f32.gmra.mxu0 %v5148
    %v5254 = vpop.f32.mrf.mxu0
    %v5255 = vadd.f32 %v5214, %v5254
    %5256 = vmatmul.f32.gmra.mxu0 %v5150
    %v5257 = vpop.f32.mrf.mxu0
    %v5258 = vadd.f32 %v5217, %v5257
    %5259 = vmatmul.f32.gmra.mxu0 %v5152
    %v5260 = vpop.f32.mrf.mxu0
    %v5261 = vadd.f32 %v5220, %v5260
    %5262 = vmatmul.f32.gmra.mxu0 %v5154
    %v5263 = vpop.f32.mrf.mxu0
    %v5264 = vadd.f32 %v5223, %v5263
    %5265 = vmatmul.f32.gmra.mxu0 %v5156
    %v5266 = vpop.f32.mrf.mxu0
    %v5267 = vadd.f32 %v5226, %v5266
    %5268 = vmatmul.f32.gmra.mxu0 %v5158
    %v5269 = vpop.f32.mrf.mxu0
    %v5270 = vadd.f32 %v5229, %v5269
    %5271 = vmatmul.f32.gmra.mxu0 %v5160
    %v5272 = vpop.f32.mrf.mxu0
    %v5273 = vadd.f32 %v5232, %v5272
    %5274 = vmatmul.f32.gmra.mxu0 %v5162
    %v5275 = vpop.f32.mrf.mxu0
    %v5276 = vadd.f32 %v5235, %v5275
    %5277 = vdwg.mxu0
    %v5278 = vadd.f32 %v5038, %v5255
    %v5279 = vadd.f32 %v5041, %v5258
    %v5280 = vadd.f32 %v5044, %v5261
    %v5281 = vadd.f32 %v5047, %v5264
    %v5282 = vadd.f32 %v5050, %v5267
    %v5283 = vadd.f32 %v5053, %v5270
    %v5284 = vadd.f32 %v5056, %v5273
    %v5285 = vadd.f32 %v5059, %v5276
    %v5286 = vld [vmem:[#allocation3 + $0x10] sm:$0xf0]
    %v5287 = vld [vmem:[#allocation3 + $0x18] sm:$0xf0]
    %v5288 = vld [vmem:[#allocation3 + $0x90] sm:$0xf]
    %v5289 = vld [vmem:[#allocation3 + $0x98] sm:$0xf]
    %v5290 = vld [vmem:[#allocation3 + $0x10] sm:$0xc0]
    %v5291 = vld [vmem:[#allocation3 + $0x18] sm:$0xc0]
    %v5292 = vld [vmem:[#allocation3 + $0x90] sm:$0x3f]
    %v5293 = vld [vmem:[#allocation3 + $0x98] sm:$0x3f]
    %v5298 = vrot.slane %v5290, 2
    %v5299 = vsel %vm2044, %v5298, %v5098
    %v5300 = vrot.slane %v5291, 2
    %v5301 = vsel %vm2044, %v5300, %v5101
    %v5302 = vrot.slane %v5292, 2
    %v5303 = vsel %vm2044, %v5123, %v5302
    %v5304 = vrot.slane %v5293, 2
    %v5305 = vsel %vm2044, %v5125, %v5304
    %v5312 = vmax.f32 %v5286, %v5299
    %v5313 = vmax.f32 %v5287, %v5301
    %v5314 = vmax.f32 %v5065, %v5104
    %v5315 = vmax.f32 %v5066, %v5106
    %v5316 = vmax.f32 %v5067, %v5108
    %v5317 = vmax.f32 %v5068, %v5110
    %v5318 = vmax.f32 %v5069, %v5112
    %v5319 = vmax.f32 %v5070, %v5114
    %v5320 = vmax.f32 %v5071, %v5116
    %v5321 = vmax.f32 %v5072, %v5118
    %v5322 = vmax.f32 %v5073, %v5120
    %v5323 = vmax.f32 %v5074, %v5122
    %v5324 = vmax.f32 %v5075, %v5124
    %v5325 = vmax.f32 %v5076, %v5126
    %v5326 = vmax.f32 %v5061, %v5303
    %v5327 = vmax.f32 %v5062, %v5305
    %v5328 = vmax.f32 %v5288, %v5302
    %v5329 = vmax.f32 %v5289, %v5304
    %s5330 = scalar_lea.vmem [#allocation12], 768
    %v5331 = vld [vmem:[%s5330] sm:$0xff]
    %v5332 = vld [vmem:[%s5330 + $0x8] sm:$0xff]
    %v5333 = vld [vmem:[%s5330 + $0x10] sm:$0xff]
    %v5334 = vld [vmem:[%s5330 + $0x18] sm:$0xff]
    %v5335 = vld [vmem:[%s5330 + $0x20] sm:$0xff]
    %v5336 = vld [vmem:[%s5330 + $0x28] sm:$0xff]
    %v5337 = vld [vmem:[%s5330 + $0x30] sm:$0xff]
    %v5338 = vld [vmem:[%s5330 + $0x38] sm:$0xff]
    %v5339 = vld [vmem:[%s5330 + $0x40] sm:$0xff]
    %v5340 = vld [vmem:[%s5330 + $0x48] sm:$0xff]
    %v5341 = vld [vmem:[%s5330 + $0x50] sm:$0xff]
    %v5342 = vld [vmem:[%s5330 + $0x58] sm:$0xff]
    %v5343 = vld [vmem:[%s5330 + $0x60] sm:$0xff]
    %v5344 = vld [vmem:[%s5330 + $0x68] sm:$0xff]
    %v5345 = vld [vmem:[%s5330 + $0x70] sm:$0xff]
    %v5346 = vld [vmem:[%s5330 + $0x78] sm:$0xff]
    %v5347 = vld [vmem:[%s5330 + $0x80] sm:$0xff]
    %v5348 = vld [vmem:[%s5330 + $0x88] sm:$0xff]
    %v5349 = vld [vmem:[%s5330 + $0x90] sm:$0xff]
    %v5350 = vld [vmem:[%s5330 + $0x98] sm:$0xff]
    %v5351 = vld [vmem:[%s5330 + $0xa0] sm:$0xff]
    %v5352 = vld [vmem:[%s5330 + $0xa8] sm:$0xff]
    %v5353 = vld [vmem:[%s5330 + $0xb0] sm:$0xff]
    %v5354 = vld [vmem:[%s5330 + $0xb8] sm:$0xff]
    %v5355 = vld [vmem:[%s5330 + $0xc0] sm:$0xff]
    %v5356 = vld [vmem:[%s5330 + $0xc8] sm:$0xff]
    %v5357 = vld [vmem:[%s5330 + $0xd0] sm:$0xff]
    %v5358 = vld [vmem:[%s5330 + $0xd8] sm:$0xff]
    %v5359 = vld [vmem:[%s5330 + $0xe0] sm:$0xff]
    %v5360 = vld [vmem:[%s5330 + $0xe8] sm:$0xff]
    %v5361 = vld [vmem:[%s5330 + $0xf0] sm:$0xff]
    %v5362 = vld [vmem:[%s5330 + $0xf8] sm:$0xff]
    %v5381 = vrot.slane %v5312, 4
    %v5382 = vrot.slane %v5314, 4
    %v5383 = vsel %vm2918, %v5381, %v5382
    %v5384 = vrot.slane %v5313, 4
    %v5385 = vrot.slane %v5315, 4
    %v5386 = vsel %vm2918, %v5384, %v5385
    %v5387 = vrot.slane %v5316, 4
    %v5388 = vsel %vm2918, %v5382, %v5387
    %v5389 = vrot.slane %v5317, 4
    %v5390 = vsel %vm2918, %v5385, %v5389
    %v5391 = vrot.slane %v5318, 4
    %v5392 = vsel %vm2918, %v5387, %v5391
    %v5393 = vrot.slane %v5319, 4
    %v5394 = vsel %vm2918, %v5389, %v5393
    %v5395 = vrot.slane %v5320, 4
    %v5396 = vsel %vm2918, %v5391, %v5395
    %v5397 = vrot.slane %v5321, 4
    %v5398 = vsel %vm2918, %v5393, %v5397
    %v5399 = vrot.slane %v5322, 4
    %v5400 = vsel %vm2918, %v5395, %v5399
    %v5401 = vrot.slane %v5323, 4
    %v5402 = vsel %vm2918, %v5397, %v5401
    %v5403 = vrot.slane %v5324, 4
    %v5404 = vsel %vm2918, %v5399, %v5403
    %v5405 = vrot.slane %v5325, 4
    %v5406 = vsel %vm2918, %v5401, %v5405
    %v5407 = vrot.slane %v5326, 4
    %v5408 = vsel %vm2918, %v5403, %v5407
    %v5409 = vrot.slane %v5327, 4
    %v5410 = vsel %vm2918, %v5405, %v5409
    %v5411 = vrot.slane %v5328, 4
    %v5412 = vsel %vm2918, %v5407, %v5411
    %v5413 = vrot.slane %v5329, 4
    %v5414 = vsel %vm2918, %v5409, %v5413
    %5431 = vmatpush.msra.mxu0 %v5346
    %5432 = vmatpush.msra.mxu0 %v5345
    %5433 = vmatpush.msra.mxu0 %v5344
    %5434 = vmatpush.msra.mxu0 %v5343
    %5435 = vmatpush.msra.mxu0 %v5342
    %5436 = vmatpush.msra.mxu0 %v5341
    %5437 = vmatpush.msra.mxu0 %v5340
    %5438 = vmatpush.msra.mxu0 %v5339
    %5439 = vmatpush.msra.mxu0 %v5338
    %5440 = vmatpush.msra.mxu0 %v5337
    %5441 = vmatpush.msra.mxu0 %v5336
    %5442 = vmatpush.msra.mxu0 %v5335
    %5443 = vmatpush.msra.mxu0 %v5334
    %5444 = vmatpush.msra.mxu0 %v5333
    %5445 = vmatpush.msra.mxu0 %v5332
    %5446 = vmatpush.msra.mxu0 %v5331
    %5447 = vmatmul.f32.gmra.mxu0 %v5383
    %v5448 = vpop.f32.mrf.mxu0
    %v5449 = vadd.f32 0.0, %v5448
    %5450 = vmatmul.f32.gmra.mxu0 %v5388
    %v5451 = vpop.f32.mrf.mxu0
    %v5452 = vadd.f32 0.0, %v5451
    %5453 = vmatmul.f32.gmra.mxu0 %v5392
    %v5454 = vpop.f32.mrf.mxu0
    %v5455 = vadd.f32 0.0, %v5454
    %5456 = vmatmul.f32.gmra.mxu0 %v5396
    %v5457 = vpop.f32.mrf.mxu0
    %v5458 = vadd.f32 0.0, %v5457
    %5459 = vmatmul.f32.gmra.mxu0 %v5400
    %v5460 = vpop.f32.mrf.mxu0
    %v5461 = vadd.f32 0.0, %v5460
    %5462 = vmatmul.f32.gmra.mxu0 %v5404
    %v5463 = vpop.f32.mrf.mxu0
    %v5464 = vadd.f32 0.0, %v5463
    %5465 = vmatmul.f32.gmra.mxu0 %v5408
    %v5466 = vpop.f32.mrf.mxu0
    %v5467 = vadd.f32 0.0, %v5466
    %5468 = vmatmul.f32.gmra.mxu0 %v5412
    %v5469 = vpop.f32.mrf.mxu0
    %v5470 = vadd.f32 0.0, %v5469
    %5471 = vdwg.mxu0
    %5472 = vmatpush.msra.mxu0 %v5362
    %5473 = vmatpush.msra.mxu0 %v5361
    %5474 = vmatpush.msra.mxu0 %v5360
    %5475 = vmatpush.msra.mxu0 %v5359
    %5476 = vmatpush.msra.mxu0 %v5358
    %5477 = vmatpush.msra.mxu0 %v5357
    %5478 = vmatpush.msra.mxu0 %v5356
    %5479 = vmatpush.msra.mxu0 %v5355
    %5480 = vmatpush.msra.mxu0 %v5354
    %5481 = vmatpush.msra.mxu0 %v5353
    %5482 = vmatpush.msra.mxu0 %v5352
    %5483 = vmatpush.msra.mxu0 %v5351
    %5484 = vmatpush.msra.mxu0 %v5350
    %5485 = vmatpush.msra.mxu0 %v5349
    %5486 = vmatpush.msra.mxu0 %v5348
    %5487 = vmatpush.msra.mxu0 %v5347
    %5488 = vmatmul.f32.gmra.mxu0 %v5386
    %v5489 = vpop.f32.mrf.mxu0
    %v5490 = vadd.f32 %v5449, %v5489
    %5491 = vmatmul.f32.gmra.mxu0 %v5390
    %v5492 = vpop.f32.mrf.mxu0
    %v5493 = vadd.f32 %v5452, %v5492
    %5494 = vmatmul.f32.gmra.mxu0 %v5394
    %v5495 = vpop.f32.mrf.mxu0
    %v5496 = vadd.f32 %v5455, %v5495
    %5497 = vmatmul.f32.gmra.mxu0 %v5398
    %v5498 = vpop.f32.mrf.mxu0
    %v5499 = vadd.f32 %v5458, %v5498
    %5500 = vmatmul.f32.gmra.mxu0 %v5402
    %v5501 = vpop.f32.mrf.mxu0
    %v5502 = vadd.f32 %v5461, %v5501
    %5503 = vmatmul.f32.gmra.mxu0 %v5406
    %v5504 = vpop.f32.mrf.mxu0
    %v5505 = vadd.f32 %v5464, %v5504
    %5506 = vmatmul.f32.gmra.mxu0 %v5410
    %v5507 = vpop.f32.mrf.mxu0
    %v5508 = vadd.f32 %v5467, %v5507
    %5509 = vmatmul.f32.gmra.mxu0 %v5414
    %v5510 = vpop.f32.mrf.mxu0
    %v5511 = vadd.f32 %v5470, %v5510
    %5512 = vdwg.mxu0
    %v5513 = vadd.f32 %v5278, %v5490
    %v5514 = vadd.f32 %v5279, %v5493
    %v5515 = vadd.f32 %v5280, %v5496
    %v5516 = vadd.f32 %v5281, %v5499
    %v5517 = vadd.f32 %v5282, %v5502
    %v5518 = vadd.f32 %v5283, %v5505
    %v5519 = vadd.f32 %v5284, %v5508
    %v5520 = vadd.f32 %v5285, %v5511
    %v5521 = vld [vmem:[#allocation3 + $0x90] sm:$0xff]
    %v5522 = vld [vmem:[#allocation3 + $0x98] sm:$0xff]
    %v5523 = vld [vmem:[#allocation3 + $0x20] sm:$0xfc]
    %v5524 = vld [vmem:[#allocation3 + $0x28] sm:$0xfc]
    %v5525 = vld [vmem:[#allocation3 + $0x30] sm:$0xff]
    %v5526 = vld [vmem:[#allocation3 + $0x38] sm:$0xff]
    %v5527 = vld [vmem:[#allocation3 + $0x40] sm:$0xff]
    %v5528 = vld [vmem:[#allocation3 + $0x48] sm:$0xff]
    %v5529 = vld [vmem:[#allocation3 + $0x50] sm:$0xff]
    %v5530 = vld [vmem:[#allocation3 + $0x58] sm:$0xff]
    %v5531 = vld [vmem:[#allocation3 + $0x60] sm:$0xff]
    %v5532 = vld [vmem:[#allocation3 + $0x68] sm:$0xff]
    %v5533 = vld [vmem:[#allocation3 + $0x70] sm:$0xff]
    %v5534 = vld [vmem:[#allocation3 + $0x78] sm:$0xff]
    %v5535 = vld [vmem:[#allocation3 + $0x80] sm:$0xff]
    %v5536 = vld [vmem:[#allocation3 + $0x88] sm:$0xff]
    %v5537 = vld [vmem:[#allocation3 + $0x90] sm:$0xff]
    %v5538 = vld [vmem:[#allocation3 + $0x98] sm:$0xff]
    %v5539 = vld [vmem:[#allocation3 + $0xa0] sm:$0x3]
    %v5540 = vld [vmem:[#allocation3 + $0xa8] sm:$0x3]
    %v5559 = vrot.slane %v5523, 2
    %v5560 = vrot.slane %v5525, 2
    %v5561 = vsel %vm2044, %v5559, %v5560
    %v5562 = vrot.slane %v5524, 2
    %v5563 = vrot.slane %v5526, 2
    %v5564 = vsel %vm2044, %v5562, %v5563
    %v5565 = vrot.slane %v5527, 2
    %v5566 = vsel %vm2044, %v5560, %v5565
    %v5567 = vrot.slane %v5528, 2
    %v5568 = vsel %vm2044, %v5563, %v5567
    %v5569 = vrot.slane %v5529, 2
    %v5570 = vsel %vm2044, %v5565, %v5569
    %v5571 = vrot.slane %v5530, 2
    %v5572 = vsel %vm2044, %v5567, %v5571
    %v5573 = vrot.slane %v5531, 2
    %v5574 = vsel %vm2044, %v5569, %v5573
    %v5575 = vrot.slane %v5532, 2
    %v5576 = vsel %vm2044, %v5571, %v5575
    %v5577 = vrot.slane %v5533, 2
    %v5578 = vsel %vm2044, %v5573, %v5577
    %v5579 = vrot.slane %v5534, 2
    %v5580 = vsel %vm2044, %v5575, %v5579
    %v5581 = vrot.slane %v5535, 2
    %v5582 = vsel %vm2044, %v5577, %v5581
    %v5583 = vrot.slane %v5536, 2
    %v5584 = vsel %vm2044, %v5579, %v5583
    %v5585 = vrot.slane %v5537, 2
    %v5586 = vsel %vm2044, %v5581, %v5585
    %v5587 = vrot.slane %v5538, 2
    %v5588 = vsel %vm2044, %v5583, %v5587
    %v5589 = vrot.slane %v5539, 2
    %v5590 = vsel %vm2044, %v5585, %v5589
    %v5591 = vrot.slane %v5540, 2
    %v5592 = vsel %vm2044, %v5587, %v5591
    %v5609 = vmax.f32 %v5065, %v5561
    %v5610 = vmax.f32 %v5066, %v5564
    %v5611 = vmax.f32 %v5067, %v5566
    %v5612 = vmax.f32 %v5068, %v5568
    %v5613 = vmax.f32 %v5069, %v5570
    %v5614 = vmax.f32 %v5070, %v5572
    %v5615 = vmax.f32 %v5071, %v5574
    %v5616 = vmax.f32 %v5072, %v5576
    %v5617 = vmax.f32 %v5073, %v5578
    %v5618 = vmax.f32 %v5074, %v5580
    %v5619 = vmax.f32 %v5075, %v5582
    %v5620 = vmax.f32 %v5076, %v5584
    %v5621 = vmax.f32 %v5061, %v5586
    %v5622 = vmax.f32 %v5062, %v5588
    %v5623 = vmax.f32 %v5521, %v5590
    %v5624 = vmax.f32 %v5522, %v5592
    %s5625 = scalar_lea.vmem [#allocation12], 1024
    %v5626 = vld [vmem:[%s5625] sm:$0xff]
    %v5627 = vld [vmem:[%s5625 + $0x8] sm:$0xff]
    %v5628 = vld [vmem:[%s5625 + $0x10] sm:$0xff]
    %v5629 = vld [vmem:[%s5625 + $0x18] sm:$0xff]
    %v5630 = vld [vmem:[%s5625 + $0x20] sm:$0xff]
    %v5631 = vld [vmem:[%s5625 + $0x28] sm:$0xff]
    %v5632 = vld [vmem:[%s5625 + $0x30] sm:$0xff]
    %v5633 = vld [vmem:[%s5625 + $0x38] sm:$0xff]
    %v5634 = vld [vmem:[%s5625 + $0x40] sm:$0xff]
    %v5635 = vld [vmem:[%s5625 + $0x48] sm:$0xff]
    %v5636 = vld [vmem:[%s5625 + $0x50] sm:$0xff]
    %v5637 = vld [vmem:[%s5625 + $0x58] sm:$0xff]
    %v5638 = vld [vmem:[%s5625 + $0x60] sm:$0xff]
    %v5639 = vld [vmem:[%s5625 + $0x68] sm:$0xff]
    %v5640 = vld [vmem:[%s5625 + $0x70] sm:$0xff]
    %v5641 = vld [vmem:[%s5625 + $0x78] sm:$0xff]
    %v5642 = vld [vmem:[%s5625 + $0x80] sm:$0xff]
    %v5643 = vld [vmem:[%s5625 + $0x88] sm:$0xff]
    %v5644 = vld [vmem:[%s5625 + $0x90] sm:$0xff]
    %v5645 = vld [vmem:[%s5625 + $0x98] sm:$0xff]
    %v5646 = vld [vmem:[%s5625 + $0xa0] sm:$0xff]
    %v5647 = vld [vmem:[%s5625 + $0xa8] sm:$0xff]
    %v5648 = vld [vmem:[%s5625 + $0xb0] sm:$0xff]
    %v5649 = vld [vmem:[%s5625 + $0xb8] sm:$0xff]
    %v5650 = vld [vmem:[%s5625 + $0xc0] sm:$0xff]
    %v5651 = vld [vmem:[%s5625 + $0xc8] sm:$0xff]
    %v5652 = vld [vmem:[%s5625 + $0xd0] sm:$0xff]
    %v5653 = vld [vmem:[%s5625 + $0xd8] sm:$0xff]
    %v5654 = vld [vmem:[%s5625 + $0xe0] sm:$0xff]
    %v5655 = vld [vmem:[%s5625 + $0xe8] sm:$0xff]
    %v5656 = vld [vmem:[%s5625 + $0xf0] sm:$0xff]
    %v5657 = vld [vmem:[%s5625 + $0xf8] sm:$0xff]
    %5658 = vmatpush.msra.mxu0 %v5641
    %5659 = vmatpush.msra.mxu0 %v5640
    %5660 = vmatpush.msra.mxu0 %v5639
    %5661 = vmatpush.msra.mxu0 %v5638
    %5662 = vmatpush.msra.mxu0 %v5637
    %5663 = vmatpush.msra.mxu0 %v5636
    %5664 = vmatpush.msra.mxu0 %v5635
    %5665 = vmatpush.msra.mxu0 %v5634
    %5666 = vmatpush.msra.mxu0 %v5633
    %5667 = vmatpush.msra.mxu0 %v5632
    %5668 = vmatpush.msra.mxu0 %v5631
    %5669 = vmatpush.msra.mxu0 %v5630
    %5670 = vmatpush.msra.mxu0 %v5629
    %5671 = vmatpush.msra.mxu0 %v5628
    %5672 = vmatpush.msra.mxu0 %v5627
    %5673 = vmatpush.msra.mxu0 %v5626
    %5674 = vmatmul.f32.gmra.mxu0 %v5609
    %v5675 = vpop.f32.mrf.mxu0
    %v5676 = vadd.f32 0.0, %v5675
    %5677 = vmatmul.f32.gmra.mxu0 %v5611
    %v5678 = vpop.f32.mrf.mxu0
    %v5679 = vadd.f32 0.0, %v5678
    %5680 = vmatmul.f32.gmra.mxu0 %v5613
    %v5681 = vpop.f32.mrf.mxu0
    %v5682 = vadd.f32 0.0, %v5681
    %5683 = vmatmul.f32.gmra.mxu0 %v5615
    %v5684 = vpop.f32.mrf.mxu0
    %v5685 = vadd.f32 0.0, %v5684
    %5686 = vmatmul.f32.gmra.mxu0 %v5617
    %v5687 = vpop.f32.mrf.mxu0
    %v5688 = vadd.f32 0.0, %v5687
    %5689 = vmatmul.f32.gmra.mxu0 %v5619
    %v5690 = vpop.f32.mrf.mxu0
    %v5691 = vadd.f32 0.0, %v5690
    %5692 = vmatmul.f32.gmra.mxu0 %v5621
    %v5693 = vpop.f32.mrf.mxu0
    %v5694 = vadd.f32 0.0, %v5693
    %5695 = vmatmul.f32.gmra.mxu0 %v5623
    %v5696 = vpop.f32.mrf.mxu0
    %v5697 = vadd.f32 0.0, %v5696
    %5698 = vdwg.mxu0
    %5699 = vmatpush.msra.mxu0 %v5657
    %5700 = vmatpush.msra.mxu0 %v5656
    %5701 = vmatpush.msra.mxu0 %v5655
    %5702 = vmatpush.msra.mxu0 %v5654
    %5703 = vmatpush.msra.mxu0 %v5653
    %5704 = vmatpush.msra.mxu0 %v5652
    %5705 = vmatpush.msra.mxu0 %v5651
    %5706 = vmatpush.msra.mxu0 %v5650
    %5707 = vmatpush.msra.mxu0 %v5649
    %5708 = vmatpush.msra.mxu0 %v5648
    %5709 = vmatpush.msra.mxu0 %v5647
    %5710 = vmatpush.msra.mxu0 %v5646
    %5711 = vmatpush.msra.mxu0 %v5645
    %5712 = vmatpush.msra.mxu0 %v5644
    %5713 = vmatpush.msra.mxu0 %v5643
    %5714 = vmatpush.msra.mxu0 %v5642
    %5715 = vmatmul.f32.gmra.mxu0 %v5610
    %v5716 = vpop.f32.mrf.mxu0
    %v5717 = vadd.f32 %v5676, %v5716
    %5718 = vmatmul.f32.gmra.mxu0 %v5612
    %v5719 = vpop.f32.mrf.mxu0
    %v5720 = vadd.f32 %v5679, %v5719
    %5721 = vmatmul.f32.gmra.mxu0 %v5614
    %v5722 = vpop.f32.mrf.mxu0
    %v5723 = vadd.f32 %v5682, %v5722
    %5724 = vmatmul.f32.gmra.mxu0 %v5616
    %v5725 = vpop.f32.mrf.mxu0
    %v5726 = vadd.f32 %v5685, %v5725
    %5727 = vmatmul.f32.gmra.mxu0 %v5618
    %v5728 = vpop.f32.mrf.mxu0
    %v5729 = vadd.f32 %v5688, %v5728
    %5730 = vmatmul.f32.gmra.mxu0 %v5620
    %v5731 = vpop.f32.mrf.mxu0
    %v5732 = vadd.f32 %v5691, %v5731
    %5733 = vmatmul.f32.gmra.mxu0 %v5622
    %v5734 = vpop.f32.mrf.mxu0
    %v5735 = vadd.f32 %v5694, %v5734
    %5736 = vmatmul.f32.gmra.mxu0 %v5624
    %v5737 = vpop.f32.mrf.mxu0
    %v5738 = vadd.f32 %v5697, %v5737
    %5739 = vdwg.mxu0
    %v5740 = vadd.f32 %v5513, %v5717
    %v5741 = vadd.f32 %v5514, %v5720
    %v5742 = vadd.f32 %v5515, %v5723
    %v5743 = vadd.f32 %v5516, %v5726
    %v5744 = vadd.f32 %v5517, %v5729
    %v5745 = vadd.f32 %v5518, %v5732
    %v5746 = vadd.f32 %v5519, %v5735
    %v5747 = vadd.f32 %v5520, %v5738
    %v5748 = vld [vmem:[#allocation13] sm:$0x1]
    %v5750 = vperm.slane %v5748, 0
    %v5752 = vadd.f32 %v5740, %v5750
    %v5753 = vadd.f32 %v5741, %v5750
    %v5754 = vadd.f32 %v5742, %v5750
    %v5755 = vadd.f32 %v5743, %v5750
    %v5756 = vadd.f32 %v5744, %v5750
    %v5757 = vadd.f32 %v5745, %v5750
    %v5758 = vadd.f32 %v5746, %v5750
    %v5759 = vadd.f32 %v5747, %v5750
    %v5760 = vmax.f32 %v5752, 0.0
    %v5761 = vmax.f32 %v5753, 0.0
    %v5762 = vmax.f32 %v5754, 0.0
    %v5763 = vmax.f32 %v5755, 0.0
    %v5764 = vmax.f32 %v5756, 0.0
    %v5765 = vmax.f32 %v5757, 0.0
    %v5766 = vmax.f32 %v5758, 0.0
    %v5767 = vmax.f32 %v5759, 0.0
    %v5768 = vld [vmem:[#allocation15] sm:$0xff]
    %v5769 = vld [vmem:[#allocation15 + $0x8] sm:$0xff]
    %v5770 = vld [vmem:[#allocation15 + $0x10] sm:$0xff]
    %v5771 = vld [vmem:[#allocation15 + $0x18] sm:$0xff]
    %v5772 = vld [vmem:[#allocation15 + $0x20] sm:$0xff]
    %v5773 = vld [vmem:[#allocation15 + $0x28] sm:$0xff]
    %v5774 = vld [vmem:[#allocation15 + $0x30] sm:$0xff]
    %v5775 = vld [vmem:[#allocation15 + $0x38] sm:$0xff]
    %v5776 = vld [vmem:[#allocation15 + $0x40] sm:$0xff]
    %v5777 = vld [vmem:[#allocation15 + $0x48] sm:$0xff]
    %v5778 = vld [vmem:[#allocation15 + $0x50] sm:$0xff]
    %v5779 = vld [vmem:[#allocation15 + $0x58] sm:$0xff]
    %v5780 = vld [vmem:[#allocation15 + $0x60] sm:$0xff]
    %v5781 = vld [vmem:[#allocation15 + $0x68] sm:$0xff]
    %v5782 = vld [vmem:[#allocation15 + $0x70] sm:$0xff]
    %v5783 = vld [vmem:[#allocation15 + $0x78] sm:$0xff]
    %v5784 = vld [vmem:[#allocation16] sm:$0x1]
    %v5786 = vperm.slane %v5784, 0
    %5788 = vmatpush.msra.mxu0 %v5783
    %5789 = vmatpush.msra.mxu0 %v5782
    %5790 = vmatpush.msra.mxu0 %v5781
    %5791 = vmatpush.msra.mxu0 %v5780
    %5792 = vmatpush.msra.mxu0 %v5779
    %5793 = vmatpush.msra.mxu0 %v5778
    %5794 = vmatpush.msra.mxu0 %v5777
    %5795 = vmatpush.msra.mxu0 %v5776
    %5796 = vmatpush.msra.mxu0 %v5775
    %5797 = vmatpush.msra.mxu0 %v5774
    %5798 = vmatpush.msra.mxu0 %v5773
    %5799 = vmatpush.msra.mxu0 %v5772
    %5800 = vmatpush.msra.mxu0 %v5771
    %5801 = vmatpush.msra.mxu0 %v5770
    %5802 = vmatpush.msra.mxu0 %v5769
    %5803 = vmatpush.msra.mxu0 %v5768
    %5804 = vmatmul.f32.gmra.mxu0 %v5760
    %v5805 = vpop.f32.mrf.mxu0
    %v5806 = vadd.f32 %v5786, %v5805
    %5807 = vmatmul.f32.gmra.mxu0 %v5761
    %v5808 = vpop.f32.mrf.mxu0
    %v5809 = vadd.f32 %v5786, %v5808
    %5810 = vmatmul.f32.gmra.mxu0 %v5762
    %v5811 = vpop.f32.mrf.mxu0
    %v5812 = vadd.f32 %v5786, %v5811
    %5813 = vmatmul.f32.gmra.mxu0 %v5763
    %v5814 = vpop.f32.mrf.mxu0
    %v5815 = vadd.f32 %v5786, %v5814
    %5816 = vmatmul.f32.gmra.mxu0 %v5764
    %v5817 = vpop.f32.mrf.mxu0
    %v5818 = vadd.f32 %v5786, %v5817
    %5819 = vmatmul.f32.gmra.mxu0 %v5765
    %v5820 = vpop.f32.mrf.mxu0
    %v5821 = vadd.f32 %v5786, %v5820
    %5822 = vmatmul.f32.gmra.mxu0 %v5766
    %v5823 = vpop.f32.mrf.mxu0
    %v5824 = vadd.f32 %v5786, %v5823
    %5825 = vmatmul.f32.gmra.mxu0 %v5767
    %v5826 = vpop.f32.mrf.mxu0
    %v5827 = vadd.f32 %v5786, %v5826
    %5828 = vdwg.mxu0
    %v5829 = vmax.f32 %v5806, 0.0
    %v5830 = vmax.f32 %v5809, 0.0
    %v5831 = vmax.f32 %v5812, 0.0
    %v5832 = vmax.f32 %v5815, 0.0
    %v5833 = vmax.f32 %v5818, 0.0
    %v5834 = vmax.f32 %v5821, 0.0
    %v5835 = vmax.f32 %v5824, 0.0
    %v5836 = vmax.f32 %v5827, 0.0
    %v5837 = vld [vmem:[#allocation18] sm:$0xff]
    %v5838 = vld [vmem:[#allocation18 + $0x8] sm:$0xff]
    %v5839 = vld [vmem:[#allocation18 + $0x10] sm:$0xff]
    %v5840 = vld [vmem:[#allocation18 + $0x18] sm:$0xff]
    %v5841 = vld [vmem:[#allocation18 + $0x20] sm:$0xff]
    %v5842 = vld [vmem:[#allocation18 + $0x28] sm:$0xff]
    %v5843 = vld [vmem:[#allocation18 + $0x30] sm:$0xff]
    %v5844 = vld [vmem:[#allocation18 + $0x38] sm:$0xff]
    %v5845 = vld [vmem:[#allocation18 + $0x40] sm:$0xff]
    %v5846 = vld [vmem:[#allocation18 + $0x48] sm:$0xff]
    %v5847 = vld [vmem:[#allocation18 + $0x50] sm:$0xff]
    %v5848 = vld [vmem:[#allocation18 + $0x58] sm:$0xff]
    %v5849 = vld [vmem:[#allocation18 + $0x60] sm:$0xff]
    %v5850 = vld [vmem:[#allocation18 + $0x68] sm:$0xff]
    %v5851 = vld [vmem:[#allocation18 + $0x70] sm:$0xff]
    %v5852 = vld [vmem:[#allocation18 + $0x78] sm:$0xff]
    %v5853 = vld [vmem:[#allocation19] sm:$0x1]
    %v5855 = vperm.slane %v5853, 0
    %5857 = vmatpush.msra.mxu0 %v5852
    %5858 = vmatpush.msra.mxu0 %v5851
    %5859 = vmatpush.msra.mxu0 %v5850
    %5860 = vmatpush.msra.mxu0 %v5849
    %5861 = vmatpush.msra.mxu0 %v5848
    %5862 = vmatpush.msra.mxu0 %v5847
    %5863 = vmatpush.msra.mxu0 %v5846
    %5864 = vmatpush.msra.mxu0 %v5845
    %5865 = vmatpush.msra.mxu0 %v5844
    %5866 = vmatpush.msra.mxu0 %v5843
    %5867 = vmatpush.msra.mxu0 %v5842
    %5868 = vmatpush.msra.mxu0 %v5841
    %5869 = vmatpush.msra.mxu0 %v5840
    %5870 = vmatpush.msra.mxu0 %v5839
    %5871 = vmatpush.msra.mxu0 %v5838
    %5872 = vmatpush.msra.mxu0 %v5837
    %5873 = vmatmul.f32.gmra.mxu0 %v5829
    %v5874 = vpop.f32.mrf.mxu0
    %v5875 = vadd.f32 %v5855, %v5874
    %5876 = vmatmul.f32.gmra.mxu0 %v5830
    %v5877 = vpop.f32.mrf.mxu0
    %5878 = vmatmul.f32.gmra.mxu0 %v5831
    %v5879 = vpop.f32.mrf.mxu0
    %5880 = vmatmul.f32.gmra.mxu0 %v5832
    %v5881 = vpop.f32.mrf.mxu0
    %5882 = vmatmul.f32.gmra.mxu0 %v5833
    %v5883 = vpop.f32.mrf.mxu0
    %v5884 = vadd.f32 %v5855, %v5883
    %5885 = vmatmul.f32.gmra.mxu0 %v5834
    %v5886 = vpop.f32.mrf.mxu0
    %5887 = vmatmul.f32.gmra.mxu0 %v5835
    %v5888 = vpop.f32.mrf.mxu0
    %5889 = vmatmul.f32.gmra.mxu0 %v5836
    %v5890 = vpop.f32.mrf.mxu0
    %5891 = vdwg.mxu0
    %5892 = vst [vmem:[#allocation21] sm:$0x1] %v5875
    %5893 = vst [vmem:[#allocation21 + $0x1] sm:$0x1] %v5884
    // Predicated region
    $region86: #{net_forward.1} parent=1 // pred_check
      _
    $region87: #{net_forward.1} parent=1 // pred_check_branch
      %5895 = sbr.rel (0) target = $region89
    $region88: #{net_forward.1} parent=1 // pred_region
      %5897 = vsyncadd [#allocation6], 0
      %s5899 = sshll.u32 [#allocation21], 4
      %s5900 = int_to_ptr.vmem [resolvable:$true] %s5899
      %s5901 = sshll.u32 %s11, 4
      %s5902 = int_to_ptr.hbm [resolvable:$true] %s5901
      %5904 = dma.vmem_to_hbm [thread:$0]  %s5900, 32, %s5902, [#allocation6]
    $region89: #{net_forward.1} parent=1 // pred_fallthru
      _
    // Predicated region
    $region90: #{net_forward.1} parent=1 // pred_check
      _
    $region91: #{net_forward.1} parent=1 // pred_check_branch
      %5906 = sbr.rel (0) target = $region93
    $region92: #{net_forward.1} parent=1 // pred_region
      %5908 = dma.done [#allocation6], 32
    $region93: #{net_forward.1} parent=1 // pred_fallthru
      _
    %5909 = vsyncpa [#allocation5], 1
    %5910 = vsyncpa [#allocation8], 1
    %5911 = vsyncpa [#allocation11], 1
    %5912 = vsyncpa [#allocation14], 1
    %5913 = vsyncpa [#allocation17], 1
    %5914 = vsyncpa [#allocation20], 1
    %5915 = vsyncpa [#allocation6], 1

</llo_original>
